<compile_context>
chip_gen: v6e
topology: v6e:2x2x1
jax: 0.10.0
libtpu: 0.0.40
codegen_flags: <defaults>
</compile_context>

<pallas_src>
import jax
import jax.numpy as jnp
from jax.experimental import pallas as pl
from jax.experimental.pallas import tpu as pltpu


# ----------------------------------------------------------------------------
# Pallas kernel: fused MLP
#   h0 = relu(sum_g x_g @ W0[rows_g] + b0)        (fused "concat")
#   hm = relu(h_{m-1} @ Wm + bm)                  (middle layers)
#   out^T = sigmoid(W_last . h^T + b_last)        (lane-dense transposed store)
# ----------------------------------------------------------------------------
def _make_mlp_kernel(n_groups: int, n_mid: int, squeeze_out: bool, compute_dtype):
    def kernel(*refs):
        idx = 0
        x_refs = refs[idx:idx + n_groups]; idx += n_groups
        w0_refs = refs[idx:idx + n_groups]; idx += n_groups
        b0_ref = refs[idx]; idx += 1
        mid_refs = refs[idx:idx + 2 * n_mid]; idx += 2 * n_mid
        w_last_ref = refs[idx]; idx += 1
        b_last_ref = refs[idx]; idx += 1
        o_ref = refs[idx]

        # ---- layer 0: concat fused via linearity of the matmul -------------
        #   concat(x_g, axis=-1) @ W0  ==  sum_g  x_g @ W0[rows_g]
        h = b0_ref[...].astype(jnp.float32)                    # (1, dh) broadcast
        for g in range(n_groups):
            xg = x_refs[g][...].astype(compute_dtype)          # bf16 MXU operand
            h = h + jnp.dot(xg, w0_refs[g][...],
                            preferred_element_type=jnp.float32)
        h = jnp.maximum(h, 0.0)                                # ReLU in f32 (VPU)

        # ---- middle hidden layers -------------------------------------------
        for m in range(n_mid):
            w = mid_refs[2 * m][...]
            b = mid_refs[2 * m + 1][...].astype(jnp.float32)
            h = jnp.dot(h.astype(compute_dtype), w,
                        preferred_element_type=jnp.float32) + b
            h = jnp.maximum(h, 0.0)

        # ---- last layer, produced transposed so the store is lane-dense ----
        #   out^T = W_last (d_out, dh)  contracted with  h (tile_n, dh)
        out_t = jax.lax.dot_general(
            w_last_ref[...], h.astype(compute_dtype),
            dimension_numbers=(((1,), (1,)), ((), ())),
            preferred_element_type=jnp.float32)                # (d_out, tile_n)
        out_t = out_t + b_last_ref[...].astype(jnp.float32)    # (d_out, 1) bcast
        if squeeze_out:
            out_t = jax.nn.sigmoid(out_t)                      # EUP, f32
        o_ref[...] = out_t.astype(o_ref.dtype)

    return kernel


# ----------------------------------------------------------------------------
# Wrapper
# ----------------------------------------------------------------------------
def rendering_network_forward(points, normals, view_dirs, feature_vectors,
                              params, *, mode="idr", squeeze_out=True,
                              tile_n=1024, compute_dtype=jnp.bfloat16):
    """params: list of (w_t, b) with w_t shape (d_in_l, d_out_l), b shape (1, d_out_l)."""
    if mode == "idr":
        inputs = (points, view_dirs, normals, feature_vectors)
    elif mode == "no_view_dir":
        inputs = (points, normals, feature_vectors)
    elif mode == "no_normal":
        inputs = (points, view_dirs, feature_vectors)
    else:
        raise ValueError(mode)
    # TODO(synk): multires_view > 0 (get_embedder positional encoding of view_dirs)
    # is not implemented; apply the embedding to view_dirs before calling this.

    n = int(inputs[0].shape[0])
    group_dims = [int(x.shape[1]) for x in inputs]
    d0 = sum(group_dims)
    n_lin = len(params)
    assert n_lin >= 2, "need at least one hidden layer"
    assert int(params[0][0].shape[0]) == d0, "W0 rows must match concat width"
    d_out = int(params[-1][0].shape[1])

    # ---- tile-size selection + padding for arbitrary N ----------------------
    if n <= tile_n:
        tile_n = n                                   # single tile (block == array)
    else:
        tile_n = max(128, (tile_n // 128) * 128)     # keep output lane-dense
    n_pad = (-n) % tile_n
    n_tot = n + n_pad
    if n_pad:
        inputs = tuple(jnp.pad(x, ((0, n_pad), (0, 0))) for x in inputs)
    grid = (n_tot // tile_n,)

    # ---- parameter preprocessing (tiny arrays; negligible cost) -------------
    w0_t, b0 = params[0]
    w0_parts, off = [], 0
    for dg in group_dims:
        w0_parts.append(w0_t[off:off + dg].astype(compute_dtype))
        off += dg
    b0 = b0.reshape(1, -1).astype(jnp.float32)
    mids = []
    for (w_t, b) in params[1:-1]:
        mids += [w_t.astype(compute_dtype), b.reshape(1, -1).astype(jnp.float32)]
    w_last_t, b_last = params[-1]
    w_last = w_last_t.T.astype(compute_dtype)                 # (d_out, d_hidden)
    b_last = b_last.reshape(d_out, 1).astype(jnp.float32)

    param_args = w0_parts + [b0] + mids + [w_last, b_last]
    flat_args = list(inputs) + param_args

    # ---- BlockSpecs ----------------------------------------------------------
    in_specs = [pl.BlockSpec((tile_n, dg), lambda i: (i, 0)) for dg in group_dims]
    const_map = lambda i: (0, 0)
    for a in param_args:
        # grid-invariant parameters (could use pipeline_mode=pl.Buffered(1);
        # left at default buffering — ~30 KB total, irrelevant for VMEM).
        in_specs.append(pl.BlockSpec(a.shape, const_map))
    out_specs = pl.BlockSpec((d_out, tile_n), lambda i: (0, i))

    # ---- advisory cost estimate (kernel is memory/overhead bound) -----------
    flops = 2 * n_tot * sum(int(w.shape[0]) * int(w.shape[1]) for w, _ in params)
    transcendentals = n_tot * d_out if squeeze_out else 0
    bytes_accessed = (sum(int(x.size) * x.dtype.itemsize for x in inputs)
                      + n_tot * d_out * 4
                      + sum(int(a.size) * a.dtype.itemsize for a in param_args))

    kernel = _make_mlp_kernel(len(inputs), n_lin - 2, squeeze_out, compute_dtype)

    out_t = pl.pallas_call(
        kernel,
        out_shape=jax.ShapeDtypeStruct((d_out, n_tot), jnp.float32),
        grid_spec=pltpu.PrefetchScalarGridSpec(
            num_scalar_prefetch=0,
            grid=grid,
            in_specs=in_specs,
            out_specs=out_specs,
        ),
        compiler_params=pltpu.CompilerParams(
            dimension_semantics=("parallel",)),
        cost_estimate=pl.CostEstimate(
            flops=int(flops),
            transcendentals=int(transcendentals),
            bytes_accessed=int(bytes_accessed)),
    )(*flat_args)

    return out_t[:, :n].T            # back to module layout (N, d_out)


# ----------------------------------------------------------------------------
# Deterministic parameter init (PyTorch Linear + weight_norm folded in glue)
# ----------------------------------------------------------------------------
def init_params(key, dims, weight_norm=True):
    params = []
    for l in range(len(dims) - 1):
        d_in, d_out = dims[l], dims[l + 1]
        key, kv, kg, kb = jax.random.split(key, 4)
        bound = 1.0 / jnp.sqrt(d_in)
        v = jax.random.uniform(kv, (d_out, d_in), jnp.float32, -bound, bound)
        b = jax.random.uniform(kb, (d_out,), jnp.float32, -bound, bound)
        if weight_norm:
            # weight_norm(dim=0): w = g * v / ||v||_row ; deterministic g
            g = 1.0 + 0.1 * jax.random.uniform(kg, (d_out, 1), jnp.float32)
            w = g * v / jnp.linalg.norm(v, axis=1, keepdims=True)
        else:
            w = v
        # pre-transpose so the math is x @ w_t + b
        params.append((w.T, b.reshape(1, d_out)))
    return params


# ----------------------------------------------------------------------------
# Pure-JAX reference (respects `mode`, emulates the kernel's bf16 operands)
# ----------------------------------------------------------------------------
def reference_forward(points, normals, view_dirs, feature_vectors, params,
                      mode="idr", squeeze_out=True, compute_dtype=jnp.bfloat16):
    if mode == "idr":
        x = jnp.concatenate([points, view_dirs, normals, feature_vectors], axis=-1)
    elif mode == "no_view_dir":
        x = jnp.concatenate([points, normals, feature_vectors], axis=-1)
    elif mode == "no_normal":
        x = jnp.concatenate([points, view_dirs, feature_vectors], axis=-1)
    else:
        raise ValueError(mode)
    for l, (w_t, b) in enumerate(params):
        x = jnp.dot(x.astype(compute_dtype), w_t.astype(compute_dtype),
                    preferred_element_type=jnp.float32) + b.reshape(1, -1)
        if l < len(params) - 1:
            x = jnp.maximum(x, 0.0)
    if squeeze_out:
        x = jax.nn.sigmoid(x)
    return x


if __name__ == "__main__":
    # Small, module-consistent shapes.
    # multires_view = 0 -> embedview_fn is None (no positional embedding path).
    N = 1024          # sample points; 2 tiles of 512 rows -> both v7x TCs busy
    d_in = 9          # points(3) + view_dirs(3) + normals(3)
    d_feature = 32
    d_hidden = 64
    n_layers = 2
    d_out = 3
    dims = [d_in + d_feature] + [d_hidden] * n_layers + [d_out]

    key = jax.random.PRNGKey(0)
    key, k1, k2, k3, k4, kp = jax.random.split(key, 6)
    points = jax.random.normal(k1, (N, 3), jnp.float32)
    normals = jax.random.normal(k2, (N, 3), jnp.float32)
    view_dirs = jax.random.normal(k3, (N, 3), jnp.float32)
    feature_vectors = jax.random.normal(k4, (N, d_feature), jnp.float32)

    params = init_params(kp, dims, weight_norm=True)

    out = rendering_network_forward(points, normals, view_dirs, feature_vectors,
                                    params, mode="idr", squeeze_out=True,
                                    tile_n=512, compute_dtype=jnp.bfloat16)
    out = jax.block_until_ready(out)

    ref = reference_forward(points, normals, view_dirs, feature_vectors, params,
                            mode="idr", squeeze_out=True,
                            compute_dtype=jnp.bfloat16)
    assert out.shape == (N, d_out)
    assert jnp.allclose(out, ref, atol=1e-3, rtol=1e-3), "mismatch vs JAX reference"

    print("KERNEL_OK")
</pallas_src>

<mosaic_0001>
module attributes {stable_mosaic.version = 11 : i64} {
  func.func @kernel(%arg0: i32, %arg1: memref<512x3xf32, #tpu.memory_space<vmem>>, %arg2: memref<512x3xf32, #tpu.memory_space<vmem>>, %arg3: memref<512x3xf32, #tpu.memory_space<vmem>>, %arg4: memref<512x32xf32, #tpu.memory_space<vmem>>, %arg5: memref<3x64xbf16, #tpu.memory_space<vmem>>, %arg6: memref<3x64xbf16, #tpu.memory_space<vmem>>, %arg7: memref<3x64xbf16, #tpu.memory_space<vmem>>, %arg8: memref<32x64xbf16, #tpu.memory_space<vmem>>, %arg9: memref<1x64xf32, #tpu.memory_space<vmem>>, %arg10: memref<64x64xbf16, #tpu.memory_space<vmem>>, %arg11: memref<1x64xf32, #tpu.memory_space<vmem>>, %arg12: memref<3x64xbf16, #tpu.memory_space<vmem>>, %arg13: memref<3x1xf32, #tpu.memory_space<vmem>>, %arg14: memref<3x512xf32, #tpu.memory_space<vmem>>) attributes {dimension_semantics = [#tpu.dimension_semantics<parallel>], iteration_bounds = array<i64: 2>, scalar_prefetch = 0 : i64, scratch_operands = 0 : i64, tpu.core_type = #tpu.core_type<tc>, window_params = [{transform_indices = @transform_0, window_bounds = array<i64: 512, 3>}, {transform_indices = @transform_1, window_bounds = array<i64: 512, 3>}, {transform_indices = @transform_2, window_bounds = array<i64: 512, 3>}, {transform_indices = @transform_3, window_bounds = array<i64: 512, 32>}, {pipeline_mode = #tpu.pipeline_mode<synchronous>, transform_indices = @transform_4, window_bounds = array<i64: 3, 64>}, {pipeline_mode = #tpu.pipeline_mode<synchronous>, transform_indices = @transform_5, window_bounds = array<i64: 3, 64>}, {pipeline_mode = #tpu.pipeline_mode<synchronous>, transform_indices = @transform_6, window_bounds = array<i64: 3, 64>}, {pipeline_mode = #tpu.pipeline_mode<synchronous>, transform_indices = @transform_7, window_bounds = array<i64: 32, 64>}, {pipeline_mode = #tpu.pipeline_mode<synchronous>, transform_indices = @transform_8, window_bounds = array<i64: 1, 64>}, {pipeline_mode = #tpu.pipeline_mode<synchronous>, transform_indices = @transform_9, window_bounds = array<i64: 64, 64>}, {pipeline_mode = #tpu.pipeline_mode<synchronous>, transform_indices = @transform_10, window_bounds = array<i64: 1, 64>}, {pipeline_mode = #tpu.pipeline_mode<synchronous>, transform_indices = @transform_11, window_bounds = array<i64: 3, 64>}, {pipeline_mode = #tpu.pipeline_mode<synchronous>, transform_indices = @transform_12, window_bounds = array<i64: 3, 1>}, {transform_indices = @transform_13, window_bounds = array<i64: 3, 512>}]} {
    %c0 = arith.constant 0 : index
    %c0_0 = arith.constant 0 : index
    %0 = vector.load %arg9[%c0, %c0_0] : memref<1x64xf32, #tpu.memory_space<vmem>>, vector<1x64xf32>
    %c0_1 = arith.constant 0 : index
    %c0_2 = arith.constant 0 : index
    %1 = vector.load %arg1[%c0_1, %c0_2] : memref<512x3xf32, #tpu.memory_space<vmem>>, vector<512x3xf32>
    %2 = arith.truncf %1 : vector<512x3xf32> to vector<512x3xbf16>
    %c0_3 = arith.constant 0 : index
    %c0_4 = arith.constant 0 : index
    %3 = vector.load %arg5[%c0_3, %c0_4] : memref<3x64xbf16, #tpu.memory_space<vmem>>, vector<3x64xbf16>
    %cst = arith.constant dense<0.000000e+00> : vector<512x64xf32>
    %4 = tpu.matmul %2, %3, %cst {dimension_numbers = #tpu.dot_dimension_numbers<[1], [0], [0], [1], [0, 0, 1, 1], [], []>} : vector<512x3xbf16>, vector<3x64xbf16>, vector<512x64xf32> -> vector<512x64xf32>
    %5 = vector.broadcast %0 : vector<1x64xf32> to vector<512x64xf32>
    %6 = arith.addf %5, %4 : vector<512x64xf32>
    %c0_5 = arith.constant 0 : index
    %c0_6 = arith.constant 0 : index
    %7 = vector.load %arg2[%c0_5, %c0_6] : memref<512x3xf32, #tpu.memory_space<vmem>>, vector<512x3xf32>
    %8 = arith.truncf %7 : vector<512x3xf32> to vector<512x3xbf16>
    %c0_7 = arith.constant 0 : index
    %c0_8 = arith.constant 0 : index
    %9 = vector.load %arg6[%c0_7, %c0_8] : memref<3x64xbf16, #tpu.memory_space<vmem>>, vector<3x64xbf16>
    %cst_9 = arith.constant dense<0.000000e+00> : vector<512x64xf32>
    %10 = tpu.matmul %8, %9, %cst_9 {dimension_numbers = #tpu.dot_dimension_numbers<[1], [0], [0], [1], [0, 0, 1, 1], [], []>} : vector<512x3xbf16>, vector<3x64xbf16>, vector<512x64xf32> -> vector<512x64xf32>
    %11 = arith.addf %6, %10 : vector<512x64xf32>
    %c0_10 = arith.constant 0 : index
    %c0_11 = arith.constant 0 : index
    %12 = vector.load %arg3[%c0_10, %c0_11] : memref<512x3xf32, #tpu.memory_space<vmem>>, vector<512x3xf32>
    %13 = arith.truncf %12 : vector<512x3xf32> to vector<512x3xbf16>
    %c0_12 = arith.constant 0 : index
    %c0_13 = arith.constant 0 : index
    %14 = vector.load %arg7[%c0_12, %c0_13] : memref<3x64xbf16, #tpu.memory_space<vmem>>, vector<3x64xbf16>
    %cst_14 = arith.constant dense<0.000000e+00> : vector<512x64xf32>
    %15 = tpu.matmul %13, %14, %cst_14 {dimension_numbers = #tpu.dot_dimension_numbers<[1], [0], [0], [1], [0, 0, 1, 1], [], []>} : vector<512x3xbf16>, vector<3x64xbf16>, vector<512x64xf32> -> vector<512x64xf32>
    %16 = arith.addf %11, %15 : vector<512x64xf32>
    %c0_15 = arith.constant 0 : index
    %c0_16 = arith.constant 0 : index
    %17 = vector.load %arg4[%c0_15, %c0_16] : memref<512x32xf32, #tpu.memory_space<vmem>>, vector<512x32xf32>
    %18 = arith.truncf %17 : vector<512x32xf32> to vector<512x32xbf16>
    %c0_17 = arith.constant 0 : index
    %c0_18 = arith.constant 0 : index
    %19 = vector.load %arg8[%c0_17, %c0_18] : memref<32x64xbf16, #tpu.memory_space<vmem>>, vector<32x64xbf16>
    %cst_19 = arith.constant dense<0.000000e+00> : vector<512x64xf32>
    %20 = tpu.matmul %18, %19, %cst_19 {dimension_numbers = #tpu.dot_dimension_numbers<[1], [0], [0], [1], [0, 0, 1, 1], [], []>} : vector<512x32xbf16>, vector<32x64xbf16>, vector<512x64xf32> -> vector<512x64xf32>
    %21 = arith.addf %16, %20 : vector<512x64xf32>
    %cst_20 = arith.constant 0.000000e+00 : f32
    %22 = vector.broadcast %cst_20 : f32 to vector<512x64xf32>
    %23 = arith.maximumf %21, %22 : vector<512x64xf32>
    %c0_21 = arith.constant 0 : index
    %c0_22 = arith.constant 0 : index
    %24 = vector.load %arg10[%c0_21, %c0_22] : memref<64x64xbf16, #tpu.memory_space<vmem>>, vector<64x64xbf16>
    %c0_23 = arith.constant 0 : index
    %c0_24 = arith.constant 0 : index
    %25 = vector.load %arg11[%c0_23, %c0_24] : memref<1x64xf32, #tpu.memory_space<vmem>>, vector<1x64xf32>
    %26 = arith.truncf %23 : vector<512x64xf32> to vector<512x64xbf16>
    %cst_25 = arith.constant dense<0.000000e+00> : vector<512x64xf32>
    %27 = tpu.matmul %26, %24, %cst_25 {dimension_numbers = #tpu.dot_dimension_numbers<[1], [0], [0], [1], [0, 0, 1, 1], [], []>} : vector<512x64xbf16>, vector<64x64xbf16>, vector<512x64xf32> -> vector<512x64xf32>
    %28 = vector.broadcast %25 : vector<1x64xf32> to vector<512x64xf32>
    %29 = arith.addf %27, %28 : vector<512x64xf32>
    %cst_26 = arith.constant 0.000000e+00 : f32
    %30 = vector.broadcast %cst_26 : f32 to vector<512x64xf32>
    %31 = arith.maximumf %29, %30 : vector<512x64xf32>
    %c0_27 = arith.constant 0 : index
    %c0_28 = arith.constant 0 : index
    %32 = vector.load %arg12[%c0_27, %c0_28] : memref<3x64xbf16, #tpu.memory_space<vmem>>, vector<3x64xbf16>
    %33 = arith.truncf %31 : vector<512x64xf32> to vector<512x64xbf16>
    %cst_29 = arith.constant dense<0.000000e+00> : vector<3x512xf32>
    %34 = tpu.matmul %32, %33, %cst_29 {dimension_numbers = #tpu.dot_dimension_numbers<[1], [1], [0], [0], [0, 0, 1, 0], [], []>} : vector<3x64xbf16>, vector<512x64xbf16>, vector<3x512xf32> -> vector<3x512xf32>
    %c0_30 = arith.constant 0 : index
    %c0_31 = arith.constant 0 : index
    %35 = vector.load %arg13[%c0_30, %c0_31] : memref<3x1xf32, #tpu.memory_space<vmem>>, vector<3x1xf32>
    %36 = vector.broadcast %35 : vector<3x1xf32> to vector<3x512xf32>
    %37 = arith.addf %34, %36 : vector<3x512xf32>
    %38 = arith.negf %37 : vector<3x512xf32>
    %39 = math.exp %38 : vector<3x512xf32>
    %cst_32 = arith.constant 1.000000e+00 : f32
    %40 = vector.broadcast %cst_32 : f32 to vector<3x512xf32>
    %41 = arith.addf %40, %39 : vector<3x512xf32>
    %42 = arith.divf %40, %41 : vector<3x512xf32>
    %c0_33 = arith.constant 0 : index
    %c0_34 = arith.constant 0 : index
    %43 = vector.load %arg14[%c0_33, %c0_34] : memref<3x512xf32, #tpu.memory_space<vmem>>, vector<3x512xf32>
    tpu.vector_store %arg14[%c0_33, %c0_34], %42 {strides = array<i32>} : memref<3x512xf32, #tpu.memory_space<vmem>>, vector<3x512xf32>,
    return
  }
  func.func @transform_0(%arg0: i32) -> (i32, i32) {
    %c0_i32 = arith.constant 0 : i32
    %c0_i32_0 = arith.constant 0 : i32
    return %arg0, %c0_i32 : i32, i32
  }
  func.func @transform_1(%arg0: i32) -> (i32, i32) {
    %c0_i32 = arith.constant 0 : i32
    %c0_i32_0 = arith.constant 0 : i32
    return %arg0, %c0_i32 : i32, i32
  }
  func.func @transform_2(%arg0: i32) -> (i32, i32) {
    %c0_i32 = arith.constant 0 : i32
    %c0_i32_0 = arith.constant 0 : i32
    return %arg0, %c0_i32 : i32, i32
  }
  func.func @transform_3(%arg0: i32) -> (i32, i32) {
    %c0_i32 = arith.constant 0 : i32
    %c0_i32_0 = arith.constant 0 : i32
    return %arg0, %c0_i32 : i32, i32
  }
  func.func @transform_4(%arg0: i32) -> (i32, i32) {
    %c0_i32 = arith.constant 0 : i32
    %c0_i32_0 = arith.constant 0 : i32
    %c0_i32_1 = arith.constant 0 : i32
    return %c0_i32, %c0_i32_0 : i32, i32
  }
  func.func @transform_5(%arg0: i32) -> (i32, i32) {
    %c0_i32 = arith.constant 0 : i32
    %c0_i32_0 = arith.constant 0 : i32
    %c0_i32_1 = arith.constant 0 : i32
    return %c0_i32, %c0_i32_0 : i32, i32
  }
  func.func @transform_6(%arg0: i32) -> (i32, i32) {
    %c0_i32 = arith.constant 0 : i32
    %c0_i32_0 = arith.constant 0 : i32
    %c0_i32_1 = arith.constant 0 : i32
    return %c0_i32, %c0_i32_0 : i32, i32
  }
  func.func @transform_7(%arg0: i32) -> (i32, i32) {
    %c0_i32 = arith.constant 0 : i32
    %c0_i32_0 = arith.constant 0 : i32
    %c0_i32_1 = arith.constant 0 : i32
    return %c0_i32, %c0_i32_0 : i32, i32
  }
  func.func @transform_8(%arg0: i32) -> (i32, i32) {
    %c0_i32 = arith.constant 0 : i32
    %c0_i32_0 = arith.constant 0 : i32
    %c0_i32_1 = arith.constant 0 : i32
    return %c0_i32, %c0_i32_0 : i32, i32
  }
  func.func @transform_9(%arg0: i32) -> (i32, i32) {
    %c0_i32 = arith.constant 0 : i32
    %c0_i32_0 = arith.constant 0 : i32
    %c0_i32_1 = arith.constant 0 : i32
    return %c0_i32, %c0_i32_0 : i32, i32
  }
  func.func @transform_10(%arg0: i32) -> (i32, i32) {
    %c0_i32 = arith.constant 0 : i32
    %c0_i32_0 = arith.constant 0 : i32
    %c0_i32_1 = arith.constant 0 : i32
    return %c0_i32, %c0_i32_0 : i32, i32
  }
  func.func @transform_11(%arg0: i32) -> (i32, i32) {
    %c0_i32 = arith.constant 0 : i32
    %c0_i32_0 = arith.constant 0 : i32
    %c0_i32_1 = arith.constant 0 : i32
    return %c0_i32, %c0_i32_0 : i32, i32
  }
  func.func @transform_12(%arg0: i32) -> (i32, i32) {
    %c0_i32 = arith.constant 0 : i32
    %c0_i32_0 = arith.constant 0 : i32
    %c0_i32_1 = arith.constant 0 : i32
    return %c0_i32, %c0_i32_0 : i32, i32
  }
  func.func @transform_13(%arg0: i32) -> (i32, i32) {
    %c0_i32 = arith.constant 0 : i32
    %c0_i32_0 = arith.constant 0 : i32
    return %c0_i32, %arg0 : i32, i32
  }
}

</mosaic_0001>

<llo_original>
// kernel: tpu_custom_call.1
$region0: #{tpu_custom_call.1}
  #allocation0 [shape = 'u32[]', space=smem, size = 0x4, offset = 0x4, fixed_abs, tag = 'smem constant byte address 0x4 - core index']
  #allocation1 [shape = 'u32[144,128]{1,0:T(1,128)}', space=vmem, size = 0x12000, scoped, tag = 'internal scratch']
  %s0 = inlined_call_operand.vmem [shape: f32[1024,3], index: 0, kind: input, shape index: {}]
  %s1 = inlined_call_operand.vmem [shape: f32[1024,3], index: 1, kind: input, shape index: {}]
  %s2 = inlined_call_operand.vmem [shape: f32[1024,3], index: 2, kind: input, shape index: {}]
  %s3 = inlined_call_operand.vmem [shape: f32[1024,32], index: 3, kind: input, shape index: {}]
  %s4 = inlined_call_operand.vmem [shape: bf16[3,64], index: 4, kind: input, shape index: {}]
  %s5 = inlined_call_operand.vmem [shape: bf16[3,64], index: 5, kind: input, shape index: {}]
  %s6 = inlined_call_operand.vmem [shape: bf16[3,64], index: 6, kind: input, shape index: {}]
  %s7 = inlined_call_operand.vmem [shape: bf16[32,64], index: 7, kind: input, shape index: {}]
  %s8 = inlined_call_operand.vmem [shape: f32[1,64], index: 8, kind: input, shape index: {}]
  %s9 = inlined_call_operand.vmem [shape: bf16[64,64], index: 9, kind: input, shape index: {}]
  %s10 = inlined_call_operand.vmem [shape: f32[1,64], index: 10, kind: input, shape index: {}]
  %s11 = inlined_call_operand.vmem [shape: bf16[3,64], index: 11, kind: input, shape index: {}]
  %s12 = inlined_call_operand.vmem [shape: f32[3,1], index: 12, kind: input, shape index: {}]
  %s13 = inlined_call_operand.hbm [shape: f32[3,1024], index: 13, kind: output, shape index: {}]
  %s14 = sld [smem:[#allocation0]]
  $region85: #{tpu_custom_call.1} parent=0
    _
  %s16 = ssub.s32 1, %s14
  %s17 = scalar_select 0, %s16, %s14
  $region1: #{tpu_custom_call.1} parent=0
    #allocation2 [shape = 'u8[16384]{0}', space=vmem, size = 0x4000, scoped, tag = 'output window, operand 0']
    #allocation3 [shape = 's32[2]{0}', space=sflag, size = 0x8, scoped, tag = 'scoped memory for tpu_custom_call.1']
    %18 = vsyncpa [#allocation3], 0
    %s19 = scalar_lea.sflag [#allocation3], 1
    %20 = vsyncpa %s19, 0
    loop: start=0, step=1, limit=4
    $region2: #{tpu_custom_call.1} parent=1 // loop_pre_header
      _
    $region3: #{tpu_custom_call.1} parent=1 // loop_header
      %s22 = sphi 0, %s26
      %p23 = scmp.ge.s32.totalorder %s22, 4
      %s32 = sphi 0, %s34
      %s35 = sphi 0, %s32
      %s36 = sphi 0, %s35
      %s52 = sphi 0, %s36
      %s58 = sphi 0, %s60
      %s61 = sphi 0, %s58
      %s62 = sphi 0, %s61
      %s78 = sphi 0, %s62
      %s84 = sphi 0, %s86
      %s87 = sphi 0, %s84
      %s88 = sphi 0, %s87
      %s104 = sphi 0, %s88
      %s110 = sphi 0, %s112
      %s113 = sphi 0, %s110
      %s114 = sphi 0, %s113
      %s130 = sphi 0, %s114
      %s134 = sphi 0, %s134
      %s136 = sphi 0, %s134
      %s137 = sphi 0, %s136
      %s151 = sphi 0, %s137
      %s155 = sphi 0, %s155
      %s157 = sphi 0, %s155
      %s158 = sphi 0, %s157
      %s172 = sphi 0, %s158
      %s176 = sphi 0, %s176
      %s178 = sphi 0, %s176
      %s179 = sphi 0, %s178
      %s193 = sphi 0, %s179
      %s197 = sphi 0, %s197
      %s199 = sphi 0, %s197
      %s200 = sphi 0, %s199
      %s214 = sphi 0, %s200
      %s218 = sphi 0, %s218
      %s220 = sphi 0, %s218
      %s221 = sphi 0, %s220
      %s235 = sphi 0, %s221
      %s239 = sphi 0, %s239
      %s241 = sphi 0, %s239
      %s242 = sphi 0, %s241
      %s256 = sphi 0, %s242
      %s260 = sphi 0, %s260
      %s262 = sphi 0, %s260
      %s263 = sphi 0, %s262
      %s277 = sphi 0, %s263
      %s281 = sphi 0, %s281
      %s283 = sphi 0, %s281
      %s284 = sphi 0, %s283
      %s298 = sphi 0, %s284
      %s302 = sphi 0, %s302
      %s304 = sphi 0, %s302
      %s305 = sphi 0, %s304
      %s319 = sphi 0, %s305
      %s325 = sphi 0, %s327
      %s328 = sphi 0, %s325
      %s329 = sphi 0, %s328
      %s345 = sphi 0, %s329
    $region4: #{tpu_custom_call.1} parent=1 // loop_header_branch
      %25 = sbr.rel (%p23) target = $region8
    $region5: #{tpu_custom_call.1} parent=1 // loop_body
      %s27 = ssub.s32 %s22, 1
      %s28 = ssub.s32 %s22, 2
      %s29 = sadd.s32 %s22, 1
      %s30 = ssub.s32 %s22, %s29
      %p31 = scmp.eq.s32.totalorder %s30, 0
      %s33 = sadd.s32 %s32, 1
      %s34 = scalar_select %p31, %s32, %s33
      %p37 = pneg %p31
      %p38 = scmp.eq.s32.totalorder %s22, 1
      %p39 = por %p37, %p38
      %p40 = scmp.ne.s32.totalorder %s32, %s35
      %p41 = scmp.eq.s32.totalorder %s22, 0
      %p42 = por %p40, %p41
      %p43 = scmp.ne.s32.totalorder %s32, %s35
      %p44 = scmp.eq.s32.totalorder %s27, 1
      %p45 = por %p43, %p44
      %p46 = scmp.ne.s32.totalorder %s35, %s36
      %p47 = scmp.eq.s32.totalorder %s27, 0
      %p48 = por %p46, %p47
      %p49 = scmp.ne.s32.totalorder %s35, %s36
      %p50 = scmp.eq.s32.totalorder %s28, 1
      %p51 = por %p49, %p50
      %p53 = scmp.ne.s32.totalorder %s36, %s52
      %p54 = scmp.eq.s32.totalorder %s28, 0
      %p55 = por %p53, %p54
      %s56 = ssub.s32 %s22, %s29
      %p57 = scmp.eq.s32.totalorder %s56, 0
      %s59 = sadd.s32 %s58, 1
      %s60 = scalar_select %p57, %s58, %s59
      %p63 = pneg %p57
      %p64 = scmp.eq.s32.totalorder %s22, 1
      %p65 = por %p63, %p64
      %p66 = scmp.ne.s32.totalorder %s58, %s61
      %p67 = scmp.eq.s32.totalorder %s22, 0
      %p68 = por %p66, %p67
      %p69 = scmp.ne.s32.totalorder %s58, %s61
      %p70 = scmp.eq.s32.totalorder %s27, 1
      %p71 = por %p69, %p70
      %p72 = scmp.ne.s32.totalorder %s61, %s62
      %p73 = scmp.eq.s32.totalorder %s27, 0
      %p74 = por %p72, %p73
      %p75 = scmp.ne.s32.totalorder %s61, %s62
      %p76 = scmp.eq.s32.totalorder %s28, 1
      %p77 = por %p75, %p76
      %p79 = scmp.ne.s32.totalorder %s62, %s78
      %p80 = scmp.eq.s32.totalorder %s28, 0
      %p81 = por %p79, %p80
      %s82 = ssub.s32 %s22, %s29
      %p83 = scmp.eq.s32.totalorder %s82, 0
      %s85 = sadd.s32 %s84, 1
      %s86 = scalar_select %p83, %s84, %s85
      %p89 = pneg %p83
      %p90 = scmp.eq.s32.totalorder %s22, 1
      %p91 = por %p89, %p90
      %p92 = scmp.ne.s32.totalorder %s84, %s87
      %p93 = scmp.eq.s32.totalorder %s22, 0
      %p94 = por %p92, %p93
      %p95 = scmp.ne.s32.totalorder %s84, %s87
      %p96 = scmp.eq.s32.totalorder %s27, 1
      %p97 = por %p95, %p96
      %p98 = scmp.ne.s32.totalorder %s87, %s88
      %p99 = scmp.eq.s32.totalorder %s27, 0
      %p100 = por %p98, %p99
      %p101 = scmp.ne.s32.totalorder %s87, %s88
      %p102 = scmp.eq.s32.totalorder %s28, 1
      %p103 = por %p101, %p102
      %p105 = scmp.ne.s32.totalorder %s88, %s104
      %p106 = scmp.eq.s32.totalorder %s28, 0
      %p107 = por %p105, %p106
      %s108 = ssub.s32 %s22, %s29
      %p109 = scmp.eq.s32.totalorder %s108, 0
      %s111 = sadd.s32 %s110, 1
      %s112 = scalar_select %p109, %s110, %s111
      %p115 = pneg %p109
      %p116 = scmp.eq.s32.totalorder %s22, 1
      %p117 = por %p115, %p116
      %p118 = scmp.ne.s32.totalorder %s110, %s113
      %p119 = scmp.eq.s32.totalorder %s22, 0
      %p120 = por %p118, %p119
      %p121 = scmp.ne.s32.totalorder %s110, %s113
      %p122 = scmp.eq.s32.totalorder %s27, 1
      %p123 = por %p121, %p122
      %p124 = scmp.ne.s32.totalorder %s113, %s114
      %p125 = scmp.eq.s32.totalorder %s27, 0
      %p126 = por %p124, %p125
      %p127 = scmp.ne.s32.totalorder %s113, %s114
      %p128 = scmp.eq.s32.totalorder %s28, 1
      %p129 = por %p127, %p128
      %p131 = scmp.ne.s32.totalorder %s114, %s130
      %p132 = scmp.eq.s32.totalorder %s28, 0
      %p133 = por %p131, %p132
      %s135 = sadd.s32 %s134, 1
      %p138 = scmp.eq.s32.totalorder %s22, 1
      %p139 = scmp.ne.s32.totalorder %s134, %s136
      %p140 = scmp.eq.s32.totalorder %s22, 0
      %p141 = por %p139, %p140
      %p142 = scmp.ne.s32.totalorder %s134, %s136
      %p143 = scmp.eq.s32.totalorder %s27, 1
      %p144 = por %p142, %p143
      %p145 = scmp.ne.s32.totalorder %s136, %s137
      %p146 = scmp.eq.s32.totalorder %s27, 0
      %p147 = por %p145, %p146
      %p148 = scmp.ne.s32.totalorder %s136, %s137
      %p149 = scmp.eq.s32.totalorder %s28, 1
      %p150 = por %p148, %p149
      %p152 = scmp.ne.s32.totalorder %s137, %s151
      %p153 = scmp.eq.s32.totalorder %s28, 0
      %p154 = por %p152, %p153
      %s156 = sadd.s32 %s155, 1
      %p159 = scmp.eq.s32.totalorder %s22, 1
      %p160 = scmp.ne.s32.totalorder %s155, %s157
      %p161 = scmp.eq.s32.totalorder %s22, 0
      %p162 = por %p160, %p161
      %p163 = scmp.ne.s32.totalorder %s155, %s157
      %p164 = scmp.eq.s32.totalorder %s27, 1
      %p165 = por %p163, %p164
      %p166 = scmp.ne.s32.totalorder %s157, %s158
      %p167 = scmp.eq.s32.totalorder %s27, 0
      %p168 = por %p166, %p167
      %p169 = scmp.ne.s32.totalorder %s157, %s158
      %p170 = scmp.eq.s32.totalorder %s28, 1
      %p171 = por %p169, %p170
      %p173 = scmp.ne.s32.totalorder %s158, %s172
      %p174 = scmp.eq.s32.totalorder %s28, 0
      %p175 = por %p173, %p174
      %s177 = sadd.s32 %s176, 1
      %p180 = scmp.eq.s32.totalorder %s22, 1
      %p181 = scmp.ne.s32.totalorder %s176, %s178
      %p182 = scmp.eq.s32.totalorder %s22, 0
      %p183 = por %p181, %p182
      %p184 = scmp.ne.s32.totalorder %s176, %s178
      %p185 = scmp.eq.s32.totalorder %s27, 1
      %p186 = por %p184, %p185
      %p187 = scmp.ne.s32.totalorder %s178, %s179
      %p188 = scmp.eq.s32.totalorder %s27, 0
      %p189 = por %p187, %p188
      %p190 = scmp.ne.s32.totalorder %s178, %s179
      %p191 = scmp.eq.s32.totalorder %s28, 1
      %p192 = por %p190, %p191
      %p194 = scmp.ne.s32.totalorder %s179, %s193
      %p195 = scmp.eq.s32.totalorder %s28, 0
      %p196 = por %p194, %p195
      %s198 = sadd.s32 %s197, 1
      %p201 = scmp.eq.s32.totalorder %s22, 1
      %p202 = scmp.ne.s32.totalorder %s197, %s199
      %p203 = scmp.eq.s32.totalorder %s22, 0
      %p204 = por %p202, %p203
      %p205 = scmp.ne.s32.totalorder %s197, %s199
      %p206 = scmp.eq.s32.totalorder %s27, 1
      %p207 = por %p205, %p206
      %p208 = scmp.ne.s32.totalorder %s199, %s200
      %p209 = scmp.eq.s32.totalorder %s27, 0
      %p210 = por %p208, %p209
      %p211 = scmp.ne.s32.totalorder %s199, %s200
      %p212 = scmp.eq.s32.totalorder %s28, 1
      %p213 = por %p211, %p212
      %p215 = scmp.ne.s32.totalorder %s200, %s214
      %p216 = scmp.eq.s32.totalorder %s28, 0
      %p217 = por %p215, %p216
      %s219 = sadd.s32 %s218, 1
      %p222 = scmp.eq.s32.totalorder %s22, 1
      %p223 = scmp.ne.s32.totalorder %s218, %s220
      %p224 = scmp.eq.s32.totalorder %s22, 0
      %p225 = por %p223, %p224
      %p226 = scmp.ne.s32.totalorder %s218, %s220
      %p227 = scmp.eq.s32.totalorder %s27, 1
      %p228 = por %p226, %p227
      %p229 = scmp.ne.s32.totalorder %s220, %s221
      %p230 = scmp.eq.s32.totalorder %s27, 0
      %p231 = por %p229, %p230
      %p232 = scmp.ne.s32.totalorder %s220, %s221
      %p233 = scmp.eq.s32.totalorder %s28, 1
      %p234 = por %p232, %p233
      %p236 = scmp.ne.s32.totalorder %s221, %s235
      %p237 = scmp.eq.s32.totalorder %s28, 0
      %p238 = por %p236, %p237
      %s240 = sadd.s32 %s239, 1
      %p243 = scmp.eq.s32.totalorder %s22, 1
      %p244 = scmp.ne.s32.totalorder %s239, %s241
      %p245 = scmp.eq.s32.totalorder %s22, 0
      %p246 = por %p244, %p245
      %p247 = scmp.ne.s32.totalorder %s239, %s241
      %p248 = scmp.eq.s32.totalorder %s27, 1
      %p249 = por %p247, %p248
      %p250 = scmp.ne.s32.totalorder %s241, %s242
      %p251 = scmp.eq.s32.totalorder %s27, 0
      %p252 = por %p250, %p251
      %p253 = scmp.ne.s32.totalorder %s241, %s242
      %p254 = scmp.eq.s32.totalorder %s28, 1
      %p255 = por %p253, %p254
      %p257 = scmp.ne.s32.totalorder %s242, %s256
      %p258 = scmp.eq.s32.totalorder %s28, 0
      %p259 = por %p257, %p258
      %s261 = sadd.s32 %s260, 1
      %p264 = scmp.eq.s32.totalorder %s22, 1
      %p265 = scmp.ne.s32.totalorder %s260, %s262
      %p266 = scmp.eq.s32.totalorder %s22, 0
      %p267 = por %p265, %p266
      %p268 = scmp.ne.s32.totalorder %s260, %s262
      %p269 = scmp.eq.s32.totalorder %s27, 1
      %p270 = por %p268, %p269
      %p271 = scmp.ne.s32.totalorder %s262, %s263
      %p272 = scmp.eq.s32.totalorder %s27, 0
      %p273 = por %p271, %p272
      %p274 = scmp.ne.s32.totalorder %s262, %s263
      %p275 = scmp.eq.s32.totalorder %s28, 1
      %p276 = por %p274, %p275
      %p278 = scmp.ne.s32.totalorder %s263, %s277
      %p279 = scmp.eq.s32.totalorder %s28, 0
      %p280 = por %p278, %p279
      %s282 = sadd.s32 %s281, 1
      %p285 = scmp.eq.s32.totalorder %s22, 1
      %p286 = scmp.ne.s32.totalorder %s281, %s283
      %p287 = scmp.eq.s32.totalorder %s22, 0
      %p288 = por %p286, %p287
      %p289 = scmp.ne.s32.totalorder %s281, %s283
      %p290 = scmp.eq.s32.totalorder %s27, 1
      %p291 = por %p289, %p290
      %p292 = scmp.ne.s32.totalorder %s283, %s284
      %p293 = scmp.eq.s32.totalorder %s27, 0
      %p294 = por %p292, %p293
      %p295 = scmp.ne.s32.totalorder %s283, %s284
      %p296 = scmp.eq.s32.totalorder %s28, 1
      %p297 = por %p295, %p296
      %p299 = scmp.ne.s32.totalorder %s284, %s298
      %p300 = scmp.eq.s32.totalorder %s28, 0
      %p301 = por %p299, %p300
      %s303 = sadd.s32 %s302, 1
      %p306 = scmp.eq.s32.totalorder %s22, 1
      %p307 = scmp.ne.s32.totalorder %s302, %s304
      %p308 = scmp.eq.s32.totalorder %s22, 0
      %p309 = por %p307, %p308
      %p310 = scmp.ne.s32.totalorder %s302, %s304
      %p311 = scmp.eq.s32.totalorder %s27, 1
      %p312 = por %p310, %p311
      %p313 = scmp.ne.s32.totalorder %s304, %s305
      %p314 = scmp.eq.s32.totalorder %s27, 0
      %p315 = por %p313, %p314
      %p316 = scmp.ne.s32.totalorder %s304, %s305
      %p317 = scmp.eq.s32.totalorder %s28, 1
      %p318 = por %p316, %p317
      %p320 = scmp.ne.s32.totalorder %s305, %s319
      %p321 = scmp.eq.s32.totalorder %s28, 0
      %p322 = por %p320, %p321
      %s323 = ssub.s32 %s22, %s29
      %p324 = scmp.eq.s32.totalorder %s323, 0
      %s326 = sadd.s32 %s325, 1
      %s327 = scalar_select %p324, %s325, %s326
      %p330 = pneg %p324
      %p331 = scmp.eq.s32.totalorder %s22, 1
      %p332 = por %p330, %p331
      %p333 = scmp.ne.s32.totalorder %s325, %s328
      %p334 = scmp.eq.s32.totalorder %s22, 0
      %p335 = por %p333, %p334
      %p336 = scmp.ne.s32.totalorder %s325, %s328
      %p337 = scmp.eq.s32.totalorder %s27, 1
      %p338 = por %p336, %p337
      %p339 = scmp.ne.s32.totalorder %s328, %s329
      %p340 = scmp.eq.s32.totalorder %s27, 0
      %p341 = por %p339, %p340
      %p342 = scmp.ne.s32.totalorder %s328, %s329
      %p343 = scmp.eq.s32.totalorder %s28, 1
      %p344 = por %p342, %p343
      %p346 = scmp.ne.s32.totalorder %s329, %s345
      %p347 = scmp.eq.s32.totalorder %s28, 0
      %p348 = por %p346, %p347
      %p349 = scmp.le.s32.totalorder 1, %s22
      %p350 = scmp.lt.s32.totalorder %s22, 3
      %p351 = pnand %p349, %p350
      %p352 = pneg %p351
      // Predicated region
      $region9: #{tpu_custom_call.1} parent=5 // pred_check
        _
      $region10: #{tpu_custom_call.1} parent=5 // pred_check_branch
        %354 = sbr.rel (%p351) target = $region12
      $region11: #{tpu_custom_call.1} parent=5 // pred_region
        %s355 = ssub.s32 %s22, 1
        // Predicated region
        $region13: #{tpu_custom_call.1} parent=11 // pred_check
          %p356 = pneg %p147
        $region14: #{tpu_custom_call.1} parent=11 // pred_check_branch
          %358 = sbr.rel (%p356) target = $region16
        $region15: #{tpu_custom_call.1} parent=11 // pred_region
          _
        $region16: #{tpu_custom_call.1} parent=11 // pred_fallthru
          _
        // Predicated region
        $region17: #{tpu_custom_call.1} parent=11 // pred_check
          %p359 = pneg %p168
        $region18: #{tpu_custom_call.1} parent=11 // pred_check_branch
          %361 = sbr.rel (%p359) target = $region20
        $region19: #{tpu_custom_call.1} parent=11 // pred_region
          _
        $region20: #{tpu_custom_call.1} parent=11 // pred_fallthru
          _
        // Predicated region
        $region21: #{tpu_custom_call.1} parent=11 // pred_check
          %p362 = pneg %p189
        $region22: #{tpu_custom_call.1} parent=11 // pred_check_branch
          %364 = sbr.rel (%p362) target = $region24
        $region23: #{tpu_custom_call.1} parent=11 // pred_region
          _
        $region24: #{tpu_custom_call.1} parent=11 // pred_fallthru
          _
        // Predicated region
        $region25: #{tpu_custom_call.1} parent=11 // pred_check
          %p365 = pneg %p210
        $region26: #{tpu_custom_call.1} parent=11 // pred_check_branch
          %367 = sbr.rel (%p365) target = $region28
        $region27: #{tpu_custom_call.1} parent=11 // pred_region
          _
        $region28: #{tpu_custom_call.1} parent=11 // pred_fallthru
          _
        // Predicated region
        $region29: #{tpu_custom_call.1} parent=11 // pred_check
          %p368 = pneg %p231
        $region30: #{tpu_custom_call.1} parent=11 // pred_check_branch
          %370 = sbr.rel (%p368) target = $region32
        $region31: #{tpu_custom_call.1} parent=11 // pred_region
          _
        $region32: #{tpu_custom_call.1} parent=11 // pred_fallthru
          _
        // Predicated region
        $region33: #{tpu_custom_call.1} parent=11 // pred_check
          %p371 = pneg %p252
        $region34: #{tpu_custom_call.1} parent=11 // pred_check_branch
          %373 = sbr.rel (%p371) target = $region36
        $region35: #{tpu_custom_call.1} parent=11 // pred_region
          _
        $region36: #{tpu_custom_call.1} parent=11 // pred_fallthru
          _
        // Predicated region
        $region37: #{tpu_custom_call.1} parent=11 // pred_check
          %p374 = pneg %p273
        $region38: #{tpu_custom_call.1} parent=11 // pred_check_branch
          %376 = sbr.rel (%p374) target = $region40
        $region39: #{tpu_custom_call.1} parent=11 // pred_region
          _
        $region40: #{tpu_custom_call.1} parent=11 // pred_fallthru
          _
        // Predicated region
        $region41: #{tpu_custom_call.1} parent=11 // pred_check
          %p377 = pneg %p294
        $region42: #{tpu_custom_call.1} parent=11 // pred_check_branch
          %379 = sbr.rel (%p377) target = $region44
        $region43: #{tpu_custom_call.1} parent=11 // pred_region
          _
        $region44: #{tpu_custom_call.1} parent=11 // pred_fallthru
          _
        // Predicated region
        $region45: #{tpu_custom_call.1} parent=11 // pred_check
          %p380 = pneg %p315
        $region46: #{tpu_custom_call.1} parent=11 // pred_check_branch
          %382 = sbr.rel (%p380) target = $region48
        $region47: #{tpu_custom_call.1} parent=11 // pred_region
          _
        $region48: #{tpu_custom_call.1} parent=11 // pred_fallthru
          _
      $region12: #{tpu_custom_call.1} parent=5 // pred_fallthru
        _
      %p383 = scmp.lt.s32.totalorder %s22, 2
      // Predicated region
      $region49: #{tpu_custom_call.1} parent=5 // pred_check
        %p384 = pneg %p383
      $region50: #{tpu_custom_call.1} parent=5 // pred_check_branch
        %386 = sbr.rel (%p384) target = $region52
      $region51: #{tpu_custom_call.1} parent=5 // pred_region
        // Predicated region
        $region53: #{tpu_custom_call.1} parent=51 // pred_check
          %p387 = pneg %p42
        $region54: #{tpu_custom_call.1} parent=51 // pred_check_branch
          %389 = sbr.rel (%p387) target = $region56
        $region55: #{tpu_custom_call.1} parent=51 // pred_region
          %s390 = smul.u32 64, %s22
          %p391 = scmp.lt.s32.totalorder %s390, 127
          %s392 = scalar_select %p391, %s390, 127
          %s393 = smul.addr %s392, 8
          %s394 = scalar_lea.vmem %s0, %s393
          %s395 = smul.u32 64, %s22
        $region56: #{tpu_custom_call.1} parent=51 // pred_fallthru
          _
        // Predicated region
        $region57: #{tpu_custom_call.1} parent=51 // pred_check
          %p396 = pneg %p68
        $region58: #{tpu_custom_call.1} parent=51 // pred_check_branch
          %398 = sbr.rel (%p396) target = $region60
        $region59: #{tpu_custom_call.1} parent=51 // pred_region
          %s399 = smul.u32 64, %s22
          %p400 = scmp.lt.s32.totalorder %s399, 127
          %s401 = scalar_select %p400, %s399, 127
          %s402 = smul.addr %s401, 8
          %s403 = scalar_lea.vmem %s1, %s402
          %s404 = smul.u32 64, %s22
        $region60: #{tpu_custom_call.1} parent=51 // pred_fallthru
          _
        // Predicated region
        $region61: #{tpu_custom_call.1} parent=51 // pred_check
          %p405 = pneg %p94
        $region62: #{tpu_custom_call.1} parent=51 // pred_check_branch
          %407 = sbr.rel (%p405) target = $region64
        $region63: #{tpu_custom_call.1} parent=51 // pred_region
          %s408 = smul.u32 64, %s22
          %p409 = scmp.lt.s32.totalorder %s408, 127
          %s410 = scalar_select %p409, %s408, 127
          %s411 = smul.addr %s410, 8
          %s412 = scalar_lea.vmem %s2, %s411
          %s413 = smul.u32 64, %s22
        $region64: #{tpu_custom_call.1} parent=51 // pred_fallthru
          _
        // Predicated region
        $region65: #{tpu_custom_call.1} parent=51 // pred_check
          %p414 = pneg %p120
        $region66: #{tpu_custom_call.1} parent=51 // pred_check_branch
          %416 = sbr.rel (%p414) target = $region68
        $region67: #{tpu_custom_call.1} parent=51 // pred_region
          %s417 = smul.u32 64, %s22
          %p418 = scmp.lt.s32.totalorder %s417, 127
          %s419 = scalar_select %p418, %s417, 127
          %s420 = smul.addr %s419, 8
          %s421 = scalar_lea.vmem %s3, %s420
          %s422 = smul.u32 64, %s22
        $region68: #{tpu_custom_call.1} parent=51 // pred_fallthru
          _
      $region52: #{tpu_custom_call.1} parent=5 // pred_fallthru
        _
      %p423 = scmp.le.s32.totalorder 1, %s22
      %p424 = scmp.lt.s32.totalorder %s22, 3
      %p425 = pnand %p423, %p424
      %p426 = pneg %p425
      // Predicated region
      $region69: #{tpu_custom_call.1} parent=5 // pred_check
        _
      $region70: #{tpu_custom_call.1} parent=5 // pred_check_branch
        %428 = sbr.rel (%p425) target = $region72
      $region71: #{tpu_custom_call.1} parent=5 // pred_region
        %s429 = ssub.s32 %s22, 1
        %s430 = smul.u32 64, %s27
        %p431 = scmp.lt.s32.totalorder %s430, 127
        %s432 = scalar_select %p431, %s430, 127
        %s433 = smul.addr %s432, 8
        %s434 = scalar_lea.vmem %s0, %s433
        %p435 = pneg %p48
        %p436 = pneg %p45
        %s437 = smul.u32 64, %s27
        %p438 = scmp.lt.s32.totalorder %s437, 127
        %s439 = scalar_select %p438, %s437, 127
        %s440 = smul.addr %s439, 8
        %s441 = scalar_lea.vmem %s1, %s440
        %p442 = pneg %p74
        %p443 = pneg %p71
        %s444 = smul.u32 64, %s27
        %p445 = scmp.lt.s32.totalorder %s444, 127
        %s446 = scalar_select %p445, %s444, 127
        %s447 = smul.addr %s446, 8
        %s448 = scalar_lea.vmem %s2, %s447
        %p449 = pneg %p100
        %p450 = pneg %p97
        %s451 = smul.u32 64, %s27
        %p452 = scmp.lt.s32.totalorder %s451, 127
        %s453 = scalar_select %p452, %s451, 127
        %s454 = smul.addr %s453, 8
        %s455 = scalar_lea.vmem %s3, %s454
        %p456 = pneg %p126
        %p457 = pneg %p123
        %p458 = pneg %p147
        %p459 = pneg %p144
        %p460 = pneg %p168
        %p461 = pneg %p165
        %p462 = pneg %p189
        %p463 = pneg %p186
        %p464 = pneg %p210
        %p465 = pneg %p207
        %p466 = pneg %p231
        %p467 = pneg %p228
        %p468 = pneg %p252
        %p469 = pneg %p249
        %p470 = pneg %p273
        %p471 = pneg %p270
        %p472 = pneg %p294
        %p473 = pneg %p291
        %p474 = pneg %p315
        %p475 = pneg %p312
        %p476 = pneg %p341
        %p477 = pneg %p338
        %s478 = sand.u32 %s328, 1
        %s479 = scalar_lea.sflag [#allocation3], %s478
        %s480 = sand.u32 %s328, 1
        %s481 = smul.addr %s480, 16
        %s482 = scalar_lea.vmem [#allocation2], %s481
        %s483 = smul.u32 64, %s27
        %p484 = scmp.lt.s32.totalorder %s483, 127
        %s485 = scalar_select %p484, %s483, 127
        %s486 = smul.addr %s485, 8
        %s487 = scalar_lea.vmem %s0, %s486
        %s488 = smul.u32 64, %s27
        %s489 = smul.u32 64, %s27
        %p490 = scmp.lt.s32.totalorder %s489, 127
        %s491 = scalar_select %p490, %s489, 127
        %s492 = smul.addr %s491, 8
        %s493 = scalar_lea.vmem %s1, %s492
        %s494 = smul.u32 64, %s27
        %s495 = smul.u32 64, %s27
        %p496 = scmp.lt.s32.totalorder %s495, 127
        %s497 = scalar_select %p496, %s495, 127
        %s498 = smul.addr %s497, 8
        %s499 = scalar_lea.vmem %s2, %s498
        %s500 = smul.u32 64, %s27
        %s501 = smul.u32 64, %s27
        %p502 = scmp.lt.s32.totalorder %s501, 127
        %s503 = scalar_select %p502, %s501, 127
        %s504 = smul.addr %s503, 8
        %s505 = scalar_lea.vmem %s3, %s504
        %s506 = smul.u32 64, %s27
        %s507 = smul.u32 4, %s27
        %v509 = vld [vmem:[%s8] sm:$0x1]
        %v510 = vld [vmem:[%s487] sm:$0xff]
        %v511 = vld [vmem:[%s487 + $0x8] sm:$0xff]
        %v512 = vld [vmem:[%s487 + $0x10] sm:$0xff]
        %v513 = vld [vmem:[%s487 + $0x18] sm:$0xff]
        %v514 = vld [vmem:[%s487 + $0x20] sm:$0xff]
        %v515 = vld [vmem:[%s487 + $0x28] sm:$0xff]
        %v516 = vld [vmem:[%s487 + $0x30] sm:$0xff]
        %v517 = vld [vmem:[%s487 + $0x38] sm:$0xff]
        %v518 = vld [vmem:[%s487 + $0x40] sm:$0xff]
        %v519 = vld [vmem:[%s487 + $0x48] sm:$0xff]
        %v520 = vld [vmem:[%s487 + $0x50] sm:$0xff]
        %v521 = vld [vmem:[%s487 + $0x58] sm:$0xff]
        %v522 = vld [vmem:[%s487 + $0x60] sm:$0xff]
        %v523 = vld [vmem:[%s487 + $0x68] sm:$0xff]
        %v524 = vld [vmem:[%s487 + $0x70] sm:$0xff]
        %v525 = vld [vmem:[%s487 + $0x78] sm:$0xff]
        %v526 = vld [vmem:[%s487 + $0x80] sm:$0xff]
        %v527 = vld [vmem:[%s487 + $0x88] sm:$0xff]
        %v528 = vld [vmem:[%s487 + $0x90] sm:$0xff]
        %v529 = vld [vmem:[%s487 + $0x98] sm:$0xff]
        %v530 = vld [vmem:[%s487 + $0xa0] sm:$0xff]
        %v531 = vld [vmem:[%s487 + $0xa8] sm:$0xff]
        %v532 = vld [vmem:[%s487 + $0xb0] sm:$0xff]
        %v533 = vld [vmem:[%s487 + $0xb8] sm:$0xff]
        %v534 = vld [vmem:[%s487 + $0xc0] sm:$0xff]
        %v535 = vld [vmem:[%s487 + $0xc8] sm:$0xff]
        %v536 = vld [vmem:[%s487 + $0xd0] sm:$0xff]
        %v537 = vld [vmem:[%s487 + $0xd8] sm:$0xff]
        %v538 = vld [vmem:[%s487 + $0xe0] sm:$0xff]
        %v539 = vld [vmem:[%s487 + $0xe8] sm:$0xff]
        %v540 = vld [vmem:[%s487 + $0xf0] sm:$0xff]
        %v541 = vld [vmem:[%s487 + $0xf8] sm:$0xff]
        %v542 = vld [vmem:[%s487 + $0x100] sm:$0xff]
        %v543 = vld [vmem:[%s487 + $0x108] sm:$0xff]
        %v544 = vld [vmem:[%s487 + $0x110] sm:$0xff]
        %v545 = vld [vmem:[%s487 + $0x118] sm:$0xff]
        %v546 = vld [vmem:[%s487 + $0x120] sm:$0xff]
        %v547 = vld [vmem:[%s487 + $0x128] sm:$0xff]
        %v548 = vld [vmem:[%s487 + $0x130] sm:$0xff]
        %v549 = vld [vmem:[%s487 + $0x138] sm:$0xff]
        %v550 = vld [vmem:[%s487 + $0x140] sm:$0xff]
        %v551 = vld [vmem:[%s487 + $0x148] sm:$0xff]
        %v552 = vld [vmem:[%s487 + $0x150] sm:$0xff]
        %v553 = vld [vmem:[%s487 + $0x158] sm:$0xff]
        %v554 = vld [vmem:[%s487 + $0x160] sm:$0xff]
        %v555 = vld [vmem:[%s487 + $0x168] sm:$0xff]
        %v556 = vld [vmem:[%s487 + $0x170] sm:$0xff]
        %v557 = vld [vmem:[%s487 + $0x178] sm:$0xff]
        %v558 = vld [vmem:[%s487 + $0x180] sm:$0xff]
        %v559 = vld [vmem:[%s487 + $0x188] sm:$0xff]
        %v560 = vld [vmem:[%s487 + $0x190] sm:$0xff]
        %v561 = vld [vmem:[%s487 + $0x198] sm:$0xff]
        %v562 = vld [vmem:[%s487 + $0x1a0] sm:$0xff]
        %v563 = vld [vmem:[%s487 + $0x1a8] sm:$0xff]
        %v564 = vld [vmem:[%s487 + $0x1b0] sm:$0xff]
        %v565 = vld [vmem:[%s487 + $0x1b8] sm:$0xff]
        %v566 = vld [vmem:[%s487 + $0x1c0] sm:$0xff]
        %v567 = vld [vmem:[%s487 + $0x1c8] sm:$0xff]
        %v568 = vld [vmem:[%s487 + $0x1d0] sm:$0xff]
        %v569 = vld [vmem:[%s487 + $0x1d8] sm:$0xff]
        %v570 = vld [vmem:[%s487 + $0x1e0] sm:$0xff]
        %v571 = vld [vmem:[%s487 + $0x1e8] sm:$0xff]
        %v572 = vld [vmem:[%s487 + $0x1f0] sm:$0xff]
        %v573 = vld [vmem:[%s487 + $0x1f8] sm:$0xff]
        %v574 = vpack.c.bf16 %v511, %v510
        %v575 = vpack.c.bf16 %v513, %v512
        %v576 = vpack.c.bf16 %v515, %v514
        %v577 = vpack.c.bf16 %v517, %v516
        %v578 = vpack.c.bf16 %v519, %v518
        %v579 = vpack.c.bf16 %v521, %v520
        %v580 = vpack.c.bf16 %v523, %v522
        %v581 = vpack.c.bf16 %v525, %v524
        %v582 = vpack.c.bf16 %v527, %v526
        %v583 = vpack.c.bf16 %v529, %v528
        %v584 = vpack.c.bf16 %v531, %v530
        %v585 = vpack.c.bf16 %v533, %v532
        %v586 = vpack.c.bf16 %v535, %v534
        %v587 = vpack.c.bf16 %v537, %v536
        %v588 = vpack.c.bf16 %v539, %v538
        %v589 = vpack.c.bf16 %v541, %v540
        %v590 = vpack.c.bf16 %v543, %v542
        %v591 = vpack.c.bf16 %v545, %v544
        %v592 = vpack.c.bf16 %v547, %v546
        %v593 = vpack.c.bf16 %v549, %v548
        %v594 = vpack.c.bf16 %v551, %v550
        %v595 = vpack.c.bf16 %v553, %v552
        %v596 = vpack.c.bf16 %v555, %v554
        %v597 = vpack.c.bf16 %v557, %v556
        %v598 = vpack.c.bf16 %v559, %v558
        %v599 = vpack.c.bf16 %v561, %v560
        %v600 = vpack.c.bf16 %v563, %v562
        %v601 = vpack.c.bf16 %v565, %v564
        %v602 = vpack.c.bf16 %v567, %v566
        %v603 = vpack.c.bf16 %v569, %v568
        %v604 = vpack.c.bf16 %v571, %v570
        %v605 = vpack.c.bf16 %v573, %v572
        %v606 = vld [vmem:[%s4] sm:$0x3]
        %vm607 = vcmask 23552
        %v609 = vsel %vm607, %v574, 0
        %v612 = vsel %vm607, %v575, 0
        %v615 = vsel %vm607, %v576, 0
        %v618 = vsel %vm607, %v577, 0
        %v621 = vsel %vm607, %v578, 0
        %v624 = vsel %vm607, %v579, 0
        %v627 = vsel %vm607, %v580, 0
        %v630 = vsel %vm607, %v581, 0
        %v633 = vsel %vm607, %v582, 0
        %v636 = vsel %vm607, %v583, 0
        %v639 = vsel %vm607, %v584, 0
        %v642 = vsel %vm607, %v585, 0
        %v645 = vsel %vm607, %v586, 0
        %v648 = vsel %vm607, %v587, 0
        %v651 = vsel %vm607, %v588, 0
        %v654 = vsel %vm607, %v589, 0
        %v657 = vsel %vm607, %v590, 0
        %v660 = vsel %vm607, %v591, 0
        %v663 = vsel %vm607, %v592, 0
        %v666 = vsel %vm607, %v593, 0
        %v669 = vsel %vm607, %v594, 0
        %v672 = vsel %vm607, %v595, 0
        %v675 = vsel %vm607, %v596, 0
        %v678 = vsel %vm607, %v597, 0
        %v681 = vsel %vm607, %v598, 0
        %v684 = vsel %vm607, %v599, 0
        %v687 = vsel %vm607, %v600, 0
        %v690 = vsel %vm607, %v601, 0
        %v693 = vsel %vm607, %v602, 0
        %v696 = vsel %vm607, %v603, 0
        %v699 = vsel %vm607, %v604, 0
        %v702 = vsel %vm607, %v605, 0
        %vm704 = vcmask 1040384
        %vm705 = vcmask 1041408
        %v706 = vsel %vm704, 4294967295, 65535
        %v707 = vsel %vm705, %v706, 0
        %v709 = vand.u32 %v606, %v707
        %711 = vmatprep.subr.bf16.mxu0 0
        %712 = vmatpush1.bf16.msra.mxu0 0
        %713 = vmatprep.subr.bf16.mxu0 0
        %714 = vmatpush1.bf16.msra.mxu0 0
        %715 = vmatprep.subr.bf16.mxu0 0
        %716 = vmatpush1.bf16.msra.mxu0 0
        %717 = vmatprep.subr.bf16.mxu0 0
        %718 = vmatpush1.bf16.msra.mxu0 0
        %719 = vmatprep.subr.bf16.mxu0 0
        %720 = vmatpush1.bf16.msra.mxu0 0
        %721 = vmatprep.subr.bf16.mxu0 0
        %722 = vmatpush1.bf16.msra.mxu0 0
        %723 = vmatprep.subr.bf16.mxu0 0
        %724 = vmatpush1.bf16.msra.mxu0 0
        %725 = vmatprep.subr.bf16.mxu0 0
        %726 = vmatpush1.bf16.msra.mxu0 %v709
        %727 = vmatprep.subr.bf16.mxu0 0
        %728 = vmatpush2.bf16.msra.mxu0 0
        %729 = vmatprep.subr.bf16.mxu0 0
        %730 = vmatpush2.bf16.msra.mxu0 0
        %731 = vmatprep.subr.bf16.mxu0 0
        %732 = vmatpush2.bf16.msra.mxu0 0
        %733 = vmatprep.subr.bf16.mxu0 0
        %734 = vmatpush2.bf16.msra.mxu0 0
        %735 = vmatprep.subr.bf16.mxu0 0
        %736 = vmatpush2.bf16.msra.mxu0 0
        %737 = vmatprep.subr.bf16.mxu0 0
        %738 = vmatpush2.bf16.msra.mxu0 0
        %739 = vmatprep.subr.bf16.mxu0 0
        %740 = vmatpush2.bf16.msra.mxu0 0
        %741 = vmatprep.subr.bf16.mxu0 0
        %742 = vmatpush2.bf16.msra.mxu0 0
        %743 = vmatprep.mubr.bf16.mxu0 0
        %744 = vmatmul.mubr.bf16.gmra.mxu0 %v609
        %v745 = vpop.f32.mrf.mxu0
        %v746 = vadd.f32 0.0, %v745
        %v747 = vpop.f32.mrf.mxu0
        %v748 = vpop.f32.mrf.mxu0
        %v749 = vadd.f32 0.0, %v748
        %v750 = vpop.f32.mrf.mxu0
        %751 = vmatprep.mubr.bf16.mxu0 0
        %752 = vmatmul.mubr.bf16.gmra.mxu0 %v612
        %v753 = vpop.f32.mrf.mxu0
        %v754 = vadd.f32 0.0, %v753
        %v755 = vpop.f32.mrf.mxu0
        %v756 = vpop.f32.mrf.mxu0
        %v757 = vadd.f32 0.0, %v756
        %v758 = vpop.f32.mrf.mxu0
        %759 = vmatprep.mubr.bf16.mxu0 0
        %760 = vmatmul.mubr.bf16.gmra.mxu0 %v615
        %v761 = vpop.f32.mrf.mxu0
        %v762 = vadd.f32 0.0, %v761
        %v763 = vpop.f32.mrf.mxu0
        %v764 = vpop.f32.mrf.mxu0
        %v765 = vadd.f32 0.0, %v764
        %v766 = vpop.f32.mrf.mxu0
        %767 = vmatprep.mubr.bf16.mxu0 0
        %768 = vmatmul.mubr.bf16.gmra.mxu0 %v618
        %v769 = vpop.f32.mrf.mxu0
        %v770 = vadd.f32 0.0, %v769
        %v771 = vpop.f32.mrf.mxu0
        %v772 = vpop.f32.mrf.mxu0
        %v773 = vadd.f32 0.0, %v772
        %v774 = vpop.f32.mrf.mxu0
        %775 = vmatprep.mubr.bf16.mxu0 0
        %776 = vmatmul.mubr.bf16.gmra.mxu0 %v621
        %v777 = vpop.f32.mrf.mxu0
        %v778 = vadd.f32 0.0, %v777
        %v779 = vpop.f32.mrf.mxu0
        %v780 = vpop.f32.mrf.mxu0
        %v781 = vadd.f32 0.0, %v780
        %v782 = vpop.f32.mrf.mxu0
        %783 = vmatprep.mubr.bf16.mxu0 0
        %784 = vmatmul.mubr.bf16.gmra.mxu0 %v624
        %v785 = vpop.f32.mrf.mxu0
        %v786 = vadd.f32 0.0, %v785
        %v787 = vpop.f32.mrf.mxu0
        %v788 = vpop.f32.mrf.mxu0
        %v789 = vadd.f32 0.0, %v788
        %v790 = vpop.f32.mrf.mxu0
        %791 = vmatprep.mubr.bf16.mxu0 0
        %792 = vmatmul.mubr.bf16.gmra.mxu0 %v627
        %v793 = vpop.f32.mrf.mxu0
        %v794 = vadd.f32 0.0, %v793
        %v795 = vpop.f32.mrf.mxu0
        %v796 = vpop.f32.mrf.mxu0
        %v797 = vadd.f32 0.0, %v796
        %v798 = vpop.f32.mrf.mxu0
        %799 = vmatprep.mubr.bf16.mxu0 0
        %800 = vmatmul.mubr.bf16.gmra.mxu0 %v630
        %v801 = vpop.f32.mrf.mxu0
        %v802 = vadd.f32 0.0, %v801
        %v803 = vpop.f32.mrf.mxu0
        %v804 = vpop.f32.mrf.mxu0
        %v805 = vadd.f32 0.0, %v804
        %v806 = vpop.f32.mrf.mxu0
        %807 = vmatprep.mubr.bf16.mxu0 0
        %808 = vmatmul.mubr.bf16.gmra.mxu0 %v633
        %v809 = vpop.f32.mrf.mxu0
        %v810 = vadd.f32 0.0, %v809
        %v811 = vpop.f32.mrf.mxu0
        %v812 = vpop.f32.mrf.mxu0
        %v813 = vadd.f32 0.0, %v812
        %v814 = vpop.f32.mrf.mxu0
        %815 = vmatprep.mubr.bf16.mxu0 0
        %816 = vmatmul.mubr.bf16.gmra.mxu0 %v636
        %v817 = vpop.f32.mrf.mxu0
        %v818 = vadd.f32 0.0, %v817
        %v819 = vpop.f32.mrf.mxu0
        %v820 = vpop.f32.mrf.mxu0
        %v821 = vadd.f32 0.0, %v820
        %v822 = vpop.f32.mrf.mxu0
        %823 = vmatprep.mubr.bf16.mxu0 0
        %824 = vmatmul.mubr.bf16.gmra.mxu0 %v639
        %v825 = vpop.f32.mrf.mxu0
        %v826 = vadd.f32 0.0, %v825
        %v827 = vpop.f32.mrf.mxu0
        %v828 = vpop.f32.mrf.mxu0
        %v829 = vadd.f32 0.0, %v828
        %v830 = vpop.f32.mrf.mxu0
        %831 = vmatprep.mubr.bf16.mxu0 0
        %832 = vmatmul.mubr.bf16.gmra.mxu0 %v642
        %v833 = vpop.f32.mrf.mxu0
        %v834 = vadd.f32 0.0, %v833
        %v835 = vpop.f32.mrf.mxu0
        %v836 = vpop.f32.mrf.mxu0
        %v837 = vadd.f32 0.0, %v836
        %v838 = vpop.f32.mrf.mxu0
        %839 = vmatprep.mubr.bf16.mxu0 0
        %840 = vmatmul.mubr.bf16.gmra.mxu0 %v645
        %v841 = vpop.f32.mrf.mxu0
        %v842 = vadd.f32 0.0, %v841
        %v843 = vpop.f32.mrf.mxu0
        %v844 = vpop.f32.mrf.mxu0
        %v845 = vadd.f32 0.0, %v844
        %v846 = vpop.f32.mrf.mxu0
        %847 = vmatprep.mubr.bf16.mxu0 0
        %848 = vmatmul.mubr.bf16.gmra.mxu0 %v648
        %v849 = vpop.f32.mrf.mxu0
        %v850 = vadd.f32 0.0, %v849
        %v851 = vpop.f32.mrf.mxu0
        %v852 = vpop.f32.mrf.mxu0
        %v853 = vadd.f32 0.0, %v852
        %v854 = vpop.f32.mrf.mxu0
        %855 = vmatprep.mubr.bf16.mxu0 0
        %856 = vmatmul.mubr.bf16.gmra.mxu0 %v651
        %v857 = vpop.f32.mrf.mxu0
        %v858 = vadd.f32 0.0, %v857
        %v859 = vpop.f32.mrf.mxu0
        %v860 = vpop.f32.mrf.mxu0
        %v861 = vadd.f32 0.0, %v860
        %v862 = vpop.f32.mrf.mxu0
        %863 = vmatprep.mubr.bf16.mxu0 0
        %864 = vmatmul.mubr.bf16.gmra.mxu0 %v654
        %v865 = vpop.f32.mrf.mxu0
        %v866 = vadd.f32 0.0, %v865
        %v867 = vpop.f32.mrf.mxu0
        %v868 = vpop.f32.mrf.mxu0
        %v869 = vadd.f32 0.0, %v868
        %v870 = vpop.f32.mrf.mxu0
        %871 = vmatprep.mubr.bf16.mxu0 0
        %872 = vmatmul.mubr.bf16.gmra.mxu0 %v657
        %v873 = vpop.f32.mrf.mxu0
        %v874 = vadd.f32 0.0, %v873
        %v875 = vpop.f32.mrf.mxu0
        %v876 = vpop.f32.mrf.mxu0
        %v877 = vadd.f32 0.0, %v876
        %v878 = vpop.f32.mrf.mxu0
        %879 = vmatprep.mubr.bf16.mxu0 0
        %880 = vmatmul.mubr.bf16.gmra.mxu0 %v660
        %v881 = vpop.f32.mrf.mxu0
        %v882 = vadd.f32 0.0, %v881
        %v883 = vpop.f32.mrf.mxu0
        %v884 = vpop.f32.mrf.mxu0
        %v885 = vadd.f32 0.0, %v884
        %v886 = vpop.f32.mrf.mxu0
        %887 = vmatprep.mubr.bf16.mxu0 0
        %888 = vmatmul.mubr.bf16.gmra.mxu0 %v663
        %v889 = vpop.f32.mrf.mxu0
        %v890 = vadd.f32 0.0, %v889
        %v891 = vpop.f32.mrf.mxu0
        %v892 = vpop.f32.mrf.mxu0
        %v893 = vadd.f32 0.0, %v892
        %v894 = vpop.f32.mrf.mxu0
        %895 = vmatprep.mubr.bf16.mxu0 0
        %896 = vmatmul.mubr.bf16.gmra.mxu0 %v666
        %v897 = vpop.f32.mrf.mxu0
        %v898 = vadd.f32 0.0, %v897
        %v899 = vpop.f32.mrf.mxu0
        %v900 = vpop.f32.mrf.mxu0
        %v901 = vadd.f32 0.0, %v900
        %v902 = vpop.f32.mrf.mxu0
        %903 = vmatprep.mubr.bf16.mxu0 0
        %904 = vmatmul.mubr.bf16.gmra.mxu0 %v669
        %v905 = vpop.f32.mrf.mxu0
        %v906 = vadd.f32 0.0, %v905
        %v907 = vpop.f32.mrf.mxu0
        %v908 = vpop.f32.mrf.mxu0
        %v909 = vadd.f32 0.0, %v908
        %v910 = vpop.f32.mrf.mxu0
        %911 = vmatprep.mubr.bf16.mxu0 0
        %912 = vmatmul.mubr.bf16.gmra.mxu0 %v672
        %v913 = vpop.f32.mrf.mxu0
        %v914 = vadd.f32 0.0, %v913
        %v915 = vpop.f32.mrf.mxu0
        %v916 = vpop.f32.mrf.mxu0
        %v917 = vadd.f32 0.0, %v916
        %v918 = vpop.f32.mrf.mxu0
        %919 = vmatprep.mubr.bf16.mxu0 0
        %920 = vmatmul.mubr.bf16.gmra.mxu0 %v675
        %v921 = vpop.f32.mrf.mxu0
        %v922 = vadd.f32 0.0, %v921
        %v923 = vpop.f32.mrf.mxu0
        %v924 = vpop.f32.mrf.mxu0
        %v925 = vadd.f32 0.0, %v924
        %v926 = vpop.f32.mrf.mxu0
        %927 = vmatprep.mubr.bf16.mxu0 0
        %928 = vmatmul.mubr.bf16.gmra.mxu0 %v678
        %v929 = vpop.f32.mrf.mxu0
        %v930 = vadd.f32 0.0, %v929
        %v931 = vpop.f32.mrf.mxu0
        %v932 = vpop.f32.mrf.mxu0
        %v933 = vadd.f32 0.0, %v932
        %v934 = vpop.f32.mrf.mxu0
        %935 = vmatprep.mubr.bf16.mxu0 0
        %936 = vmatmul.mubr.bf16.gmra.mxu0 %v681
        %v937 = vpop.f32.mrf.mxu0
        %v938 = vadd.f32 0.0, %v937
        %v939 = vpop.f32.mrf.mxu0
        %v940 = vpop.f32.mrf.mxu0
        %v941 = vadd.f32 0.0, %v940
        %v942 = vpop.f32.mrf.mxu0
        %943 = vmatprep.mubr.bf16.mxu0 0
        %944 = vmatmul.mubr.bf16.gmra.mxu0 %v684
        %v945 = vpop.f32.mrf.mxu0
        %v946 = vadd.f32 0.0, %v945
        %v947 = vpop.f32.mrf.mxu0
        %v948 = vpop.f32.mrf.mxu0
        %v949 = vadd.f32 0.0, %v948
        %v950 = vpop.f32.mrf.mxu0
        %951 = vmatprep.mubr.bf16.mxu0 0
        %952 = vmatmul.mubr.bf16.gmra.mxu0 %v687
        %v953 = vpop.f32.mrf.mxu0
        %v954 = vadd.f32 0.0, %v953
        %v955 = vpop.f32.mrf.mxu0
        %v956 = vpop.f32.mrf.mxu0
        %v957 = vadd.f32 0.0, %v956
        %v958 = vpop.f32.mrf.mxu0
        %959 = vmatprep.mubr.bf16.mxu0 0
        %960 = vmatmul.mubr.bf16.gmra.mxu0 %v690
        %v961 = vpop.f32.mrf.mxu0
        %v962 = vadd.f32 0.0, %v961
        %v963 = vpop.f32.mrf.mxu0
        %v964 = vpop.f32.mrf.mxu0
        %v965 = vadd.f32 0.0, %v964
        %v966 = vpop.f32.mrf.mxu0
        %967 = vmatprep.mubr.bf16.mxu0 0
        %968 = vmatmul.mubr.bf16.gmra.mxu0 %v693
        %v969 = vpop.f32.mrf.mxu0
        %v970 = vadd.f32 0.0, %v969
        %v971 = vpop.f32.mrf.mxu0
        %v972 = vpop.f32.mrf.mxu0
        %v973 = vadd.f32 0.0, %v972
        %v974 = vpop.f32.mrf.mxu0
        %975 = vmatprep.mubr.bf16.mxu0 0
        %976 = vmatmul.mubr.bf16.gmra.mxu0 %v696
        %v977 = vpop.f32.mrf.mxu0
        %v978 = vadd.f32 0.0, %v977
        %v979 = vpop.f32.mrf.mxu0
        %v980 = vpop.f32.mrf.mxu0
        %v981 = vadd.f32 0.0, %v980
        %v982 = vpop.f32.mrf.mxu0
        %983 = vmatprep.mubr.bf16.mxu0 0
        %984 = vmatmul.mubr.bf16.gmra.mxu0 %v699
        %v985 = vpop.f32.mrf.mxu0
        %v986 = vadd.f32 0.0, %v985
        %v987 = vpop.f32.mrf.mxu0
        %v988 = vpop.f32.mrf.mxu0
        %v989 = vadd.f32 0.0, %v988
        %v990 = vpop.f32.mrf.mxu0
        %991 = vmatprep.mubr.bf16.mxu0 0
        %992 = vmatmul.mubr.bf16.gmra.mxu0 %v702
        %v993 = vpop.f32.mrf.mxu0
        %v994 = vadd.f32 0.0, %v993
        %v995 = vpop.f32.mrf.mxu0
        %v996 = vpop.f32.mrf.mxu0
        %v997 = vadd.f32 0.0, %v996
        %v998 = vpop.f32.mrf.mxu0
        %999 = vdwg.mxu0
        %v1001 = vlaneseq
        %v1002 = vshrl.u32 %v1001, 7
        %v1003 = vsub.s32 0, %v1002
        %v1004 = vrot.slane %v509, %v1003
        %v1006 = vadd.f32 %v1004, %v746
        %v1007 = vadd.f32 %v1004, %v749
        %v1008 = vadd.f32 %v1004, %v754
        %v1009 = vadd.f32 %v1004, %v757
        %v1010 = vadd.f32 %v1004, %v762
        %v1011 = vadd.f32 %v1004, %v765
        %v1012 = vadd.f32 %v1004, %v770
        %v1013 = vadd.f32 %v1004, %v773
        %v1014 = vadd.f32 %v1004, %v778
        %v1015 = vadd.f32 %v1004, %v781
        %v1016 = vadd.f32 %v1004, %v786
        %v1017 = vadd.f32 %v1004, %v789
        %v1018 = vadd.f32 %v1004, %v794
        %v1019 = vadd.f32 %v1004, %v797
        %v1020 = vadd.f32 %v1004, %v802
        %v1021 = vadd.f32 %v1004, %v805
        %v1022 = vadd.f32 %v1004, %v810
        %v1023 = vadd.f32 %v1004, %v813
        %v1024 = vadd.f32 %v1004, %v818
        %v1025 = vadd.f32 %v1004, %v821
        %v1026 = vadd.f32 %v1004, %v826
        %v1027 = vadd.f32 %v1004, %v829
        %v1028 = vadd.f32 %v1004, %v834
        %v1029 = vadd.f32 %v1004, %v837
        %v1030 = vadd.f32 %v1004, %v842
        %v1031 = vadd.f32 %v1004, %v845
        %v1032 = vadd.f32 %v1004, %v850
        %v1033 = vadd.f32 %v1004, %v853
        %v1034 = vadd.f32 %v1004, %v858
        %v1035 = vadd.f32 %v1004, %v861
        %v1036 = vadd.f32 %v1004, %v866
        %v1037 = vadd.f32 %v1004, %v869
        %v1038 = vadd.f32 %v1004, %v874
        %v1039 = vadd.f32 %v1004, %v877
        %v1040 = vadd.f32 %v1004, %v882
        %v1041 = vadd.f32 %v1004, %v885
        %v1042 = vadd.f32 %v1004, %v890
        %v1043 = vadd.f32 %v1004, %v893
        %v1044 = vadd.f32 %v1004, %v898
        %v1045 = vadd.f32 %v1004, %v901
        %v1046 = vadd.f32 %v1004, %v906
        %v1047 = vadd.f32 %v1004, %v909
        %v1048 = vadd.f32 %v1004, %v914
        %v1049 = vadd.f32 %v1004, %v917
        %v1050 = vadd.f32 %v1004, %v922
        %v1051 = vadd.f32 %v1004, %v925
        %v1052 = vadd.f32 %v1004, %v930
        %v1053 = vadd.f32 %v1004, %v933
        %v1054 = vadd.f32 %v1004, %v938
        %v1055 = vadd.f32 %v1004, %v941
        %v1056 = vadd.f32 %v1004, %v946
        %v1057 = vadd.f32 %v1004, %v949
        %v1058 = vadd.f32 %v1004, %v954
        %v1059 = vadd.f32 %v1004, %v957
        %v1060 = vadd.f32 %v1004, %v962
        %v1061 = vadd.f32 %v1004, %v965
        %v1062 = vadd.f32 %v1004, %v970
        %v1063 = vadd.f32 %v1004, %v973
        %v1064 = vadd.f32 %v1004, %v978
        %v1065 = vadd.f32 %v1004, %v981
        %v1066 = vadd.f32 %v1004, %v986
        %v1067 = vadd.f32 %v1004, %v989
        %v1068 = vadd.f32 %v1004, %v994
        %v1069 = vadd.f32 %v1004, %v997
        %v1070 = vld [vmem:[%s493] sm:$0xff]
        %v1071 = vld [vmem:[%s493 + $0x8] sm:$0xff]
        %v1072 = vld [vmem:[%s493 + $0x10] sm:$0xff]
        %v1073 = vld [vmem:[%s493 + $0x18] sm:$0xff]
        %v1074 = vld [vmem:[%s493 + $0x20] sm:$0xff]
        %v1075 = vld [vmem:[%s493 + $0x28] sm:$0xff]
        %v1076 = vld [vmem:[%s493 + $0x30] sm:$0xff]
        %v1077 = vld [vmem:[%s493 + $0x38] sm:$0xff]
        %v1078 = vld [vmem:[%s493 + $0x40] sm:$0xff]
        %v1079 = vld [vmem:[%s493 + $0x48] sm:$0xff]
        %v1080 = vld [vmem:[%s493 + $0x50] sm:$0xff]
        %v1081 = vld [vmem:[%s493 + $0x58] sm:$0xff]
        %v1082 = vld [vmem:[%s493 + $0x60] sm:$0xff]
        %v1083 = vld [vmem:[%s493 + $0x68] sm:$0xff]
        %v1084 = vld [vmem:[%s493 + $0x70] sm:$0xff]
        %v1085 = vld [vmem:[%s493 + $0x78] sm:$0xff]
        %v1086 = vld [vmem:[%s493 + $0x80] sm:$0xff]
        %v1087 = vld [vmem:[%s493 + $0x88] sm:$0xff]
        %v1088 = vld [vmem:[%s493 + $0x90] sm:$0xff]
        %v1089 = vld [vmem:[%s493 + $0x98] sm:$0xff]
        %v1090 = vld [vmem:[%s493 + $0xa0] sm:$0xff]
        %v1091 = vld [vmem:[%s493 + $0xa8] sm:$0xff]
        %v1092 = vld [vmem:[%s493 + $0xb0] sm:$0xff]
        %v1093 = vld [vmem:[%s493 + $0xb8] sm:$0xff]
        %v1094 = vld [vmem:[%s493 + $0xc0] sm:$0xff]
        %v1095 = vld [vmem:[%s493 + $0xc8] sm:$0xff]
        %v1096 = vld [vmem:[%s493 + $0xd0] sm:$0xff]
        %v1097 = vld [vmem:[%s493 + $0xd8] sm:$0xff]
        %v1098 = vld [vmem:[%s493 + $0xe0] sm:$0xff]
        %v1099 = vld [vmem:[%s493 + $0xe8] sm:$0xff]
        %v1100 = vld [vmem:[%s493 + $0xf0] sm:$0xff]
        %v1101 = vld [vmem:[%s493 + $0xf8] sm:$0xff]
        %v1102 = vld [vmem:[%s493 + $0x100] sm:$0xff]
        %v1103 = vld [vmem:[%s493 + $0x108] sm:$0xff]
        %v1104 = vld [vmem:[%s493 + $0x110] sm:$0xff]
        %v1105 = vld [vmem:[%s493 + $0x118] sm:$0xff]
        %v1106 = vld [vmem:[%s493 + $0x120] sm:$0xff]
        %v1107 = vld [vmem:[%s493 + $0x128] sm:$0xff]
        %v1108 = vld [vmem:[%s493 + $0x130] sm:$0xff]
        %v1109 = vld [vmem:[%s493 + $0x138] sm:$0xff]
        %v1110 = vld [vmem:[%s493 + $0x140] sm:$0xff]
        %v1111 = vld [vmem:[%s493 + $0x148] sm:$0xff]
        %v1112 = vld [vmem:[%s493 + $0x150] sm:$0xff]
        %v1113 = vld [vmem:[%s493 + $0x158] sm:$0xff]
        %v1114 = vld [vmem:[%s493 + $0x160] sm:$0xff]
        %v1115 = vld [vmem:[%s493 + $0x168] sm:$0xff]
        %v1116 = vld [vmem:[%s493 + $0x170] sm:$0xff]
        %v1117 = vld [vmem:[%s493 + $0x178] sm:$0xff]
        %v1118 = vld [vmem:[%s493 + $0x180] sm:$0xff]
        %v1119 = vld [vmem:[%s493 + $0x188] sm:$0xff]
        %v1120 = vld [vmem:[%s493 + $0x190] sm:$0xff]
        %v1121 = vld [vmem:[%s493 + $0x198] sm:$0xff]
        %v1122 = vld [vmem:[%s493 + $0x1a0] sm:$0xff]
        %v1123 = vld [vmem:[%s493 + $0x1a8] sm:$0xff]
        %v1124 = vld [vmem:[%s493 + $0x1b0] sm:$0xff]
        %v1125 = vld [vmem:[%s493 + $0x1b8] sm:$0xff]
        %v1126 = vld [vmem:[%s493 + $0x1c0] sm:$0xff]
        %v1127 = vld [vmem:[%s493 + $0x1c8] sm:$0xff]
        %v1128 = vld [vmem:[%s493 + $0x1d0] sm:$0xff]
        %v1129 = vld [vmem:[%s493 + $0x1d8] sm:$0xff]
        %v1130 = vld [vmem:[%s493 + $0x1e0] sm:$0xff]
        %v1131 = vld [vmem:[%s493 + $0x1e8] sm:$0xff]
        %v1132 = vld [vmem:[%s493 + $0x1f0] sm:$0xff]
        %v1133 = vld [vmem:[%s493 + $0x1f8] sm:$0xff]
        %v1134 = vpack.c.bf16 %v1071, %v1070
        %v1135 = vpack.c.bf16 %v1073, %v1072
        %v1136 = vpack.c.bf16 %v1075, %v1074
        %v1137 = vpack.c.bf16 %v1077, %v1076
        %v1138 = vpack.c.bf16 %v1079, %v1078
        %v1139 = vpack.c.bf16 %v1081, %v1080
        %v1140 = vpack.c.bf16 %v1083, %v1082
        %v1141 = vpack.c.bf16 %v1085, %v1084
        %v1142 = vpack.c.bf16 %v1087, %v1086
        %v1143 = vpack.c.bf16 %v1089, %v1088
        %v1144 = vpack.c.bf16 %v1091, %v1090
        %v1145 = vpack.c.bf16 %v1093, %v1092
        %v1146 = vpack.c.bf16 %v1095, %v1094
        %v1147 = vpack.c.bf16 %v1097, %v1096
        %v1148 = vpack.c.bf16 %v1099, %v1098
        %v1149 = vpack.c.bf16 %v1101, %v1100
        %v1150 = vpack.c.bf16 %v1103, %v1102
        %v1151 = vpack.c.bf16 %v1105, %v1104
        %v1152 = vpack.c.bf16 %v1107, %v1106
        %v1153 = vpack.c.bf16 %v1109, %v1108
        %v1154 = vpack.c.bf16 %v1111, %v1110
        %v1155 = vpack.c.bf16 %v1113, %v1112
        %v1156 = vpack.c.bf16 %v1115, %v1114
        %v1157 = vpack.c.bf16 %v1117, %v1116
        %v1158 = vpack.c.bf16 %v1119, %v1118
        %v1159 = vpack.c.bf16 %v1121, %v1120
        %v1160 = vpack.c.bf16 %v1123, %v1122
        %v1161 = vpack.c.bf16 %v1125, %v1124
        %v1162 = vpack.c.bf16 %v1127, %v1126
        %v1163 = vpack.c.bf16 %v1129, %v1128
        %v1164 = vpack.c.bf16 %v1131, %v1130
        %v1165 = vpack.c.bf16 %v1133, %v1132
        %v1166 = vld [vmem:[%s5] sm:$0x3]
        %v1168 = vsel %vm607, %v1134, 0
        %v1171 = vsel %vm607, %v1135, 0
        %v1174 = vsel %vm607, %v1136, 0
        %v1177 = vsel %vm607, %v1137, 0
        %v1180 = vsel %vm607, %v1138, 0
        %v1183 = vsel %vm607, %v1139, 0
        %v1186 = vsel %vm607, %v1140, 0
        %v1189 = vsel %vm607, %v1141, 0
        %v1192 = vsel %vm607, %v1142, 0
        %v1195 = vsel %vm607, %v1143, 0
        %v1198 = vsel %vm607, %v1144, 0
        %v1201 = vsel %vm607, %v1145, 0
        %v1204 = vsel %vm607, %v1146, 0
        %v1207 = vsel %vm607, %v1147, 0
        %v1210 = vsel %vm607, %v1148, 0
        %v1213 = vsel %vm607, %v1149, 0
        %v1216 = vsel %vm607, %v1150, 0
        %v1219 = vsel %vm607, %v1151, 0
        %v1222 = vsel %vm607, %v1152, 0
        %v1225 = vsel %vm607, %v1153, 0
        %v1228 = vsel %vm607, %v1154, 0
        %v1231 = vsel %vm607, %v1155, 0
        %v1234 = vsel %vm607, %v1156, 0
        %v1237 = vsel %vm607, %v1157, 0
        %v1240 = vsel %vm607, %v1158, 0
        %v1243 = vsel %vm607, %v1159, 0
        %v1246 = vsel %vm607, %v1160, 0
        %v1249 = vsel %vm607, %v1161, 0
        %v1252 = vsel %vm607, %v1162, 0
        %v1255 = vsel %vm607, %v1163, 0
        %v1258 = vsel %vm607, %v1164, 0
        %v1261 = vsel %vm607, %v1165, 0
        %v1264 = vand.u32 %v1166, %v707
        %1266 = vmatprep.subr.bf16.mxu0 0
        %1267 = vmatpush1.bf16.msra.mxu0 0
        %1268 = vmatprep.subr.bf16.mxu0 0
        %1269 = vmatpush1.bf16.msra.mxu0 0
        %1270 = vmatprep.subr.bf16.mxu0 0
        %1271 = vmatpush1.bf16.msra.mxu0 0
        %1272 = vmatprep.subr.bf16.mxu0 0
        %1273 = vmatpush1.bf16.msra.mxu0 0
        %1274 = vmatprep.subr.bf16.mxu0 0
        %1275 = vmatpush1.bf16.msra.mxu0 0
        %1276 = vmatprep.subr.bf16.mxu0 0
        %1277 = vmatpush1.bf16.msra.mxu0 0
        %1278 = vmatprep.subr.bf16.mxu0 0
        %1279 = vmatpush1.bf16.msra.mxu0 0
        %1280 = vmatprep.subr.bf16.mxu0 0
        %1281 = vmatpush1.bf16.msra.mxu0 %v1264
        %1282 = vmatprep.subr.bf16.mxu0 0
        %1283 = vmatpush2.bf16.msra.mxu0 0
        %1284 = vmatprep.subr.bf16.mxu0 0
        %1285 = vmatpush2.bf16.msra.mxu0 0
        %1286 = vmatprep.subr.bf16.mxu0 0
        %1287 = vmatpush2.bf16.msra.mxu0 0
        %1288 = vmatprep.subr.bf16.mxu0 0
        %1289 = vmatpush2.bf16.msra.mxu0 0
        %1290 = vmatprep.subr.bf16.mxu0 0
        %1291 = vmatpush2.bf16.msra.mxu0 0
        %1292 = vmatprep.subr.bf16.mxu0 0
        %1293 = vmatpush2.bf16.msra.mxu0 0
        %1294 = vmatprep.subr.bf16.mxu0 0
        %1295 = vmatpush2.bf16.msra.mxu0 0
        %1296 = vmatprep.subr.bf16.mxu0 0
        %1297 = vmatpush2.bf16.msra.mxu0 0
        %1298 = vmatprep.mubr.bf16.mxu0 0
        %1299 = vmatmul.mubr.bf16.gmra.mxu0 %v1168
        %v1300 = vpop.f32.mrf.mxu0
        %v1301 = vadd.f32 0.0, %v1300
        %v1302 = vpop.f32.mrf.mxu0
        %v1303 = vpop.f32.mrf.mxu0
        %v1304 = vadd.f32 0.0, %v1303
        %v1305 = vpop.f32.mrf.mxu0
        %1306 = vmatprep.mubr.bf16.mxu0 0
        %1307 = vmatmul.mubr.bf16.gmra.mxu0 %v1171
        %v1308 = vpop.f32.mrf.mxu0
        %v1309 = vadd.f32 0.0, %v1308
        %v1310 = vpop.f32.mrf.mxu0
        %v1311 = vpop.f32.mrf.mxu0
        %v1312 = vadd.f32 0.0, %v1311
        %v1313 = vpop.f32.mrf.mxu0
        %1314 = vmatprep.mubr.bf16.mxu0 0
        %1315 = vmatmul.mubr.bf16.gmra.mxu0 %v1174
        %v1316 = vpop.f32.mrf.mxu0
        %v1317 = vadd.f32 0.0, %v1316
        %v1318 = vpop.f32.mrf.mxu0
        %v1319 = vpop.f32.mrf.mxu0
        %v1320 = vadd.f32 0.0, %v1319
        %v1321 = vpop.f32.mrf.mxu0
        %1322 = vmatprep.mubr.bf16.mxu0 0
        %1323 = vmatmul.mubr.bf16.gmra.mxu0 %v1177
        %v1324 = vpop.f32.mrf.mxu0
        %v1325 = vadd.f32 0.0, %v1324
        %v1326 = vpop.f32.mrf.mxu0
        %v1327 = vpop.f32.mrf.mxu0
        %v1328 = vadd.f32 0.0, %v1327
        %v1329 = vpop.f32.mrf.mxu0
        %1330 = vmatprep.mubr.bf16.mxu0 0
        %1331 = vmatmul.mubr.bf16.gmra.mxu0 %v1180
        %v1332 = vpop.f32.mrf.mxu0
        %v1333 = vadd.f32 0.0, %v1332
        %v1334 = vpop.f32.mrf.mxu0
        %v1335 = vpop.f32.mrf.mxu0
        %v1336 = vadd.f32 0.0, %v1335
        %v1337 = vpop.f32.mrf.mxu0
        %1338 = vmatprep.mubr.bf16.mxu0 0
        %1339 = vmatmul.mubr.bf16.gmra.mxu0 %v1183
        %v1340 = vpop.f32.mrf.mxu0
        %v1341 = vadd.f32 0.0, %v1340
        %v1342 = vpop.f32.mrf.mxu0
        %v1343 = vpop.f32.mrf.mxu0
        %v1344 = vadd.f32 0.0, %v1343
        %v1345 = vpop.f32.mrf.mxu0
        %1346 = vmatprep.mubr.bf16.mxu0 0
        %1347 = vmatmul.mubr.bf16.gmra.mxu0 %v1186
        %v1348 = vpop.f32.mrf.mxu0
        %v1349 = vadd.f32 0.0, %v1348
        %v1350 = vpop.f32.mrf.mxu0
        %v1351 = vpop.f32.mrf.mxu0
        %v1352 = vadd.f32 0.0, %v1351
        %v1353 = vpop.f32.mrf.mxu0
        %1354 = vmatprep.mubr.bf16.mxu0 0
        %1355 = vmatmul.mubr.bf16.gmra.mxu0 %v1189
        %v1356 = vpop.f32.mrf.mxu0
        %v1357 = vadd.f32 0.0, %v1356
        %v1358 = vpop.f32.mrf.mxu0
        %v1359 = vpop.f32.mrf.mxu0
        %v1360 = vadd.f32 0.0, %v1359
        %v1361 = vpop.f32.mrf.mxu0
        %1362 = vmatprep.mubr.bf16.mxu0 0
        %1363 = vmatmul.mubr.bf16.gmra.mxu0 %v1192
        %v1364 = vpop.f32.mrf.mxu0
        %v1365 = vadd.f32 0.0, %v1364
        %v1366 = vpop.f32.mrf.mxu0
        %v1367 = vpop.f32.mrf.mxu0
        %v1368 = vadd.f32 0.0, %v1367
        %v1369 = vpop.f32.mrf.mxu0
        %1370 = vmatprep.mubr.bf16.mxu0 0
        %1371 = vmatmul.mubr.bf16.gmra.mxu0 %v1195
        %v1372 = vpop.f32.mrf.mxu0
        %v1373 = vadd.f32 0.0, %v1372
        %v1374 = vpop.f32.mrf.mxu0
        %v1375 = vpop.f32.mrf.mxu0
        %v1376 = vadd.f32 0.0, %v1375
        %v1377 = vpop.f32.mrf.mxu0
        %1378 = vmatprep.mubr.bf16.mxu0 0
        %1379 = vmatmul.mubr.bf16.gmra.mxu0 %v1198
        %v1380 = vpop.f32.mrf.mxu0
        %v1381 = vadd.f32 0.0, %v1380
        %v1382 = vpop.f32.mrf.mxu0
        %v1383 = vpop.f32.mrf.mxu0
        %v1384 = vadd.f32 0.0, %v1383
        %v1385 = vpop.f32.mrf.mxu0
        %1386 = vmatprep.mubr.bf16.mxu0 0
        %1387 = vmatmul.mubr.bf16.gmra.mxu0 %v1201
        %v1388 = vpop.f32.mrf.mxu0
        %v1389 = vadd.f32 0.0, %v1388
        %v1390 = vpop.f32.mrf.mxu0
        %v1391 = vpop.f32.mrf.mxu0
        %v1392 = vadd.f32 0.0, %v1391
        %v1393 = vpop.f32.mrf.mxu0
        %1394 = vmatprep.mubr.bf16.mxu0 0
        %1395 = vmatmul.mubr.bf16.gmra.mxu0 %v1204
        %v1396 = vpop.f32.mrf.mxu0
        %v1397 = vadd.f32 0.0, %v1396
        %v1398 = vpop.f32.mrf.mxu0
        %v1399 = vpop.f32.mrf.mxu0
        %v1400 = vadd.f32 0.0, %v1399
        %v1401 = vpop.f32.mrf.mxu0
        %1402 = vmatprep.mubr.bf16.mxu0 0
        %1403 = vmatmul.mubr.bf16.gmra.mxu0 %v1207
        %v1404 = vpop.f32.mrf.mxu0
        %v1405 = vadd.f32 0.0, %v1404
        %v1406 = vpop.f32.mrf.mxu0
        %v1407 = vpop.f32.mrf.mxu0
        %v1408 = vadd.f32 0.0, %v1407
        %v1409 = vpop.f32.mrf.mxu0
        %1410 = vmatprep.mubr.bf16.mxu0 0
        %1411 = vmatmul.mubr.bf16.gmra.mxu0 %v1210
        %v1412 = vpop.f32.mrf.mxu0
        %v1413 = vadd.f32 0.0, %v1412
        %v1414 = vpop.f32.mrf.mxu0
        %v1415 = vpop.f32.mrf.mxu0
        %v1416 = vadd.f32 0.0, %v1415
        %v1417 = vpop.f32.mrf.mxu0
        %1418 = vmatprep.mubr.bf16.mxu0 0
        %1419 = vmatmul.mubr.bf16.gmra.mxu0 %v1213
        %v1420 = vpop.f32.mrf.mxu0
        %v1421 = vadd.f32 0.0, %v1420
        %v1422 = vpop.f32.mrf.mxu0
        %v1423 = vpop.f32.mrf.mxu0
        %v1424 = vadd.f32 0.0, %v1423
        %v1425 = vpop.f32.mrf.mxu0
        %1426 = vmatprep.mubr.bf16.mxu0 0
        %1427 = vmatmul.mubr.bf16.gmra.mxu0 %v1216
        %v1428 = vpop.f32.mrf.mxu0
        %v1429 = vadd.f32 0.0, %v1428
        %v1430 = vpop.f32.mrf.mxu0
        %v1431 = vpop.f32.mrf.mxu0
        %v1432 = vadd.f32 0.0, %v1431
        %v1433 = vpop.f32.mrf.mxu0
        %1434 = vmatprep.mubr.bf16.mxu0 0
        %1435 = vmatmul.mubr.bf16.gmra.mxu0 %v1219
        %v1436 = vpop.f32.mrf.mxu0
        %v1437 = vadd.f32 0.0, %v1436
        %v1438 = vpop.f32.mrf.mxu0
        %v1439 = vpop.f32.mrf.mxu0
        %v1440 = vadd.f32 0.0, %v1439
        %v1441 = vpop.f32.mrf.mxu0
        %1442 = vmatprep.mubr.bf16.mxu0 0
        %1443 = vmatmul.mubr.bf16.gmra.mxu0 %v1222
        %v1444 = vpop.f32.mrf.mxu0
        %v1445 = vadd.f32 0.0, %v1444
        %v1446 = vpop.f32.mrf.mxu0
        %v1447 = vpop.f32.mrf.mxu0
        %v1448 = vadd.f32 0.0, %v1447
        %v1449 = vpop.f32.mrf.mxu0
        %1450 = vmatprep.mubr.bf16.mxu0 0
        %1451 = vmatmul.mubr.bf16.gmra.mxu0 %v1225
        %v1452 = vpop.f32.mrf.mxu0
        %v1453 = vadd.f32 0.0, %v1452
        %v1454 = vpop.f32.mrf.mxu0
        %v1455 = vpop.f32.mrf.mxu0
        %v1456 = vadd.f32 0.0, %v1455
        %v1457 = vpop.f32.mrf.mxu0
        %1458 = vmatprep.mubr.bf16.mxu0 0
        %1459 = vmatmul.mubr.bf16.gmra.mxu0 %v1228
        %v1460 = vpop.f32.mrf.mxu0
        %v1461 = vadd.f32 0.0, %v1460
        %v1462 = vpop.f32.mrf.mxu0
        %v1463 = vpop.f32.mrf.mxu0
        %v1464 = vadd.f32 0.0, %v1463
        %v1465 = vpop.f32.mrf.mxu0
        %1466 = vmatprep.mubr.bf16.mxu0 0
        %1467 = vmatmul.mubr.bf16.gmra.mxu0 %v1231
        %v1468 = vpop.f32.mrf.mxu0
        %v1469 = vadd.f32 0.0, %v1468
        %v1470 = vpop.f32.mrf.mxu0
        %v1471 = vpop.f32.mrf.mxu0
        %v1472 = vadd.f32 0.0, %v1471
        %v1473 = vpop.f32.mrf.mxu0
        %1474 = vmatprep.mubr.bf16.mxu0 0
        %1475 = vmatmul.mubr.bf16.gmra.mxu0 %v1234
        %v1476 = vpop.f32.mrf.mxu0
        %v1477 = vadd.f32 0.0, %v1476
        %v1478 = vpop.f32.mrf.mxu0
        %v1479 = vpop.f32.mrf.mxu0
        %v1480 = vadd.f32 0.0, %v1479
        %v1481 = vpop.f32.mrf.mxu0
        %1482 = vmatprep.mubr.bf16.mxu0 0
        %1483 = vmatmul.mubr.bf16.gmra.mxu0 %v1237
        %v1484 = vpop.f32.mrf.mxu0
        %v1485 = vadd.f32 0.0, %v1484
        %v1486 = vpop.f32.mrf.mxu0
        %v1487 = vpop.f32.mrf.mxu0
        %v1488 = vadd.f32 0.0, %v1487
        %v1489 = vpop.f32.mrf.mxu0
        %1490 = vmatprep.mubr.bf16.mxu0 0
        %1491 = vmatmul.mubr.bf16.gmra.mxu0 %v1240
        %v1492 = vpop.f32.mrf.mxu0
        %v1493 = vadd.f32 0.0, %v1492
        %v1494 = vpop.f32.mrf.mxu0
        %v1495 = vpop.f32.mrf.mxu0
        %v1496 = vadd.f32 0.0, %v1495
        %v1497 = vpop.f32.mrf.mxu0
        %1498 = vmatprep.mubr.bf16.mxu0 0
        %1499 = vmatmul.mubr.bf16.gmra.mxu0 %v1243
        %v1500 = vpop.f32.mrf.mxu0
        %v1501 = vadd.f32 0.0, %v1500
        %v1502 = vpop.f32.mrf.mxu0
        %v1503 = vpop.f32.mrf.mxu0
        %v1504 = vadd.f32 0.0, %v1503
        %v1505 = vpop.f32.mrf.mxu0
        %1506 = vmatprep.mubr.bf16.mxu0 0
        %1507 = vmatmul.mubr.bf16.gmra.mxu0 %v1246
        %v1508 = vpop.f32.mrf.mxu0
        %v1509 = vadd.f32 0.0, %v1508
        %v1510 = vpop.f32.mrf.mxu0
        %v1511 = vpop.f32.mrf.mxu0
        %v1512 = vadd.f32 0.0, %v1511
        %v1513 = vpop.f32.mrf.mxu0
        %1514 = vmatprep.mubr.bf16.mxu0 0
        %1515 = vmatmul.mubr.bf16.gmra.mxu0 %v1249
        %v1516 = vpop.f32.mrf.mxu0
        %v1517 = vadd.f32 0.0, %v1516
        %v1518 = vpop.f32.mrf.mxu0
        %v1519 = vpop.f32.mrf.mxu0
        %v1520 = vadd.f32 0.0, %v1519
        %v1521 = vpop.f32.mrf.mxu0
        %1522 = vmatprep.mubr.bf16.mxu0 0
        %1523 = vmatmul.mubr.bf16.gmra.mxu0 %v1252
        %v1524 = vpop.f32.mrf.mxu0
        %v1525 = vadd.f32 0.0, %v1524
        %v1526 = vpop.f32.mrf.mxu0
        %v1527 = vpop.f32.mrf.mxu0
        %v1528 = vadd.f32 0.0, %v1527
        %v1529 = vpop.f32.mrf.mxu0
        %1530 = vmatprep.mubr.bf16.mxu0 0
        %1531 = vmatmul.mubr.bf16.gmra.mxu0 %v1255
        %v1532 = vpop.f32.mrf.mxu0
        %v1533 = vadd.f32 0.0, %v1532
        %v1534 = vpop.f32.mrf.mxu0
        %v1535 = vpop.f32.mrf.mxu0
        %v1536 = vadd.f32 0.0, %v1535
        %v1537 = vpop.f32.mrf.mxu0
        %1538 = vmatprep.mubr.bf16.mxu0 0
        %1539 = vmatmul.mubr.bf16.gmra.mxu0 %v1258
        %v1540 = vpop.f32.mrf.mxu0
        %v1541 = vadd.f32 0.0, %v1540
        %v1542 = vpop.f32.mrf.mxu0
        %v1543 = vpop.f32.mrf.mxu0
        %v1544 = vadd.f32 0.0, %v1543
        %v1545 = vpop.f32.mrf.mxu0
        %1546 = vmatprep.mubr.bf16.mxu0 0
        %1547 = vmatmul.mubr.bf16.gmra.mxu0 %v1261
        %v1548 = vpop.f32.mrf.mxu0
        %v1549 = vadd.f32 0.0, %v1548
        %v1550 = vpop.f32.mrf.mxu0
        %v1551 = vpop.f32.mrf.mxu0
        %v1552 = vadd.f32 0.0, %v1551
        %v1553 = vpop.f32.mrf.mxu0
        %1554 = vdwg.mxu0
        %v1555 = vadd.f32 %v1006, %v1301
        %v1556 = vadd.f32 %v1007, %v1304
        %v1557 = vadd.f32 %v1008, %v1309
        %v1558 = vadd.f32 %v1009, %v1312
        %v1559 = vadd.f32 %v1010, %v1317
        %v1560 = vadd.f32 %v1011, %v1320
        %v1561 = vadd.f32 %v1012, %v1325
        %v1562 = vadd.f32 %v1013, %v1328
        %v1563 = vadd.f32 %v1014, %v1333
        %v1564 = vadd.f32 %v1015, %v1336
        %v1565 = vadd.f32 %v1016, %v1341
        %v1566 = vadd.f32 %v1017, %v1344
        %v1567 = vadd.f32 %v1018, %v1349
        %v1568 = vadd.f32 %v1019, %v1352
        %v1569 = vadd.f32 %v1020, %v1357
        %v1570 = vadd.f32 %v1021, %v1360
        %v1571 = vadd.f32 %v1022, %v1365
        %v1572 = vadd.f32 %v1023, %v1368
        %v1573 = vadd.f32 %v1024, %v1373
        %v1574 = vadd.f32 %v1025, %v1376
        %v1575 = vadd.f32 %v1026, %v1381
        %v1576 = vadd.f32 %v1027, %v1384
        %v1577 = vadd.f32 %v1028, %v1389
        %v1578 = vadd.f32 %v1029, %v1392
        %v1579 = vadd.f32 %v1030, %v1397
        %v1580 = vadd.f32 %v1031, %v1400
        %v1581 = vadd.f32 %v1032, %v1405
        %v1582 = vadd.f32 %v1033, %v1408
        %v1583 = vadd.f32 %v1034, %v1413
        %v1584 = vadd.f32 %v1035, %v1416
        %v1585 = vadd.f32 %v1036, %v1421
        %v1586 = vadd.f32 %v1037, %v1424
        %v1587 = vadd.f32 %v1038, %v1429
        %v1588 = vadd.f32 %v1039, %v1432
        %v1589 = vadd.f32 %v1040, %v1437
        %v1590 = vadd.f32 %v1041, %v1440
        %v1591 = vadd.f32 %v1042, %v1445
        %v1592 = vadd.f32 %v1043, %v1448
        %v1593 = vadd.f32 %v1044, %v1453
        %v1594 = vadd.f32 %v1045, %v1456
        %v1595 = vadd.f32 %v1046, %v1461
        %v1596 = vadd.f32 %v1047, %v1464
        %v1597 = vadd.f32 %v1048, %v1469
        %v1598 = vadd.f32 %v1049, %v1472
        %v1599 = vadd.f32 %v1050, %v1477
        %v1600 = vadd.f32 %v1051, %v1480
        %v1601 = vadd.f32 %v1052, %v1485
        %v1602 = vadd.f32 %v1053, %v1488
        %v1603 = vadd.f32 %v1054, %v1493
        %v1604 = vadd.f32 %v1055, %v1496
        %v1605 = vadd.f32 %v1056, %v1501
        %v1606 = vadd.f32 %v1057, %v1504
        %v1607 = vadd.f32 %v1058, %v1509
        %v1608 = vadd.f32 %v1059, %v1512
        %v1609 = vadd.f32 %v1060, %v1517
        %v1610 = vadd.f32 %v1061, %v1520
        %v1611 = vadd.f32 %v1062, %v1525
        %v1612 = vadd.f32 %v1063, %v1528
        %v1613 = vadd.f32 %v1064, %v1533
        %v1614 = vadd.f32 %v1065, %v1536
        %v1615 = vadd.f32 %v1066, %v1541
        %v1616 = vadd.f32 %v1067, %v1544
        %v1617 = vadd.f32 %v1068, %v1549
        %v1618 = vadd.f32 %v1069, %v1552
        %v1619 = vld [vmem:[%s499] sm:$0xff]
        %v1620 = vld [vmem:[%s499 + $0x8] sm:$0xff]
        %v1621 = vld [vmem:[%s499 + $0x10] sm:$0xff]
        %v1622 = vld [vmem:[%s499 + $0x18] sm:$0xff]
        %v1623 = vld [vmem:[%s499 + $0x20] sm:$0xff]
        %v1624 = vld [vmem:[%s499 + $0x28] sm:$0xff]
        %v1625 = vld [vmem:[%s499 + $0x30] sm:$0xff]
        %v1626 = vld [vmem:[%s499 + $0x38] sm:$0xff]
        %v1627 = vld [vmem:[%s499 + $0x40] sm:$0xff]
        %v1628 = vld [vmem:[%s499 + $0x48] sm:$0xff]
        %v1629 = vld [vmem:[%s499 + $0x50] sm:$0xff]
        %v1630 = vld [vmem:[%s499 + $0x58] sm:$0xff]
        %v1631 = vld [vmem:[%s499 + $0x60] sm:$0xff]
        %v1632 = vld [vmem:[%s499 + $0x68] sm:$0xff]
        %v1633 = vld [vmem:[%s499 + $0x70] sm:$0xff]
        %v1634 = vld [vmem:[%s499 + $0x78] sm:$0xff]
        %v1635 = vld [vmem:[%s499 + $0x80] sm:$0xff]
        %v1636 = vld [vmem:[%s499 + $0x88] sm:$0xff]
        %v1637 = vld [vmem:[%s499 + $0x90] sm:$0xff]
        %v1638 = vld [vmem:[%s499 + $0x98] sm:$0xff]
        %v1639 = vld [vmem:[%s499 + $0xa0] sm:$0xff]
        %v1640 = vld [vmem:[%s499 + $0xa8] sm:$0xff]
        %v1641 = vld [vmem:[%s499 + $0xb0] sm:$0xff]
        %v1642 = vld [vmem:[%s499 + $0xb8] sm:$0xff]
        %v1643 = vld [vmem:[%s499 + $0xc0] sm:$0xff]
        %v1644 = vld [vmem:[%s499 + $0xc8] sm:$0xff]
        %v1645 = vld [vmem:[%s499 + $0xd0] sm:$0xff]
        %v1646 = vld [vmem:[%s499 + $0xd8] sm:$0xff]
        %v1647 = vld [vmem:[%s499 + $0xe0] sm:$0xff]
        %v1648 = vld [vmem:[%s499 + $0xe8] sm:$0xff]
        %v1649 = vld [vmem:[%s499 + $0xf0] sm:$0xff]
        %v1650 = vld [vmem:[%s499 + $0xf8] sm:$0xff]
        %v1651 = vld [vmem:[%s499 + $0x100] sm:$0xff]
        %v1652 = vld [vmem:[%s499 + $0x108] sm:$0xff]
        %v1653 = vld [vmem:[%s499 + $0x110] sm:$0xff]
        %v1654 = vld [vmem:[%s499 + $0x118] sm:$0xff]
        %v1655 = vld [vmem:[%s499 + $0x120] sm:$0xff]
        %v1656 = vld [vmem:[%s499 + $0x128] sm:$0xff]
        %v1657 = vld [vmem:[%s499 + $0x130] sm:$0xff]
        %v1658 = vld [vmem:[%s499 + $0x138] sm:$0xff]
        %v1659 = vld [vmem:[%s499 + $0x140] sm:$0xff]
        %v1660 = vld [vmem:[%s499 + $0x148] sm:$0xff]
        %v1661 = vld [vmem:[%s499 + $0x150] sm:$0xff]
        %v1662 = vld [vmem:[%s499 + $0x158] sm:$0xff]
        %v1663 = vld [vmem:[%s499 + $0x160] sm:$0xff]
        %v1664 = vld [vmem:[%s499 + $0x168] sm:$0xff]
        %v1665 = vld [vmem:[%s499 + $0x170] sm:$0xff]
        %v1666 = vld [vmem:[%s499 + $0x178] sm:$0xff]
        %v1667 = vld [vmem:[%s499 + $0x180] sm:$0xff]
        %v1668 = vld [vmem:[%s499 + $0x188] sm:$0xff]
        %v1669 = vld [vmem:[%s499 + $0x190] sm:$0xff]
        %v1670 = vld [vmem:[%s499 + $0x198] sm:$0xff]
        %v1671 = vld [vmem:[%s499 + $0x1a0] sm:$0xff]
        %v1672 = vld [vmem:[%s499 + $0x1a8] sm:$0xff]
        %v1673 = vld [vmem:[%s499 + $0x1b0] sm:$0xff]
        %v1674 = vld [vmem:[%s499 + $0x1b8] sm:$0xff]
        %v1675 = vld [vmem:[%s499 + $0x1c0] sm:$0xff]
        %v1676 = vld [vmem:[%s499 + $0x1c8] sm:$0xff]
        %v1677 = vld [vmem:[%s499 + $0x1d0] sm:$0xff]
        %v1678 = vld [vmem:[%s499 + $0x1d8] sm:$0xff]
        %v1679 = vld [vmem:[%s499 + $0x1e0] sm:$0xff]
        %v1680 = vld [vmem:[%s499 + $0x1e8] sm:$0xff]
        %v1681 = vld [vmem:[%s499 + $0x1f0] sm:$0xff]
        %v1682 = vld [vmem:[%s499 + $0x1f8] sm:$0xff]
        %v1683 = vpack.c.bf16 %v1620, %v1619
        %v1684 = vpack.c.bf16 %v1622, %v1621
        %v1685 = vpack.c.bf16 %v1624, %v1623
        %v1686 = vpack.c.bf16 %v1626, %v1625
        %v1687 = vpack.c.bf16 %v1628, %v1627
        %v1688 = vpack.c.bf16 %v1630, %v1629
        %v1689 = vpack.c.bf16 %v1632, %v1631
        %v1690 = vpack.c.bf16 %v1634, %v1633
        %v1691 = vpack.c.bf16 %v1636, %v1635
        %v1692 = vpack.c.bf16 %v1638, %v1637
        %v1693 = vpack.c.bf16 %v1640, %v1639
        %v1694 = vpack.c.bf16 %v1642, %v1641
        %v1695 = vpack.c.bf16 %v1644, %v1643
        %v1696 = vpack.c.bf16 %v1646, %v1645
        %v1697 = vpack.c.bf16 %v1648, %v1647
        %v1698 = vpack.c.bf16 %v1650, %v1649
        %v1699 = vpack.c.bf16 %v1652, %v1651
        %v1700 = vpack.c.bf16 %v1654, %v1653
        %v1701 = vpack.c.bf16 %v1656, %v1655
        %v1702 = vpack.c.bf16 %v1658, %v1657
        %v1703 = vpack.c.bf16 %v1660, %v1659
        %v1704 = vpack.c.bf16 %v1662, %v1661
        %v1705 = vpack.c.bf16 %v1664, %v1663
        %v1706 = vpack.c.bf16 %v1666, %v1665
        %v1707 = vpack.c.bf16 %v1668, %v1667
        %v1708 = vpack.c.bf16 %v1670, %v1669
        %v1709 = vpack.c.bf16 %v1672, %v1671
        %v1710 = vpack.c.bf16 %v1674, %v1673
        %v1711 = vpack.c.bf16 %v1676, %v1675
        %v1712 = vpack.c.bf16 %v1678, %v1677
        %v1713 = vpack.c.bf16 %v1680, %v1679
        %v1714 = vpack.c.bf16 %v1682, %v1681
        %v1715 = vld [vmem:[%s6] sm:$0x3]
        %v1717 = vsel %vm607, %v1683, 0
        %v1720 = vsel %vm607, %v1684, 0
        %v1723 = vsel %vm607, %v1685, 0
        %v1726 = vsel %vm607, %v1686, 0
        %v1729 = vsel %vm607, %v1687, 0
        %v1732 = vsel %vm607, %v1688, 0
        %v1735 = vsel %vm607, %v1689, 0
        %v1738 = vsel %vm607, %v1690, 0
        %v1741 = vsel %vm607, %v1691, 0
        %v1744 = vsel %vm607, %v1692, 0
        %v1747 = vsel %vm607, %v1693, 0
        %v1750 = vsel %vm607, %v1694, 0
        %v1753 = vsel %vm607, %v1695, 0
        %v1756 = vsel %vm607, %v1696, 0
        %v1759 = vsel %vm607, %v1697, 0
        %v1762 = vsel %vm607, %v1698, 0
        %v1765 = vsel %vm607, %v1699, 0
        %v1768 = vsel %vm607, %v1700, 0
        %v1771 = vsel %vm607, %v1701, 0
        %v1774 = vsel %vm607, %v1702, 0
        %v1777 = vsel %vm607, %v1703, 0
        %v1780 = vsel %vm607, %v1704, 0
        %v1783 = vsel %vm607, %v1705, 0
        %v1786 = vsel %vm607, %v1706, 0
        %v1789 = vsel %vm607, %v1707, 0
        %v1792 = vsel %vm607, %v1708, 0
        %v1795 = vsel %vm607, %v1709, 0
        %v1798 = vsel %vm607, %v1710, 0
        %v1801 = vsel %vm607, %v1711, 0
        %v1804 = vsel %vm607, %v1712, 0
        %v1807 = vsel %vm607, %v1713, 0
        %v1810 = vsel %vm607, %v1714, 0
        %v1813 = vand.u32 %v1715, %v707
        %1815 = vmatprep.subr.bf16.mxu0 0
        %1816 = vmatpush1.bf16.msra.mxu0 0
        %1817 = vmatprep.subr.bf16.mxu0 0
        %1818 = vmatpush1.bf16.msra.mxu0 0
        %1819 = vmatprep.subr.bf16.mxu0 0
        %1820 = vmatpush1.bf16.msra.mxu0 0
        %1821 = vmatprep.subr.bf16.mxu0 0
        %1822 = vmatpush1.bf16.msra.mxu0 0
        %1823 = vmatprep.subr.bf16.mxu0 0
        %1824 = vmatpush1.bf16.msra.mxu0 0
        %1825 = vmatprep.subr.bf16.mxu0 0
        %1826 = vmatpush1.bf16.msra.mxu0 0
        %1827 = vmatprep.subr.bf16.mxu0 0
        %1828 = vmatpush1.bf16.msra.mxu0 0
        %1829 = vmatprep.subr.bf16.mxu0 0
        %1830 = vmatpush1.bf16.msra.mxu0 %v1813
        %1831 = vmatprep.subr.bf16.mxu0 0
        %1832 = vmatpush2.bf16.msra.mxu0 0
        %1833 = vmatprep.subr.bf16.mxu0 0
        %1834 = vmatpush2.bf16.msra.mxu0 0
        %1835 = vmatprep.subr.bf16.mxu0 0
        %1836 = vmatpush2.bf16.msra.mxu0 0
        %1837 = vmatprep.subr.bf16.mxu0 0
        %1838 = vmatpush2.bf16.msra.mxu0 0
        %1839 = vmatprep.subr.bf16.mxu0 0
        %1840 = vmatpush2.bf16.msra.mxu0 0
        %1841 = vmatprep.subr.bf16.mxu0 0
        %1842 = vmatpush2.bf16.msra.mxu0 0
        %1843 = vmatprep.subr.bf16.mxu0 0
        %1844 = vmatpush2.bf16.msra.mxu0 0
        %1845 = vmatprep.subr.bf16.mxu0 0
        %1846 = vmatpush2.bf16.msra.mxu0 0
        %1847 = vmatprep.mubr.bf16.mxu0 0
        %1848 = vmatmul.mubr.bf16.gmra.mxu0 %v1717
        %v1849 = vpop.f32.mrf.mxu0
        %v1850 = vadd.f32 0.0, %v1849
        %v1851 = vpop.f32.mrf.mxu0
        %v1852 = vpop.f32.mrf.mxu0
        %v1853 = vadd.f32 0.0, %v1852
        %v1854 = vpop.f32.mrf.mxu0
        %1855 = vmatprep.mubr.bf16.mxu0 0
        %1856 = vmatmul.mubr.bf16.gmra.mxu0 %v1720
        %v1857 = vpop.f32.mrf.mxu0
        %v1858 = vadd.f32 0.0, %v1857
        %v1859 = vpop.f32.mrf.mxu0
        %v1860 = vpop.f32.mrf.mxu0
        %v1861 = vadd.f32 0.0, %v1860
        %v1862 = vpop.f32.mrf.mxu0
        %1863 = vmatprep.mubr.bf16.mxu0 0
        %1864 = vmatmul.mubr.bf16.gmra.mxu0 %v1723
        %v1865 = vpop.f32.mrf.mxu0
        %v1866 = vadd.f32 0.0, %v1865
        %v1867 = vpop.f32.mrf.mxu0
        %v1868 = vpop.f32.mrf.mxu0
        %v1869 = vadd.f32 0.0, %v1868
        %v1870 = vpop.f32.mrf.mxu0
        %1871 = vmatprep.mubr.bf16.mxu0 0
        %1872 = vmatmul.mubr.bf16.gmra.mxu0 %v1726
        %v1873 = vpop.f32.mrf.mxu0
        %v1874 = vadd.f32 0.0, %v1873
        %v1875 = vpop.f32.mrf.mxu0
        %v1876 = vpop.f32.mrf.mxu0
        %v1877 = vadd.f32 0.0, %v1876
        %v1878 = vpop.f32.mrf.mxu0
        %1879 = vmatprep.mubr.bf16.mxu0 0
        %1880 = vmatmul.mubr.bf16.gmra.mxu0 %v1729
        %v1881 = vpop.f32.mrf.mxu0
        %v1882 = vadd.f32 0.0, %v1881
        %v1883 = vpop.f32.mrf.mxu0
        %v1884 = vpop.f32.mrf.mxu0
        %v1885 = vadd.f32 0.0, %v1884
        %v1886 = vpop.f32.mrf.mxu0
        %1887 = vmatprep.mubr.bf16.mxu0 0
        %1888 = vmatmul.mubr.bf16.gmra.mxu0 %v1732
        %v1889 = vpop.f32.mrf.mxu0
        %v1890 = vadd.f32 0.0, %v1889
        %v1891 = vpop.f32.mrf.mxu0
        %v1892 = vpop.f32.mrf.mxu0
        %v1893 = vadd.f32 0.0, %v1892
        %v1894 = vpop.f32.mrf.mxu0
        %1895 = vmatprep.mubr.bf16.mxu0 0
        %1896 = vmatmul.mubr.bf16.gmra.mxu0 %v1735
        %v1897 = vpop.f32.mrf.mxu0
        %v1898 = vadd.f32 0.0, %v1897
        %v1899 = vpop.f32.mrf.mxu0
        %v1900 = vpop.f32.mrf.mxu0
        %v1901 = vadd.f32 0.0, %v1900
        %v1902 = vpop.f32.mrf.mxu0
        %1903 = vmatprep.mubr.bf16.mxu0 0
        %1904 = vmatmul.mubr.bf16.gmra.mxu0 %v1738
        %v1905 = vpop.f32.mrf.mxu0
        %v1906 = vadd.f32 0.0, %v1905
        %v1907 = vpop.f32.mrf.mxu0
        %v1908 = vpop.f32.mrf.mxu0
        %v1909 = vadd.f32 0.0, %v1908
        %v1910 = vpop.f32.mrf.mxu0
        %1911 = vmatprep.mubr.bf16.mxu0 0
        %1912 = vmatmul.mubr.bf16.gmra.mxu0 %v1741
        %v1913 = vpop.f32.mrf.mxu0
        %v1914 = vadd.f32 0.0, %v1913
        %v1915 = vpop.f32.mrf.mxu0
        %v1916 = vpop.f32.mrf.mxu0
        %v1917 = vadd.f32 0.0, %v1916
        %v1918 = vpop.f32.mrf.mxu0
        %1919 = vmatprep.mubr.bf16.mxu0 0
        %1920 = vmatmul.mubr.bf16.gmra.mxu0 %v1744
        %v1921 = vpop.f32.mrf.mxu0
        %v1922 = vadd.f32 0.0, %v1921
        %v1923 = vpop.f32.mrf.mxu0
        %v1924 = vpop.f32.mrf.mxu0
        %v1925 = vadd.f32 0.0, %v1924
        %v1926 = vpop.f32.mrf.mxu0
        %1927 = vmatprep.mubr.bf16.mxu0 0
        %1928 = vmatmul.mubr.bf16.gmra.mxu0 %v1747
        %v1929 = vpop.f32.mrf.mxu0
        %v1930 = vadd.f32 0.0, %v1929
        %v1931 = vpop.f32.mrf.mxu0
        %v1932 = vpop.f32.mrf.mxu0
        %v1933 = vadd.f32 0.0, %v1932
        %v1934 = vpop.f32.mrf.mxu0
        %1935 = vmatprep.mubr.bf16.mxu0 0
        %1936 = vmatmul.mubr.bf16.gmra.mxu0 %v1750
        %v1937 = vpop.f32.mrf.mxu0
        %v1938 = vadd.f32 0.0, %v1937
        %v1939 = vpop.f32.mrf.mxu0
        %v1940 = vpop.f32.mrf.mxu0
        %v1941 = vadd.f32 0.0, %v1940
        %v1942 = vpop.f32.mrf.mxu0
        %1943 = vmatprep.mubr.bf16.mxu0 0
        %1944 = vmatmul.mubr.bf16.gmra.mxu0 %v1753
        %v1945 = vpop.f32.mrf.mxu0
        %v1946 = vadd.f32 0.0, %v1945
        %v1947 = vpop.f32.mrf.mxu0
        %v1948 = vpop.f32.mrf.mxu0
        %v1949 = vadd.f32 0.0, %v1948
        %v1950 = vpop.f32.mrf.mxu0
        %1951 = vmatprep.mubr.bf16.mxu0 0
        %1952 = vmatmul.mubr.bf16.gmra.mxu0 %v1756
        %v1953 = vpop.f32.mrf.mxu0
        %v1954 = vadd.f32 0.0, %v1953
        %v1955 = vpop.f32.mrf.mxu0
        %v1956 = vpop.f32.mrf.mxu0
        %v1957 = vadd.f32 0.0, %v1956
        %v1958 = vpop.f32.mrf.mxu0
        %1959 = vmatprep.mubr.bf16.mxu0 0
        %1960 = vmatmul.mubr.bf16.gmra.mxu0 %v1759
        %v1961 = vpop.f32.mrf.mxu0
        %v1962 = vadd.f32 0.0, %v1961
        %v1963 = vpop.f32.mrf.mxu0
        %v1964 = vpop.f32.mrf.mxu0
        %v1965 = vadd.f32 0.0, %v1964
        %v1966 = vpop.f32.mrf.mxu0
        %1967 = vmatprep.mubr.bf16.mxu0 0
        %1968 = vmatmul.mubr.bf16.gmra.mxu0 %v1762
        %v1969 = vpop.f32.mrf.mxu0
        %v1970 = vadd.f32 0.0, %v1969
        %v1971 = vpop.f32.mrf.mxu0
        %v1972 = vpop.f32.mrf.mxu0
        %v1973 = vadd.f32 0.0, %v1972
        %v1974 = vpop.f32.mrf.mxu0
        %1975 = vmatprep.mubr.bf16.mxu0 0
        %1976 = vmatmul.mubr.bf16.gmra.mxu0 %v1765
        %v1977 = vpop.f32.mrf.mxu0
        %v1978 = vadd.f32 0.0, %v1977
        %v1979 = vpop.f32.mrf.mxu0
        %v1980 = vpop.f32.mrf.mxu0
        %v1981 = vadd.f32 0.0, %v1980
        %v1982 = vpop.f32.mrf.mxu0
        %1983 = vmatprep.mubr.bf16.mxu0 0
        %1984 = vmatmul.mubr.bf16.gmra.mxu0 %v1768
        %v1985 = vpop.f32.mrf.mxu0
        %v1986 = vadd.f32 0.0, %v1985
        %v1987 = vpop.f32.mrf.mxu0
        %v1988 = vpop.f32.mrf.mxu0
        %v1989 = vadd.f32 0.0, %v1988
        %v1990 = vpop.f32.mrf.mxu0
        %1991 = vmatprep.mubr.bf16.mxu0 0
        %1992 = vmatmul.mubr.bf16.gmra.mxu0 %v1771
        %v1993 = vpop.f32.mrf.mxu0
        %v1994 = vadd.f32 0.0, %v1993
        %v1995 = vpop.f32.mrf.mxu0
        %v1996 = vpop.f32.mrf.mxu0
        %v1997 = vadd.f32 0.0, %v1996
        %v1998 = vpop.f32.mrf.mxu0
        %1999 = vmatprep.mubr.bf16.mxu0 0
        %2000 = vmatmul.mubr.bf16.gmra.mxu0 %v1774
        %v2001 = vpop.f32.mrf.mxu0
        %v2002 = vadd.f32 0.0, %v2001
        %v2003 = vpop.f32.mrf.mxu0
        %v2004 = vpop.f32.mrf.mxu0
        %v2005 = vadd.f32 0.0, %v2004
        %v2006 = vpop.f32.mrf.mxu0
        %2007 = vmatprep.mubr.bf16.mxu0 0
        %2008 = vmatmul.mubr.bf16.gmra.mxu0 %v1777
        %v2009 = vpop.f32.mrf.mxu0
        %v2010 = vadd.f32 0.0, %v2009
        %v2011 = vpop.f32.mrf.mxu0
        %v2012 = vpop.f32.mrf.mxu0
        %v2013 = vadd.f32 0.0, %v2012
        %v2014 = vpop.f32.mrf.mxu0
        %2015 = vmatprep.mubr.bf16.mxu0 0
        %2016 = vmatmul.mubr.bf16.gmra.mxu0 %v1780
        %v2017 = vpop.f32.mrf.mxu0
        %v2018 = vadd.f32 0.0, %v2017
        %v2019 = vpop.f32.mrf.mxu0
        %v2020 = vpop.f32.mrf.mxu0
        %v2021 = vadd.f32 0.0, %v2020
        %v2022 = vpop.f32.mrf.mxu0
        %2023 = vmatprep.mubr.bf16.mxu0 0
        %2024 = vmatmul.mubr.bf16.gmra.mxu0 %v1783
        %v2025 = vpop.f32.mrf.mxu0
        %v2026 = vadd.f32 0.0, %v2025
        %v2027 = vpop.f32.mrf.mxu0
        %v2028 = vpop.f32.mrf.mxu0
        %v2029 = vadd.f32 0.0, %v2028
        %v2030 = vpop.f32.mrf.mxu0
        %2031 = vmatprep.mubr.bf16.mxu0 0
        %2032 = vmatmul.mubr.bf16.gmra.mxu0 %v1786
        %v2033 = vpop.f32.mrf.mxu0
        %v2034 = vadd.f32 0.0, %v2033
        %v2035 = vpop.f32.mrf.mxu0
        %v2036 = vpop.f32.mrf.mxu0
        %v2037 = vadd.f32 0.0, %v2036
        %v2038 = vpop.f32.mrf.mxu0
        %2039 = vmatprep.mubr.bf16.mxu0 0
        %2040 = vmatmul.mubr.bf16.gmra.mxu0 %v1789
        %v2041 = vpop.f32.mrf.mxu0
        %v2042 = vadd.f32 0.0, %v2041
        %v2043 = vpop.f32.mrf.mxu0
        %v2044 = vpop.f32.mrf.mxu0
        %v2045 = vadd.f32 0.0, %v2044
        %v2046 = vpop.f32.mrf.mxu0
        %2047 = vmatprep.mubr.bf16.mxu0 0
        %2048 = vmatmul.mubr.bf16.gmra.mxu0 %v1792
        %v2049 = vpop.f32.mrf.mxu0
        %v2050 = vadd.f32 0.0, %v2049
        %v2051 = vpop.f32.mrf.mxu0
        %v2052 = vpop.f32.mrf.mxu0
        %v2053 = vadd.f32 0.0, %v2052
        %v2054 = vpop.f32.mrf.mxu0
        %2055 = vmatprep.mubr.bf16.mxu0 0
        %2056 = vmatmul.mubr.bf16.gmra.mxu0 %v1795
        %v2057 = vpop.f32.mrf.mxu0
        %v2058 = vadd.f32 0.0, %v2057
        %v2059 = vpop.f32.mrf.mxu0
        %v2060 = vpop.f32.mrf.mxu0
        %v2061 = vadd.f32 0.0, %v2060
        %v2062 = vpop.f32.mrf.mxu0
        %2063 = vmatprep.mubr.bf16.mxu0 0
        %2064 = vmatmul.mubr.bf16.gmra.mxu0 %v1798
        %v2065 = vpop.f32.mrf.mxu0
        %v2066 = vadd.f32 0.0, %v2065
        %v2067 = vpop.f32.mrf.mxu0
        %v2068 = vpop.f32.mrf.mxu0
        %v2069 = vadd.f32 0.0, %v2068
        %v2070 = vpop.f32.mrf.mxu0
        %2071 = vmatprep.mubr.bf16.mxu0 0
        %2072 = vmatmul.mubr.bf16.gmra.mxu0 %v1801
        %v2073 = vpop.f32.mrf.mxu0
        %v2074 = vadd.f32 0.0, %v2073
        %v2075 = vpop.f32.mrf.mxu0
        %v2076 = vpop.f32.mrf.mxu0
        %v2077 = vadd.f32 0.0, %v2076
        %v2078 = vpop.f32.mrf.mxu0
        %2079 = vmatprep.mubr.bf16.mxu0 0
        %2080 = vmatmul.mubr.bf16.gmra.mxu0 %v1804
        %v2081 = vpop.f32.mrf.mxu0
        %v2082 = vadd.f32 0.0, %v2081
        %v2083 = vpop.f32.mrf.mxu0
        %v2084 = vpop.f32.mrf.mxu0
        %v2085 = vadd.f32 0.0, %v2084
        %v2086 = vpop.f32.mrf.mxu0
        %2087 = vmatprep.mubr.bf16.mxu0 0
        %2088 = vmatmul.mubr.bf16.gmra.mxu0 %v1807
        %v2089 = vpop.f32.mrf.mxu0
        %v2090 = vadd.f32 0.0, %v2089
        %v2091 = vpop.f32.mrf.mxu0
        %v2092 = vpop.f32.mrf.mxu0
        %v2093 = vadd.f32 0.0, %v2092
        %v2094 = vpop.f32.mrf.mxu0
        %2095 = vmatprep.mubr.bf16.mxu0 0
        %2096 = vmatmul.mubr.bf16.gmra.mxu0 %v1810
        %v2097 = vpop.f32.mrf.mxu0
        %v2098 = vadd.f32 0.0, %v2097
        %v2099 = vpop.f32.mrf.mxu0
        %v2100 = vpop.f32.mrf.mxu0
        %v2101 = vadd.f32 0.0, %v2100
        %v2102 = vpop.f32.mrf.mxu0
        %2103 = vdwg.mxu0
        %v2104 = vadd.f32 %v1555, %v1850
        %v2105 = vadd.f32 %v1556, %v1853
        %v2106 = vadd.f32 %v1557, %v1858
        %v2107 = vadd.f32 %v1558, %v1861
        %v2108 = vadd.f32 %v1559, %v1866
        %v2109 = vadd.f32 %v1560, %v1869
        %v2110 = vadd.f32 %v1561, %v1874
        %v2111 = vadd.f32 %v1562, %v1877
        %v2112 = vadd.f32 %v1563, %v1882
        %v2113 = vadd.f32 %v1564, %v1885
        %v2114 = vadd.f32 %v1565, %v1890
        %v2115 = vadd.f32 %v1566, %v1893
        %v2116 = vadd.f32 %v1567, %v1898
        %v2117 = vadd.f32 %v1568, %v1901
        %v2118 = vadd.f32 %v1569, %v1906
        %v2119 = vadd.f32 %v1570, %v1909
        %v2120 = vadd.f32 %v1571, %v1914
        %v2121 = vadd.f32 %v1572, %v1917
        %v2122 = vadd.f32 %v1573, %v1922
        %v2123 = vadd.f32 %v1574, %v1925
        %v2124 = vadd.f32 %v1575, %v1930
        %v2125 = vadd.f32 %v1576, %v1933
        %v2126 = vadd.f32 %v1577, %v1938
        %v2127 = vadd.f32 %v1578, %v1941
        %v2128 = vadd.f32 %v1579, %v1946
        %v2129 = vadd.f32 %v1580, %v1949
        %v2130 = vadd.f32 %v1581, %v1954
        %v2131 = vadd.f32 %v1582, %v1957
        %v2132 = vadd.f32 %v1583, %v1962
        %v2133 = vadd.f32 %v1584, %v1965
        %v2134 = vadd.f32 %v1585, %v1970
        %v2135 = vadd.f32 %v1586, %v1973
        %v2136 = vadd.f32 %v1587, %v1978
        %v2137 = vadd.f32 %v1588, %v1981
        %v2138 = vadd.f32 %v1589, %v1986
        %v2139 = vadd.f32 %v1590, %v1989
        %v2140 = vadd.f32 %v1591, %v1994
        %v2141 = vadd.f32 %v1592, %v1997
        %v2142 = vadd.f32 %v1593, %v2002
        %v2143 = vadd.f32 %v1594, %v2005
        %v2144 = vadd.f32 %v1595, %v2010
        %v2145 = vadd.f32 %v1596, %v2013
        %v2146 = vadd.f32 %v1597, %v2018
        %v2147 = vadd.f32 %v1598, %v2021
        %v2148 = vadd.f32 %v1599, %v2026
        %v2149 = vadd.f32 %v1600, %v2029
        %v2150 = vadd.f32 %v1601, %v2034
        %v2151 = vadd.f32 %v1602, %v2037
        %v2152 = vadd.f32 %v1603, %v2042
        %v2153 = vadd.f32 %v1604, %v2045
        %v2154 = vadd.f32 %v1605, %v2050
        %v2155 = vadd.f32 %v1606, %v2053
        %v2156 = vadd.f32 %v1607, %v2058
        %v2157 = vadd.f32 %v1608, %v2061
        %v2158 = vadd.f32 %v1609, %v2066
        %v2159 = vadd.f32 %v1610, %v2069
        %v2160 = vadd.f32 %v1611, %v2074
        %v2161 = vadd.f32 %v1612, %v2077
        %v2162 = vadd.f32 %v1613, %v2082
        %v2163 = vadd.f32 %v1614, %v2085
        %v2164 = vadd.f32 %v1615, %v2090
        %v2165 = vadd.f32 %v1616, %v2093
        %v2166 = vadd.f32 %v1617, %v2098
        %v2167 = vadd.f32 %v1618, %v2101
        %v2168 = vld [vmem:[%s505] sm:$0xff]
        %v2169 = vld [vmem:[%s505 + $0x8] sm:$0xff]
        %v2170 = vld [vmem:[%s505 + $0x10] sm:$0xff]
        %v2171 = vld [vmem:[%s505 + $0x18] sm:$0xff]
        %v2172 = vld [vmem:[%s505 + $0x20] sm:$0xff]
        %v2173 = vld [vmem:[%s505 + $0x28] sm:$0xff]
        %v2174 = vld [vmem:[%s505 + $0x30] sm:$0xff]
        %v2175 = vld [vmem:[%s505 + $0x38] sm:$0xff]
        %v2176 = vld [vmem:[%s505 + $0x40] sm:$0xff]
        %v2177 = vld [vmem:[%s505 + $0x48] sm:$0xff]
        %v2178 = vld [vmem:[%s505 + $0x50] sm:$0xff]
        %v2179 = vld [vmem:[%s505 + $0x58] sm:$0xff]
        %v2180 = vld [vmem:[%s505 + $0x60] sm:$0xff]
        %v2181 = vld [vmem:[%s505 + $0x68] sm:$0xff]
        %v2182 = vld [vmem:[%s505 + $0x70] sm:$0xff]
        %v2183 = vld [vmem:[%s505 + $0x78] sm:$0xff]
        %v2184 = vld [vmem:[%s505 + $0x80] sm:$0xff]
        %v2185 = vld [vmem:[%s505 + $0x88] sm:$0xff]
        %v2186 = vld [vmem:[%s505 + $0x90] sm:$0xff]
        %v2187 = vld [vmem:[%s505 + $0x98] sm:$0xff]
        %v2188 = vld [vmem:[%s505 + $0xa0] sm:$0xff]
        %v2189 = vld [vmem:[%s505 + $0xa8] sm:$0xff]
        %v2190 = vld [vmem:[%s505 + $0xb0] sm:$0xff]
        %v2191 = vld [vmem:[%s505 + $0xb8] sm:$0xff]
        %v2192 = vld [vmem:[%s505 + $0xc0] sm:$0xff]
        %v2193 = vld [vmem:[%s505 + $0xc8] sm:$0xff]
        %v2194 = vld [vmem:[%s505 + $0xd0] sm:$0xff]
        %v2195 = vld [vmem:[%s505 + $0xd8] sm:$0xff]
        %v2196 = vld [vmem:[%s505 + $0xe0] sm:$0xff]
        %v2197 = vld [vmem:[%s505 + $0xe8] sm:$0xff]
        %v2198 = vld [vmem:[%s505 + $0xf0] sm:$0xff]
        %v2199 = vld [vmem:[%s505 + $0xf8] sm:$0xff]
        %v2200 = vld [vmem:[%s505 + $0x100] sm:$0xff]
        %v2201 = vld [vmem:[%s505 + $0x108] sm:$0xff]
        %v2202 = vld [vmem:[%s505 + $0x110] sm:$0xff]
        %v2203 = vld [vmem:[%s505 + $0x118] sm:$0xff]
        %v2204 = vld [vmem:[%s505 + $0x120] sm:$0xff]
        %v2205 = vld [vmem:[%s505 + $0x128] sm:$0xff]
        %v2206 = vld [vmem:[%s505 + $0x130] sm:$0xff]
        %v2207 = vld [vmem:[%s505 + $0x138] sm:$0xff]
        %v2208 = vld [vmem:[%s505 + $0x140] sm:$0xff]
        %v2209 = vld [vmem:[%s505 + $0x148] sm:$0xff]
        %v2210 = vld [vmem:[%s505 + $0x150] sm:$0xff]
        %v2211 = vld [vmem:[%s505 + $0x158] sm:$0xff]
        %v2212 = vld [vmem:[%s505 + $0x160] sm:$0xff]
        %v2213 = vld [vmem:[%s505 + $0x168] sm:$0xff]
        %v2214 = vld [vmem:[%s505 + $0x170] sm:$0xff]
        %v2215 = vld [vmem:[%s505 + $0x178] sm:$0xff]
        %v2216 = vld [vmem:[%s505 + $0x180] sm:$0xff]
        %v2217 = vld [vmem:[%s505 + $0x188] sm:$0xff]
        %v2218 = vld [vmem:[%s505 + $0x190] sm:$0xff]
        %v2219 = vld [vmem:[%s505 + $0x198] sm:$0xff]
        %v2220 = vld [vmem:[%s505 + $0x1a0] sm:$0xff]
        %v2221 = vld [vmem:[%s505 + $0x1a8] sm:$0xff]
        %v2222 = vld [vmem:[%s505 + $0x1b0] sm:$0xff]
        %v2223 = vld [vmem:[%s505 + $0x1b8] sm:$0xff]
        %v2224 = vld [vmem:[%s505 + $0x1c0] sm:$0xff]
        %v2225 = vld [vmem:[%s505 + $0x1c8] sm:$0xff]
        %v2226 = vld [vmem:[%s505 + $0x1d0] sm:$0xff]
        %v2227 = vld [vmem:[%s505 + $0x1d8] sm:$0xff]
        %v2228 = vld [vmem:[%s505 + $0x1e0] sm:$0xff]
        %v2229 = vld [vmem:[%s505 + $0x1e8] sm:$0xff]
        %v2230 = vld [vmem:[%s505 + $0x1f0] sm:$0xff]
        %v2231 = vld [vmem:[%s505 + $0x1f8] sm:$0xff]
        %v2232 = vpack.c.bf16 %v2169, %v2168
        %v2233 = vpack.c.bf16 %v2171, %v2170
        %v2234 = vpack.c.bf16 %v2173, %v2172
        %v2235 = vpack.c.bf16 %v2175, %v2174
        %v2236 = vpack.c.bf16 %v2177, %v2176
        %v2237 = vpack.c.bf16 %v2179, %v2178
        %v2238 = vpack.c.bf16 %v2181, %v2180
        %v2239 = vpack.c.bf16 %v2183, %v2182
        %v2240 = vpack.c.bf16 %v2185, %v2184
        %v2241 = vpack.c.bf16 %v2187, %v2186
        %v2242 = vpack.c.bf16 %v2189, %v2188
        %v2243 = vpack.c.bf16 %v2191, %v2190
        %v2244 = vpack.c.bf16 %v2193, %v2192
        %v2245 = vpack.c.bf16 %v2195, %v2194
        %v2246 = vpack.c.bf16 %v2197, %v2196
        %v2247 = vpack.c.bf16 %v2199, %v2198
        %v2248 = vpack.c.bf16 %v2201, %v2200
        %v2249 = vpack.c.bf16 %v2203, %v2202
        %v2250 = vpack.c.bf16 %v2205, %v2204
        %v2251 = vpack.c.bf16 %v2207, %v2206
        %v2252 = vpack.c.bf16 %v2209, %v2208
        %v2253 = vpack.c.bf16 %v2211, %v2210
        %v2254 = vpack.c.bf16 %v2213, %v2212
        %v2255 = vpack.c.bf16 %v2215, %v2214
        %v2256 = vpack.c.bf16 %v2217, %v2216
        %v2257 = vpack.c.bf16 %v2219, %v2218
        %v2258 = vpack.c.bf16 %v2221, %v2220
        %v2259 = vpack.c.bf16 %v2223, %v2222
        %v2260 = vpack.c.bf16 %v2225, %v2224
        %v2261 = vpack.c.bf16 %v2227, %v2226
        %v2262 = vpack.c.bf16 %v2229, %v2228
        %v2263 = vpack.c.bf16 %v2231, %v2230
        %v2264 = vld [vmem:[%s7] sm:$0xf]
        %v2265 = vld [vmem:[%s7 + $0x4] sm:$0xf]
        %v2266 = vld [vmem:[%s7 + $0x8] sm:$0xf]
        %v2267 = vld [vmem:[%s7 + $0xc] sm:$0xf]
        %v2272 = vunpack.c.l.b16 %v2264
        %v2273 = vunpack.c.l.b16 %v2265
        %v2274 = vunpack.c.l.b16 %v2266
        %v2275 = vunpack.c.l.b16 %v2267
        %v2276 = vpack.c.b16 %v2273, %v2272
        %v2277 = vpack.c.b16 %v2275, %v2274
        %vm2280 = vcmask 261120
        %v2282 = vsel %vm2280, %v2232, 0
        %v2285 = vsel %vm2280, %v2233, 0
        %v2288 = vsel %vm2280, %v2234, 0
        %v2291 = vsel %vm2280, %v2235, 0
        %v2294 = vsel %vm2280, %v2236, 0
        %v2297 = vsel %vm2280, %v2237, 0
        %v2300 = vsel %vm2280, %v2238, 0
        %v2303 = vsel %vm2280, %v2239, 0
        %v2306 = vsel %vm2280, %v2240, 0
        %v2309 = vsel %vm2280, %v2241, 0
        %v2312 = vsel %vm2280, %v2242, 0
        %v2315 = vsel %vm2280, %v2243, 0
        %v2318 = vsel %vm2280, %v2244, 0
        %v2321 = vsel %vm2280, %v2245, 0
        %v2324 = vsel %vm2280, %v2246, 0
        %v2327 = vsel %vm2280, %v2247, 0
        %v2330 = vsel %vm2280, %v2248, 0
        %v2333 = vsel %vm2280, %v2249, 0
        %v2336 = vsel %vm2280, %v2250, 0
        %v2339 = vsel %vm2280, %v2251, 0
        %v2342 = vsel %vm2280, %v2252, 0
        %v2345 = vsel %vm2280, %v2253, 0
        %v2348 = vsel %vm2280, %v2254, 0
        %v2351 = vsel %vm2280, %v2255, 0
        %v2354 = vsel %vm2280, %v2256, 0
        %v2357 = vsel %vm2280, %v2257, 0
        %v2360 = vsel %vm2280, %v2258, 0
        %v2363 = vsel %vm2280, %v2259, 0
        %v2366 = vsel %vm2280, %v2260, 0
        %v2369 = vsel %vm2280, %v2261, 0
        %v2372 = vsel %vm2280, %v2262, 0
        %v2375 = vsel %vm2280, %v2263, 0
        %2377 = vmatprep.subr.bf16.mxu0 0
        %2378 = vmatpush1.bf16.msra.mxu0 0
        %2379 = vmatprep.subr.bf16.mxu0 0
        %2380 = vmatpush1.bf16.msra.mxu0 0
        %2381 = vmatprep.subr.bf16.mxu0 0
        %2382 = vmatpush1.bf16.msra.mxu0 0
        %2383 = vmatprep.subr.bf16.mxu0 0
        %2384 = vmatpush1.bf16.msra.mxu0 0
        %2385 = vmatprep.subr.bf16.mxu0 0
        %2386 = vmatpush1.bf16.msra.mxu0 0
        %2387 = vmatprep.subr.bf16.mxu0 0
        %2388 = vmatpush1.bf16.msra.mxu0 0
        %2389 = vmatprep.subr.bf16.mxu0 0
        %2390 = vmatpush1.bf16.msra.mxu0 %v2277
        %2391 = vmatprep.subr.bf16.mxu0 0
        %2392 = vmatpush1.bf16.msra.mxu0 %v2276
        %2393 = vmatprep.subr.bf16.mxu0 0
        %2394 = vmatpush2.bf16.msra.mxu0 0
        %2395 = vmatprep.subr.bf16.mxu0 0
        %2396 = vmatpush2.bf16.msra.mxu0 0
        %2397 = vmatprep.subr.bf16.mxu0 0
        %2398 = vmatpush2.bf16.msra.mxu0 0
        %2399 = vmatprep.subr.bf16.mxu0 0
        %2400 = vmatpush2.bf16.msra.mxu0 0
        %2401 = vmatprep.subr.bf16.mxu0 0
        %2402 = vmatpush2.bf16.msra.mxu0 0
        %2403 = vmatprep.subr.bf16.mxu0 0
        %2404 = vmatpush2.bf16.msra.mxu0 0
        %2405 = vmatprep.subr.bf16.mxu0 0
        %2406 = vmatpush2.bf16.msra.mxu0 0
        %2407 = vmatprep.subr.bf16.mxu0 0
        %2408 = vmatpush2.bf16.msra.mxu0 0
        %2409 = vmatprep.mubr.bf16.mxu0 0
        %2410 = vmatmul.mubr.bf16.gmra.mxu0 %v2282
        %v2411 = vpop.f32.mrf.mxu0
        %v2412 = vadd.f32 0.0, %v2411
        %v2413 = vpop.f32.mrf.mxu0
        %v2414 = vpop.f32.mrf.mxu0
        %v2415 = vadd.f32 0.0, %v2414
        %v2416 = vpop.f32.mrf.mxu0
        %2417 = vmatprep.mubr.bf16.mxu0 0
        %2418 = vmatmul.mubr.bf16.gmra.mxu0 %v2285
        %v2419 = vpop.f32.mrf.mxu0
        %v2420 = vadd.f32 0.0, %v2419
        %v2421 = vpop.f32.mrf.mxu0
        %v2422 = vpop.f32.mrf.mxu0
        %v2423 = vadd.f32 0.0, %v2422
        %v2424 = vpop.f32.mrf.mxu0
        %2425 = vmatprep.mubr.bf16.mxu0 0
        %2426 = vmatmul.mubr.bf16.gmra.mxu0 %v2288
        %v2427 = vpop.f32.mrf.mxu0
        %v2428 = vadd.f32 0.0, %v2427
        %v2429 = vpop.f32.mrf.mxu0
        %v2430 = vpop.f32.mrf.mxu0
        %v2431 = vadd.f32 0.0, %v2430
        %v2432 = vpop.f32.mrf.mxu0
        %2433 = vmatprep.mubr.bf16.mxu0 0
        %2434 = vmatmul.mubr.bf16.gmra.mxu0 %v2291
        %v2435 = vpop.f32.mrf.mxu0
        %v2436 = vadd.f32 0.0, %v2435
        %v2437 = vpop.f32.mrf.mxu0
        %v2438 = vpop.f32.mrf.mxu0
        %v2439 = vadd.f32 0.0, %v2438
        %v2440 = vpop.f32.mrf.mxu0
        %2441 = vmatprep.mubr.bf16.mxu0 0
        %2442 = vmatmul.mubr.bf16.gmra.mxu0 %v2294
        %v2443 = vpop.f32.mrf.mxu0
        %v2444 = vadd.f32 0.0, %v2443
        %v2445 = vpop.f32.mrf.mxu0
        %v2446 = vpop.f32.mrf.mxu0
        %v2447 = vadd.f32 0.0, %v2446
        %v2448 = vpop.f32.mrf.mxu0
        %2449 = vmatprep.mubr.bf16.mxu0 0
        %2450 = vmatmul.mubr.bf16.gmra.mxu0 %v2297
        %v2451 = vpop.f32.mrf.mxu0
        %v2452 = vadd.f32 0.0, %v2451
        %v2453 = vpop.f32.mrf.mxu0
        %v2454 = vpop.f32.mrf.mxu0
        %v2455 = vadd.f32 0.0, %v2454
        %v2456 = vpop.f32.mrf.mxu0
        %2457 = vmatprep.mubr.bf16.mxu0 0
        %2458 = vmatmul.mubr.bf16.gmra.mxu0 %v2300
        %v2459 = vpop.f32.mrf.mxu0
        %v2460 = vadd.f32 0.0, %v2459
        %v2461 = vpop.f32.mrf.mxu0
        %v2462 = vpop.f32.mrf.mxu0
        %v2463 = vadd.f32 0.0, %v2462
        %v2464 = vpop.f32.mrf.mxu0
        %2465 = vmatprep.mubr.bf16.mxu0 0
        %2466 = vmatmul.mubr.bf16.gmra.mxu0 %v2303
        %v2467 = vpop.f32.mrf.mxu0
        %v2468 = vadd.f32 0.0, %v2467
        %v2469 = vpop.f32.mrf.mxu0
        %v2470 = vpop.f32.mrf.mxu0
        %v2471 = vadd.f32 0.0, %v2470
        %v2472 = vpop.f32.mrf.mxu0
        %2473 = vmatprep.mubr.bf16.mxu0 0
        %2474 = vmatmul.mubr.bf16.gmra.mxu0 %v2306
        %v2475 = vpop.f32.mrf.mxu0
        %v2476 = vadd.f32 0.0, %v2475
        %v2477 = vpop.f32.mrf.mxu0
        %v2478 = vpop.f32.mrf.mxu0
        %v2479 = vadd.f32 0.0, %v2478
        %v2480 = vpop.f32.mrf.mxu0
        %2481 = vmatprep.mubr.bf16.mxu0 0
        %2482 = vmatmul.mubr.bf16.gmra.mxu0 %v2309
        %v2483 = vpop.f32.mrf.mxu0
        %v2484 = vadd.f32 0.0, %v2483
        %v2485 = vpop.f32.mrf.mxu0
        %v2486 = vpop.f32.mrf.mxu0
        %v2487 = vadd.f32 0.0, %v2486
        %v2488 = vpop.f32.mrf.mxu0
        %2489 = vmatprep.mubr.bf16.mxu0 0
        %2490 = vmatmul.mubr.bf16.gmra.mxu0 %v2312
        %v2491 = vpop.f32.mrf.mxu0
        %v2492 = vadd.f32 0.0, %v2491
        %v2493 = vpop.f32.mrf.mxu0
        %v2494 = vpop.f32.mrf.mxu0
        %v2495 = vadd.f32 0.0, %v2494
        %v2496 = vpop.f32.mrf.mxu0
        %2497 = vmatprep.mubr.bf16.mxu0 0
        %2498 = vmatmul.mubr.bf16.gmra.mxu0 %v2315
        %v2499 = vpop.f32.mrf.mxu0
        %v2500 = vadd.f32 0.0, %v2499
        %v2501 = vpop.f32.mrf.mxu0
        %v2502 = vpop.f32.mrf.mxu0
        %v2503 = vadd.f32 0.0, %v2502
        %v2504 = vpop.f32.mrf.mxu0
        %2505 = vmatprep.mubr.bf16.mxu0 0
        %2506 = vmatmul.mubr.bf16.gmra.mxu0 %v2318
        %v2507 = vpop.f32.mrf.mxu0
        %v2508 = vadd.f32 0.0, %v2507
        %v2509 = vpop.f32.mrf.mxu0
        %v2510 = vpop.f32.mrf.mxu0
        %v2511 = vadd.f32 0.0, %v2510
        %v2512 = vpop.f32.mrf.mxu0
        %2513 = vmatprep.mubr.bf16.mxu0 0
        %2514 = vmatmul.mubr.bf16.gmra.mxu0 %v2321
        %v2515 = vpop.f32.mrf.mxu0
        %v2516 = vadd.f32 0.0, %v2515
        %v2517 = vpop.f32.mrf.mxu0
        %v2518 = vpop.f32.mrf.mxu0
        %v2519 = vadd.f32 0.0, %v2518
        %v2520 = vpop.f32.mrf.mxu0
        %2521 = vmatprep.mubr.bf16.mxu0 0
        %2522 = vmatmul.mubr.bf16.gmra.mxu0 %v2324
        %v2523 = vpop.f32.mrf.mxu0
        %v2524 = vadd.f32 0.0, %v2523
        %v2525 = vpop.f32.mrf.mxu0
        %v2526 = vpop.f32.mrf.mxu0
        %v2527 = vadd.f32 0.0, %v2526
        %v2528 = vpop.f32.mrf.mxu0
        %2529 = vmatprep.mubr.bf16.mxu0 0
        %2530 = vmatmul.mubr.bf16.gmra.mxu0 %v2327
        %v2531 = vpop.f32.mrf.mxu0
        %v2532 = vadd.f32 0.0, %v2531
        %v2533 = vpop.f32.mrf.mxu0
        %v2534 = vpop.f32.mrf.mxu0
        %v2535 = vadd.f32 0.0, %v2534
        %v2536 = vpop.f32.mrf.mxu0
        %2537 = vmatprep.mubr.bf16.mxu0 0
        %2538 = vmatmul.mubr.bf16.gmra.mxu0 %v2330
        %v2539 = vpop.f32.mrf.mxu0
        %v2540 = vadd.f32 0.0, %v2539
        %v2541 = vpop.f32.mrf.mxu0
        %v2542 = vpop.f32.mrf.mxu0
        %v2543 = vadd.f32 0.0, %v2542
        %v2544 = vpop.f32.mrf.mxu0
        %2545 = vmatprep.mubr.bf16.mxu0 0
        %2546 = vmatmul.mubr.bf16.gmra.mxu0 %v2333
        %v2547 = vpop.f32.mrf.mxu0
        %v2548 = vadd.f32 0.0, %v2547
        %v2549 = vpop.f32.mrf.mxu0
        %v2550 = vpop.f32.mrf.mxu0
        %v2551 = vadd.f32 0.0, %v2550
        %v2552 = vpop.f32.mrf.mxu0
        %2553 = vmatprep.mubr.bf16.mxu0 0
        %2554 = vmatmul.mubr.bf16.gmra.mxu0 %v2336
        %v2555 = vpop.f32.mrf.mxu0
        %v2556 = vadd.f32 0.0, %v2555
        %v2557 = vpop.f32.mrf.mxu0
        %v2558 = vpop.f32.mrf.mxu0
        %v2559 = vadd.f32 0.0, %v2558
        %v2560 = vpop.f32.mrf.mxu0
        %2561 = vmatprep.mubr.bf16.mxu0 0
        %2562 = vmatmul.mubr.bf16.gmra.mxu0 %v2339
        %v2563 = vpop.f32.mrf.mxu0
        %v2564 = vadd.f32 0.0, %v2563
        %v2565 = vpop.f32.mrf.mxu0
        %v2566 = vpop.f32.mrf.mxu0
        %v2567 = vadd.f32 0.0, %v2566
        %v2568 = vpop.f32.mrf.mxu0
        %2569 = vmatprep.mubr.bf16.mxu0 0
        %2570 = vmatmul.mubr.bf16.gmra.mxu0 %v2342
        %v2571 = vpop.f32.mrf.mxu0
        %v2572 = vadd.f32 0.0, %v2571
        %v2573 = vpop.f32.mrf.mxu0
        %v2574 = vpop.f32.mrf.mxu0
        %v2575 = vadd.f32 0.0, %v2574
        %v2576 = vpop.f32.mrf.mxu0
        %2577 = vmatprep.mubr.bf16.mxu0 0
        %2578 = vmatmul.mubr.bf16.gmra.mxu0 %v2345
        %v2579 = vpop.f32.mrf.mxu0
        %v2580 = vadd.f32 0.0, %v2579
        %v2581 = vpop.f32.mrf.mxu0
        %v2582 = vpop.f32.mrf.mxu0
        %v2583 = vadd.f32 0.0, %v2582
        %v2584 = vpop.f32.mrf.mxu0
        %2585 = vmatprep.mubr.bf16.mxu0 0
        %2586 = vmatmul.mubr.bf16.gmra.mxu0 %v2348
        %v2587 = vpop.f32.mrf.mxu0
        %v2588 = vadd.f32 0.0, %v2587
        %v2589 = vpop.f32.mrf.mxu0
        %v2590 = vpop.f32.mrf.mxu0
        %v2591 = vadd.f32 0.0, %v2590
        %v2592 = vpop.f32.mrf.mxu0
        %2593 = vmatprep.mubr.bf16.mxu0 0
        %2594 = vmatmul.mubr.bf16.gmra.mxu0 %v2351
        %v2595 = vpop.f32.mrf.mxu0
        %v2596 = vadd.f32 0.0, %v2595
        %v2597 = vpop.f32.mrf.mxu0
        %v2598 = vpop.f32.mrf.mxu0
        %v2599 = vadd.f32 0.0, %v2598
        %v2600 = vpop.f32.mrf.mxu0
        %2601 = vmatprep.mubr.bf16.mxu0 0
        %2602 = vmatmul.mubr.bf16.gmra.mxu0 %v2354
        %v2603 = vpop.f32.mrf.mxu0
        %v2604 = vadd.f32 0.0, %v2603
        %v2605 = vpop.f32.mrf.mxu0
        %v2606 = vpop.f32.mrf.mxu0
        %v2607 = vadd.f32 0.0, %v2606
        %v2608 = vpop.f32.mrf.mxu0
        %2609 = vmatprep.mubr.bf16.mxu0 0
        %2610 = vmatmul.mubr.bf16.gmra.mxu0 %v2357
        %v2611 = vpop.f32.mrf.mxu0
        %v2612 = vadd.f32 0.0, %v2611
        %v2613 = vpop.f32.mrf.mxu0
        %v2614 = vpop.f32.mrf.mxu0
        %v2615 = vadd.f32 0.0, %v2614
        %v2616 = vpop.f32.mrf.mxu0
        %2617 = vmatprep.mubr.bf16.mxu0 0
        %2618 = vmatmul.mubr.bf16.gmra.mxu0 %v2360
        %v2619 = vpop.f32.mrf.mxu0
        %v2620 = vadd.f32 0.0, %v2619
        %v2621 = vpop.f32.mrf.mxu0
        %v2622 = vpop.f32.mrf.mxu0
        %v2623 = vadd.f32 0.0, %v2622
        %v2624 = vpop.f32.mrf.mxu0
        %2625 = vmatprep.mubr.bf16.mxu0 0
        %2626 = vmatmul.mubr.bf16.gmra.mxu0 %v2363
        %v2627 = vpop.f32.mrf.mxu0
        %v2628 = vadd.f32 0.0, %v2627
        %v2629 = vpop.f32.mrf.mxu0
        %v2630 = vpop.f32.mrf.mxu0
        %v2631 = vadd.f32 0.0, %v2630
        %v2632 = vpop.f32.mrf.mxu0
        %2633 = vmatprep.mubr.bf16.mxu0 0
        %2634 = vmatmul.mubr.bf16.gmra.mxu0 %v2366
        %v2635 = vpop.f32.mrf.mxu0
        %v2636 = vadd.f32 0.0, %v2635
        %v2637 = vpop.f32.mrf.mxu0
        %v2638 = vpop.f32.mrf.mxu0
        %v2639 = vadd.f32 0.0, %v2638
        %v2640 = vpop.f32.mrf.mxu0
        %2641 = vmatprep.mubr.bf16.mxu0 0
        %2642 = vmatmul.mubr.bf16.gmra.mxu0 %v2369
        %v2643 = vpop.f32.mrf.mxu0
        %v2644 = vadd.f32 0.0, %v2643
        %v2645 = vpop.f32.mrf.mxu0
        %v2646 = vpop.f32.mrf.mxu0
        %v2647 = vadd.f32 0.0, %v2646
        %v2648 = vpop.f32.mrf.mxu0
        %2649 = vmatprep.mubr.bf16.mxu0 0
        %2650 = vmatmul.mubr.bf16.gmra.mxu0 %v2372
        %v2651 = vpop.f32.mrf.mxu0
        %v2652 = vadd.f32 0.0, %v2651
        %v2653 = vpop.f32.mrf.mxu0
        %v2654 = vpop.f32.mrf.mxu0
        %v2655 = vadd.f32 0.0, %v2654
        %v2656 = vpop.f32.mrf.mxu0
        %2657 = vmatprep.mubr.bf16.mxu0 0
        %2658 = vmatmul.mubr.bf16.gmra.mxu0 %v2375
        %v2659 = vpop.f32.mrf.mxu0
        %v2660 = vadd.f32 0.0, %v2659
        %v2661 = vpop.f32.mrf.mxu0
        %v2662 = vpop.f32.mrf.mxu0
        %v2663 = vadd.f32 0.0, %v2662
        %v2664 = vpop.f32.mrf.mxu0
        %2665 = vdwg.mxu0
        %v2666 = vadd.f32 %v2104, %v2412
        %v2667 = vadd.f32 %v2105, %v2415
        %v2668 = vadd.f32 %v2106, %v2420
        %v2669 = vadd.f32 %v2107, %v2423
        %v2670 = vadd.f32 %v2108, %v2428
        %v2671 = vadd.f32 %v2109, %v2431
        %v2672 = vadd.f32 %v2110, %v2436
        %v2673 = vadd.f32 %v2111, %v2439
        %v2674 = vadd.f32 %v2112, %v2444
        %v2675 = vadd.f32 %v2113, %v2447
        %v2676 = vadd.f32 %v2114, %v2452
        %v2677 = vadd.f32 %v2115, %v2455
        %v2678 = vadd.f32 %v2116, %v2460
        %v2679 = vadd.f32 %v2117, %v2463
        %v2680 = vadd.f32 %v2118, %v2468
        %v2681 = vadd.f32 %v2119, %v2471
        %v2682 = vadd.f32 %v2120, %v2476
        %v2683 = vadd.f32 %v2121, %v2479
        %v2684 = vadd.f32 %v2122, %v2484
        %v2685 = vadd.f32 %v2123, %v2487
        %v2686 = vadd.f32 %v2124, %v2492
        %v2687 = vadd.f32 %v2125, %v2495
        %v2688 = vadd.f32 %v2126, %v2500
        %v2689 = vadd.f32 %v2127, %v2503
        %v2690 = vadd.f32 %v2128, %v2508
        %v2691 = vadd.f32 %v2129, %v2511
        %v2692 = vadd.f32 %v2130, %v2516
        %v2693 = vadd.f32 %v2131, %v2519
        %v2694 = vadd.f32 %v2132, %v2524
        %v2695 = vadd.f32 %v2133, %v2527
        %v2696 = vadd.f32 %v2134, %v2532
        %v2697 = vadd.f32 %v2135, %v2535
        %v2698 = vadd.f32 %v2136, %v2540
        %v2699 = vadd.f32 %v2137, %v2543
        %v2700 = vadd.f32 %v2138, %v2548
        %v2701 = vadd.f32 %v2139, %v2551
        %v2702 = vadd.f32 %v2140, %v2556
        %v2703 = vadd.f32 %v2141, %v2559
        %v2704 = vadd.f32 %v2142, %v2564
        %v2705 = vadd.f32 %v2143, %v2567
        %v2706 = vadd.f32 %v2144, %v2572
        %v2707 = vadd.f32 %v2145, %v2575
        %v2708 = vadd.f32 %v2146, %v2580
        %v2709 = vadd.f32 %v2147, %v2583
        %v2710 = vadd.f32 %v2148, %v2588
        %v2711 = vadd.f32 %v2149, %v2591
        %v2712 = vadd.f32 %v2150, %v2596
        %v2713 = vadd.f32 %v2151, %v2599
        %v2714 = vadd.f32 %v2152, %v2604
        %v2715 = vadd.f32 %v2153, %v2607
        %v2716 = vadd.f32 %v2154, %v2612
        %v2717 = vadd.f32 %v2155, %v2615
        %v2718 = vadd.f32 %v2156, %v2620
        %v2719 = vadd.f32 %v2157, %v2623
        %v2720 = vadd.f32 %v2158, %v2628
        %v2721 = vadd.f32 %v2159, %v2631
        %v2722 = vadd.f32 %v2160, %v2636
        %v2723 = vadd.f32 %v2161, %v2639
        %v2724 = vadd.f32 %v2162, %v2644
        %v2725 = vadd.f32 %v2163, %v2647
        %v2726 = vadd.f32 %v2164, %v2652
        %v2727 = vadd.f32 %v2165, %v2655
        %v2728 = vadd.f32 %v2166, %v2660
        %v2729 = vadd.f32 %v2167, %v2663
        %v2730 = vmax.f32 %v2666, 0.0
        %v2731 = vmax.f32 %v2667, 0.0
        %v2732 = vmax.f32 %v2668, 0.0
        %v2733 = vmax.f32 %v2669, 0.0
        %v2734 = vmax.f32 %v2670, 0.0
        %v2735 = vmax.f32 %v2671, 0.0
        %v2736 = vmax.f32 %v2672, 0.0
        %v2737 = vmax.f32 %v2673, 0.0
        %v2738 = vmax.f32 %v2674, 0.0
        %v2739 = vmax.f32 %v2675, 0.0
        %v2740 = vmax.f32 %v2676, 0.0
        %v2741 = vmax.f32 %v2677, 0.0
        %v2742 = vmax.f32 %v2678, 0.0
        %v2743 = vmax.f32 %v2679, 0.0
        %v2744 = vmax.f32 %v2680, 0.0
        %v2745 = vmax.f32 %v2681, 0.0
        %v2746 = vmax.f32 %v2682, 0.0
        %v2747 = vmax.f32 %v2683, 0.0
        %v2748 = vmax.f32 %v2684, 0.0
        %v2749 = vmax.f32 %v2685, 0.0
        %v2750 = vmax.f32 %v2686, 0.0
        %v2751 = vmax.f32 %v2687, 0.0
        %v2752 = vmax.f32 %v2688, 0.0
        %v2753 = vmax.f32 %v2689, 0.0
        %v2754 = vmax.f32 %v2690, 0.0
        %v2755 = vmax.f32 %v2691, 0.0
        %v2756 = vmax.f32 %v2692, 0.0
        %v2757 = vmax.f32 %v2693, 0.0
        %v2758 = vmax.f32 %v2694, 0.0
        %v2759 = vmax.f32 %v2695, 0.0
        %v2760 = vmax.f32 %v2696, 0.0
        %v2761 = vmax.f32 %v2697, 0.0
        %v2762 = vmax.f32 %v2698, 0.0
        %v2763 = vmax.f32 %v2699, 0.0
        %v2764 = vmax.f32 %v2700, 0.0
        %v2765 = vmax.f32 %v2701, 0.0
        %v2766 = vmax.f32 %v2702, 0.0
        %v2767 = vmax.f32 %v2703, 0.0
        %v2768 = vmax.f32 %v2704, 0.0
        %v2769 = vmax.f32 %v2705, 0.0
        %v2770 = vmax.f32 %v2706, 0.0
        %v2771 = vmax.f32 %v2707, 0.0
        %v2772 = vmax.f32 %v2708, 0.0
        %v2773 = vmax.f32 %v2709, 0.0
        %v2774 = vmax.f32 %v2710, 0.0
        %v2775 = vmax.f32 %v2711, 0.0
        %v2776 = vmax.f32 %v2712, 0.0
        %v2777 = vmax.f32 %v2713, 0.0
        %v2778 = vmax.f32 %v2714, 0.0
        %v2779 = vmax.f32 %v2715, 0.0
        %v2780 = vmax.f32 %v2716, 0.0
        %v2781 = vmax.f32 %v2717, 0.0
        %v2782 = vmax.f32 %v2718, 0.0
        %v2783 = vmax.f32 %v2719, 0.0
        %v2784 = vmax.f32 %v2720, 0.0
        %v2785 = vmax.f32 %v2721, 0.0
        %v2786 = vmax.f32 %v2722, 0.0
        %v2787 = vmax.f32 %v2723, 0.0
        %v2788 = vmax.f32 %v2724, 0.0
        %v2789 = vmax.f32 %v2725, 0.0
        %v2790 = vmax.f32 %v2726, 0.0
        %v2791 = vmax.f32 %v2727, 0.0
        %v2792 = vmax.f32 %v2728, 0.0
        %v2793 = vmax.f32 %v2729, 0.0
        %v2794 = vld [vmem:[%s9] sm:$0xf]
        %v2795 = vld [vmem:[%s9 + $0x4] sm:$0xf]
        %v2796 = vld [vmem:[%s9 + $0x8] sm:$0xf]
        %v2797 = vld [vmem:[%s9 + $0xc] sm:$0xf]
        %v2798 = vld [vmem:[%s9 + $0x10] sm:$0xf]
        %v2799 = vld [vmem:[%s9 + $0x14] sm:$0xf]
        %v2800 = vld [vmem:[%s9 + $0x18] sm:$0xf]
        %v2801 = vld [vmem:[%s9 + $0x1c] sm:$0xf]
        %v2802 = vld [vmem:[%s10] sm:$0x1]
        %v2803 = vpack.c.bf16 %v2731, %v2730
        %v2804 = vpack.c.bf16 %v2733, %v2732
        %v2805 = vpack.c.bf16 %v2735, %v2734
        %v2806 = vpack.c.bf16 %v2737, %v2736
        %v2807 = vpack.c.bf16 %v2739, %v2738
        %v2808 = vpack.c.bf16 %v2741, %v2740
        %v2809 = vpack.c.bf16 %v2743, %v2742
        %v2810 = vpack.c.bf16 %v2745, %v2744
        %v2811 = vpack.c.bf16 %v2747, %v2746
        %v2812 = vpack.c.bf16 %v2749, %v2748
        %v2813 = vpack.c.bf16 %v2751, %v2750
        %v2814 = vpack.c.bf16 %v2753, %v2752
        %v2815 = vpack.c.bf16 %v2755, %v2754
        %v2816 = vpack.c.bf16 %v2757, %v2756
        %v2817 = vpack.c.bf16 %v2759, %v2758
        %v2818 = vpack.c.bf16 %v2761, %v2760
        %v2819 = vpack.c.bf16 %v2763, %v2762
        %v2820 = vpack.c.bf16 %v2765, %v2764
        %v2821 = vpack.c.bf16 %v2767, %v2766
        %v2822 = vpack.c.bf16 %v2769, %v2768
        %v2823 = vpack.c.bf16 %v2771, %v2770
        %v2824 = vpack.c.bf16 %v2773, %v2772
        %v2825 = vpack.c.bf16 %v2775, %v2774
        %v2826 = vpack.c.bf16 %v2777, %v2776
        %v2827 = vpack.c.bf16 %v2779, %v2778
        %v2828 = vpack.c.bf16 %v2781, %v2780
        %v2829 = vpack.c.bf16 %v2783, %v2782
        %v2830 = vpack.c.bf16 %v2785, %v2784
        %v2831 = vpack.c.bf16 %v2787, %v2786
        %v2832 = vpack.c.bf16 %v2789, %v2788
        %v2833 = vpack.c.bf16 %v2791, %v2790
        %v2834 = vpack.c.bf16 %v2793, %v2792
        %v2836 = vlaneseq
        %v2837 = vshrl.u32 %v2836, 7
        %v2838 = vsub.s32 0, %v2837
        %v2839 = vrot.slane %v2802, %v2838
        %v2849 = vunpack.c.l.b16 %v2794
        %v2850 = vunpack.c.l.b16 %v2795
        %v2851 = vunpack.c.l.b16 %v2796
        %v2852 = vunpack.c.l.b16 %v2797
        %v2853 = vunpack.c.l.b16 %v2798
        %v2854 = vunpack.c.l.b16 %v2799
        %v2855 = vunpack.c.l.b16 %v2800
        %v2856 = vunpack.c.l.b16 %v2801
        %v2857 = vpack.c.b16 %v2850, %v2849
        %v2858 = vpack.c.b16 %v2852, %v2851
        %v2859 = vpack.c.b16 %v2854, %v2853
        %v2860 = vpack.c.b16 %v2856, %v2855
        %vm2865 = vcmask 523264
        %v2867 = vsel %vm2865, %v2803, 0
        %v2870 = vsel %vm2865, %v2804, 0
        %v2873 = vsel %vm2865, %v2805, 0
        %v2876 = vsel %vm2865, %v2806, 0
        %v2879 = vsel %vm2865, %v2807, 0
        %v2882 = vsel %vm2865, %v2808, 0
        %v2885 = vsel %vm2865, %v2809, 0
        %v2888 = vsel %vm2865, %v2810, 0
        %v2891 = vsel %vm2865, %v2811, 0
        %v2894 = vsel %vm2865, %v2812, 0
        %v2897 = vsel %vm2865, %v2813, 0
        %v2900 = vsel %vm2865, %v2814, 0
        %v2903 = vsel %vm2865, %v2815, 0
        %v2906 = vsel %vm2865, %v2816, 0
        %v2909 = vsel %vm2865, %v2817, 0
        %v2912 = vsel %vm2865, %v2818, 0
        %v2915 = vsel %vm2865, %v2819, 0
        %v2918 = vsel %vm2865, %v2820, 0
        %v2921 = vsel %vm2865, %v2821, 0
        %v2924 = vsel %vm2865, %v2822, 0
        %v2927 = vsel %vm2865, %v2823, 0
        %v2930 = vsel %vm2865, %v2824, 0
        %v2933 = vsel %vm2865, %v2825, 0
        %v2936 = vsel %vm2865, %v2826, 0
        %v2939 = vsel %vm2865, %v2827, 0
        %v2942 = vsel %vm2865, %v2828, 0
        %v2945 = vsel %vm2865, %v2829, 0
        %v2948 = vsel %vm2865, %v2830, 0
        %v2951 = vsel %vm2865, %v2831, 0
        %v2954 = vsel %vm2865, %v2832, 0
        %v2957 = vsel %vm2865, %v2833, 0
        %v2960 = vsel %vm2865, %v2834, 0
        %2962 = vmatprep.subr.bf16.mxu0 0
        %2963 = vmatpush1.bf16.msra.mxu0 0
        %2964 = vmatprep.subr.bf16.mxu0 0
        %2965 = vmatpush1.bf16.msra.mxu0 0
        %2966 = vmatprep.subr.bf16.mxu0 0
        %2967 = vmatpush1.bf16.msra.mxu0 0
        %2968 = vmatprep.subr.bf16.mxu0 0
        %2969 = vmatpush1.bf16.msra.mxu0 0
        %2970 = vmatprep.subr.bf16.mxu0 0
        %2971 = vmatpush1.bf16.msra.mxu0 %v2860
        %2972 = vmatprep.subr.bf16.mxu0 0
        %2973 = vmatpush1.bf16.msra.mxu0 %v2859
        %2974 = vmatprep.subr.bf16.mxu0 0
        %2975 = vmatpush1.bf16.msra.mxu0 %v2858
        %2976 = vmatprep.subr.bf16.mxu0 0
        %2977 = vmatpush1.bf16.msra.mxu0 %v2857
        %2978 = vmatprep.subr.bf16.mxu0 0
        %2979 = vmatpush2.bf16.msra.mxu0 0
        %2980 = vmatprep.subr.bf16.mxu0 0
        %2981 = vmatpush2.bf16.msra.mxu0 0
        %2982 = vmatprep.subr.bf16.mxu0 0
        %2983 = vmatpush2.bf16.msra.mxu0 0
        %2984 = vmatprep.subr.bf16.mxu0 0
        %2985 = vmatpush2.bf16.msra.mxu0 0
        %2986 = vmatprep.subr.bf16.mxu0 0
        %2987 = vmatpush2.bf16.msra.mxu0 0
        %2988 = vmatprep.subr.bf16.mxu0 0
        %2989 = vmatpush2.bf16.msra.mxu0 0
        %2990 = vmatprep.subr.bf16.mxu0 0
        %2991 = vmatpush2.bf16.msra.mxu0 0
        %2992 = vmatprep.subr.bf16.mxu0 0
        %2993 = vmatpush2.bf16.msra.mxu0 0
        %2994 = vmatprep.mubr.bf16.mxu0 0
        %2995 = vmatmul.mubr.bf16.gmra.mxu0 %v2867
        %v2996 = vpop.f32.mrf.mxu0
        %v2997 = vadd.f32 %v2839, %v2996
        %v2998 = vpop.f32.mrf.mxu0
        %v2999 = vpop.f32.mrf.mxu0
        %v3000 = vadd.f32 %v2839, %v2999
        %v3001 = vpop.f32.mrf.mxu0
        %3002 = vmatprep.mubr.bf16.mxu0 0
        %3003 = vmatmul.mubr.bf16.gmra.mxu0 %v2870
        %v3004 = vpop.f32.mrf.mxu0
        %v3005 = vadd.f32 %v2839, %v3004
        %v3006 = vpop.f32.mrf.mxu0
        %v3007 = vpop.f32.mrf.mxu0
        %v3008 = vadd.f32 %v2839, %v3007
        %v3009 = vpop.f32.mrf.mxu0
        %3010 = vmatprep.mubr.bf16.mxu0 0
        %3011 = vmatmul.mubr.bf16.gmra.mxu0 %v2873
        %v3012 = vpop.f32.mrf.mxu0
        %v3013 = vadd.f32 %v2839, %v3012
        %v3014 = vpop.f32.mrf.mxu0
        %v3015 = vpop.f32.mrf.mxu0
        %v3016 = vadd.f32 %v2839, %v3015
        %v3017 = vpop.f32.mrf.mxu0
        %3018 = vmatprep.mubr.bf16.mxu0 0
        %3019 = vmatmul.mubr.bf16.gmra.mxu0 %v2876
        %v3020 = vpop.f32.mrf.mxu0
        %v3021 = vadd.f32 %v2839, %v3020
        %v3022 = vpop.f32.mrf.mxu0
        %v3023 = vpop.f32.mrf.mxu0
        %v3024 = vadd.f32 %v2839, %v3023
        %v3025 = vpop.f32.mrf.mxu0
        %3026 = vmatprep.mubr.bf16.mxu0 0
        %3027 = vmatmul.mubr.bf16.gmra.mxu0 %v2879
        %v3028 = vpop.f32.mrf.mxu0
        %v3029 = vadd.f32 %v2839, %v3028
        %v3030 = vpop.f32.mrf.mxu0
        %v3031 = vpop.f32.mrf.mxu0
        %v3032 = vadd.f32 %v2839, %v3031
        %v3033 = vpop.f32.mrf.mxu0
        %3034 = vmatprep.mubr.bf16.mxu0 0
        %3035 = vmatmul.mubr.bf16.gmra.mxu0 %v2882
        %v3036 = vpop.f32.mrf.mxu0
        %v3037 = vadd.f32 %v2839, %v3036
        %v3038 = vpop.f32.mrf.mxu0
        %v3039 = vpop.f32.mrf.mxu0
        %v3040 = vadd.f32 %v2839, %v3039
        %v3041 = vpop.f32.mrf.mxu0
        %3042 = vmatprep.mubr.bf16.mxu0 0
        %3043 = vmatmul.mubr.bf16.gmra.mxu0 %v2885
        %v3044 = vpop.f32.mrf.mxu0
        %v3045 = vadd.f32 %v2839, %v3044
        %v3046 = vpop.f32.mrf.mxu0
        %v3047 = vpop.f32.mrf.mxu0
        %v3048 = vadd.f32 %v2839, %v3047
        %v3049 = vpop.f32.mrf.mxu0
        %3050 = vmatprep.mubr.bf16.mxu0 0
        %3051 = vmatmul.mubr.bf16.gmra.mxu0 %v2888
        %v3052 = vpop.f32.mrf.mxu0
        %v3053 = vadd.f32 %v2839, %v3052
        %v3054 = vpop.f32.mrf.mxu0
        %v3055 = vpop.f32.mrf.mxu0
        %v3056 = vadd.f32 %v2839, %v3055
        %v3057 = vpop.f32.mrf.mxu0
        %3058 = vmatprep.mubr.bf16.mxu0 0
        %3059 = vmatmul.mubr.bf16.gmra.mxu0 %v2891
        %v3060 = vpop.f32.mrf.mxu0
        %v3061 = vadd.f32 %v2839, %v3060
        %v3062 = vpop.f32.mrf.mxu0
        %v3063 = vpop.f32.mrf.mxu0
        %v3064 = vadd.f32 %v2839, %v3063
        %v3065 = vpop.f32.mrf.mxu0
        %3066 = vmatprep.mubr.bf16.mxu0 0
        %3067 = vmatmul.mubr.bf16.gmra.mxu0 %v2894
        %v3068 = vpop.f32.mrf.mxu0
        %v3069 = vadd.f32 %v2839, %v3068
        %v3070 = vpop.f32.mrf.mxu0
        %v3071 = vpop.f32.mrf.mxu0
        %v3072 = vadd.f32 %v2839, %v3071
        %v3073 = vpop.f32.mrf.mxu0
        %3074 = vmatprep.mubr.bf16.mxu0 0
        %3075 = vmatmul.mubr.bf16.gmra.mxu0 %v2897
        %v3076 = vpop.f32.mrf.mxu0
        %v3077 = vadd.f32 %v2839, %v3076
        %v3078 = vpop.f32.mrf.mxu0
        %v3079 = vpop.f32.mrf.mxu0
        %v3080 = vadd.f32 %v2839, %v3079
        %v3081 = vpop.f32.mrf.mxu0
        %3082 = vmatprep.mubr.bf16.mxu0 0
        %3083 = vmatmul.mubr.bf16.gmra.mxu0 %v2900
        %v3084 = vpop.f32.mrf.mxu0
        %v3085 = vadd.f32 %v2839, %v3084
        %v3086 = vpop.f32.mrf.mxu0
        %v3087 = vpop.f32.mrf.mxu0
        %v3088 = vadd.f32 %v2839, %v3087
        %v3089 = vpop.f32.mrf.mxu0
        %3090 = vmatprep.mubr.bf16.mxu0 0
        %3091 = vmatmul.mubr.bf16.gmra.mxu0 %v2903
        %v3092 = vpop.f32.mrf.mxu0
        %v3093 = vadd.f32 %v2839, %v3092
        %v3094 = vpop.f32.mrf.mxu0
        %v3095 = vpop.f32.mrf.mxu0
        %v3096 = vadd.f32 %v2839, %v3095
        %v3097 = vpop.f32.mrf.mxu0
        %3098 = vmatprep.mubr.bf16.mxu0 0
        %3099 = vmatmul.mubr.bf16.gmra.mxu0 %v2906
        %v3100 = vpop.f32.mrf.mxu0
        %v3101 = vadd.f32 %v2839, %v3100
        %v3102 = vpop.f32.mrf.mxu0
        %v3103 = vpop.f32.mrf.mxu0
        %v3104 = vadd.f32 %v2839, %v3103
        %v3105 = vpop.f32.mrf.mxu0
        %3106 = vmatprep.mubr.bf16.mxu0 0
        %3107 = vmatmul.mubr.bf16.gmra.mxu0 %v2909
        %v3108 = vpop.f32.mrf.mxu0
        %v3109 = vadd.f32 %v2839, %v3108
        %v3110 = vpop.f32.mrf.mxu0
        %v3111 = vpop.f32.mrf.mxu0
        %v3112 = vadd.f32 %v2839, %v3111
        %v3113 = vpop.f32.mrf.mxu0
        %3114 = vmatprep.mubr.bf16.mxu0 0
        %3115 = vmatmul.mubr.bf16.gmra.mxu0 %v2912
        %v3116 = vpop.f32.mrf.mxu0
        %v3117 = vadd.f32 %v2839, %v3116
        %v3118 = vpop.f32.mrf.mxu0
        %v3119 = vpop.f32.mrf.mxu0
        %v3120 = vadd.f32 %v2839, %v3119
        %v3121 = vpop.f32.mrf.mxu0
        %3122 = vmatprep.mubr.bf16.mxu0 0
        %3123 = vmatmul.mubr.bf16.gmra.mxu0 %v2915
        %v3124 = vpop.f32.mrf.mxu0
        %v3125 = vadd.f32 %v2839, %v3124
        %v3126 = vpop.f32.mrf.mxu0
        %v3127 = vpop.f32.mrf.mxu0
        %v3128 = vadd.f32 %v2839, %v3127
        %v3129 = vpop.f32.mrf.mxu0
        %3130 = vmatprep.mubr.bf16.mxu0 0
        %3131 = vmatmul.mubr.bf16.gmra.mxu0 %v2918
        %v3132 = vpop.f32.mrf.mxu0
        %v3133 = vadd.f32 %v2839, %v3132
        %v3134 = vpop.f32.mrf.mxu0
        %v3135 = vpop.f32.mrf.mxu0
        %v3136 = vadd.f32 %v2839, %v3135
        %v3137 = vpop.f32.mrf.mxu0
        %3138 = vmatprep.mubr.bf16.mxu0 0
        %3139 = vmatmul.mubr.bf16.gmra.mxu0 %v2921
        %v3140 = vpop.f32.mrf.mxu0
        %v3141 = vadd.f32 %v2839, %v3140
        %v3142 = vpop.f32.mrf.mxu0
        %v3143 = vpop.f32.mrf.mxu0
        %v3144 = vadd.f32 %v2839, %v3143
        %v3145 = vpop.f32.mrf.mxu0
        %3146 = vmatprep.mubr.bf16.mxu0 0
        %3147 = vmatmul.mubr.bf16.gmra.mxu0 %v2924
        %v3148 = vpop.f32.mrf.mxu0
        %v3149 = vadd.f32 %v2839, %v3148
        %v3150 = vpop.f32.mrf.mxu0
        %v3151 = vpop.f32.mrf.mxu0
        %v3152 = vadd.f32 %v2839, %v3151
        %v3153 = vpop.f32.mrf.mxu0
        %3154 = vmatprep.mubr.bf16.mxu0 0
        %3155 = vmatmul.mubr.bf16.gmra.mxu0 %v2927
        %v3156 = vpop.f32.mrf.mxu0
        %v3157 = vadd.f32 %v2839, %v3156
        %v3158 = vpop.f32.mrf.mxu0
        %v3159 = vpop.f32.mrf.mxu0
        %v3160 = vadd.f32 %v2839, %v3159
        %v3161 = vpop.f32.mrf.mxu0
        %3162 = vmatprep.mubr.bf16.mxu0 0
        %3163 = vmatmul.mubr.bf16.gmra.mxu0 %v2930
        %v3164 = vpop.f32.mrf.mxu0
        %v3165 = vadd.f32 %v2839, %v3164
        %v3166 = vpop.f32.mrf.mxu0
        %v3167 = vpop.f32.mrf.mxu0
        %v3168 = vadd.f32 %v2839, %v3167
        %v3169 = vpop.f32.mrf.mxu0
        %3170 = vmatprep.mubr.bf16.mxu0 0
        %3171 = vmatmul.mubr.bf16.gmra.mxu0 %v2933
        %v3172 = vpop.f32.mrf.mxu0
        %v3173 = vadd.f32 %v2839, %v3172
        %v3174 = vpop.f32.mrf.mxu0
        %v3175 = vpop.f32.mrf.mxu0
        %v3176 = vadd.f32 %v2839, %v3175
        %v3177 = vpop.f32.mrf.mxu0
        %3178 = vmatprep.mubr.bf16.mxu0 0
        %3179 = vmatmul.mubr.bf16.gmra.mxu0 %v2936
        %v3180 = vpop.f32.mrf.mxu0
        %v3181 = vadd.f32 %v2839, %v3180
        %v3182 = vpop.f32.mrf.mxu0
        %v3183 = vpop.f32.mrf.mxu0
        %v3184 = vadd.f32 %v2839, %v3183
        %v3185 = vpop.f32.mrf.mxu0
        %3186 = vmatprep.mubr.bf16.mxu0 0
        %3187 = vmatmul.mubr.bf16.gmra.mxu0 %v2939
        %v3188 = vpop.f32.mrf.mxu0
        %v3189 = vadd.f32 %v2839, %v3188
        %v3190 = vpop.f32.mrf.mxu0
        %v3191 = vpop.f32.mrf.mxu0
        %v3192 = vadd.f32 %v2839, %v3191
        %v3193 = vpop.f32.mrf.mxu0
        %3194 = vmatprep.mubr.bf16.mxu0 0
        %3195 = vmatmul.mubr.bf16.gmra.mxu0 %v2942
        %v3196 = vpop.f32.mrf.mxu0
        %v3197 = vadd.f32 %v2839, %v3196
        %v3198 = vpop.f32.mrf.mxu0
        %v3199 = vpop.f32.mrf.mxu0
        %v3200 = vadd.f32 %v2839, %v3199
        %v3201 = vpop.f32.mrf.mxu0
        %3202 = vmatprep.mubr.bf16.mxu0 0
        %3203 = vmatmul.mubr.bf16.gmra.mxu0 %v2945
        %v3204 = vpop.f32.mrf.mxu0
        %v3205 = vadd.f32 %v2839, %v3204
        %v3206 = vpop.f32.mrf.mxu0
        %v3207 = vpop.f32.mrf.mxu0
        %v3208 = vadd.f32 %v2839, %v3207
        %v3209 = vpop.f32.mrf.mxu0
        %3210 = vmatprep.mubr.bf16.mxu0 0
        %3211 = vmatmul.mubr.bf16.gmra.mxu0 %v2948
        %v3212 = vpop.f32.mrf.mxu0
        %v3213 = vadd.f32 %v2839, %v3212
        %v3214 = vpop.f32.mrf.mxu0
        %v3215 = vpop.f32.mrf.mxu0
        %v3216 = vadd.f32 %v2839, %v3215
        %v3217 = vpop.f32.mrf.mxu0
        %3218 = vmatprep.mubr.bf16.mxu0 0
        %3219 = vmatmul.mubr.bf16.gmra.mxu0 %v2951
        %v3220 = vpop.f32.mrf.mxu0
        %v3221 = vadd.f32 %v2839, %v3220
        %v3222 = vpop.f32.mrf.mxu0
        %v3223 = vpop.f32.mrf.mxu0
        %v3224 = vadd.f32 %v2839, %v3223
        %v3225 = vpop.f32.mrf.mxu0
        %3226 = vmatprep.mubr.bf16.mxu0 0
        %3227 = vmatmul.mubr.bf16.gmra.mxu0 %v2954
        %v3228 = vpop.f32.mrf.mxu0
        %v3229 = vadd.f32 %v2839, %v3228
        %v3230 = vpop.f32.mrf.mxu0
        %v3231 = vpop.f32.mrf.mxu0
        %v3232 = vadd.f32 %v2839, %v3231
        %v3233 = vpop.f32.mrf.mxu0
        %3234 = vmatprep.mubr.bf16.mxu0 0
        %3235 = vmatmul.mubr.bf16.gmra.mxu0 %v2957
        %v3236 = vpop.f32.mrf.mxu0
        %v3237 = vadd.f32 %v2839, %v3236
        %v3238 = vpop.f32.mrf.mxu0
        %v3239 = vpop.f32.mrf.mxu0
        %v3240 = vadd.f32 %v2839, %v3239
        %v3241 = vpop.f32.mrf.mxu0
        %3242 = vmatprep.mubr.bf16.mxu0 0
        %3243 = vmatmul.mubr.bf16.gmra.mxu0 %v2960
        %v3244 = vpop.f32.mrf.mxu0
        %v3245 = vadd.f32 %v2839, %v3244
        %v3246 = vpop.f32.mrf.mxu0
        %v3247 = vpop.f32.mrf.mxu0
        %v3248 = vadd.f32 %v2839, %v3247
        %v3249 = vpop.f32.mrf.mxu0
        %3250 = vdwg.mxu0
        %v3251 = vmax.f32 %v2997, 0.0
        %v3252 = vmax.f32 %v3000, 0.0
        %v3253 = vmax.f32 %v3005, 0.0
        %v3254 = vmax.f32 %v3008, 0.0
        %v3255 = vmax.f32 %v3013, 0.0
        %v3256 = vmax.f32 %v3016, 0.0
        %v3257 = vmax.f32 %v3021, 0.0
        %v3258 = vmax.f32 %v3024, 0.0
        %v3259 = vmax.f32 %v3029, 0.0
        %v3260 = vmax.f32 %v3032, 0.0
        %v3261 = vmax.f32 %v3037, 0.0
        %v3262 = vmax.f32 %v3040, 0.0
        %v3263 = vmax.f32 %v3045, 0.0
        %v3264 = vmax.f32 %v3048, 0.0
        %v3265 = vmax.f32 %v3053, 0.0
        %v3266 = vmax.f32 %v3056, 0.0
        %v3267 = vmax.f32 %v3061, 0.0
        %v3268 = vmax.f32 %v3064, 0.0
        %v3269 = vmax.f32 %v3069, 0.0
        %v3270 = vmax.f32 %v3072, 0.0
        %v3271 = vmax.f32 %v3077, 0.0
        %v3272 = vmax.f32 %v3080, 0.0
        %v3273 = vmax.f32 %v3085, 0.0
        %v3274 = vmax.f32 %v3088, 0.0
        %v3275 = vmax.f32 %v3093, 0.0
        %v3276 = vmax.f32 %v3096, 0.0
        %v3277 = vmax.f32 %v3101, 0.0
        %v3278 = vmax.f32 %v3104, 0.0
        %v3279 = vmax.f32 %v3109, 0.0
        %v3280 = vmax.f32 %v3112, 0.0
        %v3281 = vmax.f32 %v3117, 0.0
        %v3282 = vmax.f32 %v3120, 0.0
        %v3283 = vmax.f32 %v3125, 0.0
        %v3284 = vmax.f32 %v3128, 0.0
        %v3285 = vmax.f32 %v3133, 0.0
        %v3286 = vmax.f32 %v3136, 0.0
        %v3287 = vmax.f32 %v3141, 0.0
        %v3288 = vmax.f32 %v3144, 0.0
        %v3289 = vmax.f32 %v3149, 0.0
        %v3290 = vmax.f32 %v3152, 0.0
        %v3291 = vmax.f32 %v3157, 0.0
        %v3292 = vmax.f32 %v3160, 0.0
        %v3293 = vmax.f32 %v3165, 0.0
        %v3294 = vmax.f32 %v3168, 0.0
        %v3295 = vmax.f32 %v3173, 0.0
        %v3296 = vmax.f32 %v3176, 0.0
        %v3297 = vmax.f32 %v3181, 0.0
        %v3298 = vmax.f32 %v3184, 0.0
        %v3299 = vmax.f32 %v3189, 0.0
        %v3300 = vmax.f32 %v3192, 0.0
        %v3301 = vmax.f32 %v3197, 0.0
        %v3302 = vmax.f32 %v3200, 0.0
        %v3303 = vmax.f32 %v3205, 0.0
        %v3304 = vmax.f32 %v3208, 0.0
        %v3305 = vmax.f32 %v3213, 0.0
        %v3306 = vmax.f32 %v3216, 0.0
        %v3307 = vmax.f32 %v3221, 0.0
        %v3308 = vmax.f32 %v3224, 0.0
        %v3309 = vmax.f32 %v3229, 0.0
        %v3310 = vmax.f32 %v3232, 0.0
        %v3311 = vmax.f32 %v3237, 0.0
        %v3312 = vmax.f32 %v3240, 0.0
        %v3313 = vmax.f32 %v3245, 0.0
        %v3314 = vmax.f32 %v3248, 0.0
        %v3315 = vld [vmem:[%s11] sm:$0x3]
        %v3316 = vpack.c.bf16 %v3252, %v3251
        %v3317 = vpack.c.bf16 %v3254, %v3253
        %v3318 = vpack.c.bf16 %v3256, %v3255
        %v3319 = vpack.c.bf16 %v3258, %v3257
        %v3320 = vpack.c.bf16 %v3260, %v3259
        %v3321 = vpack.c.bf16 %v3262, %v3261
        %v3322 = vpack.c.bf16 %v3264, %v3263
        %v3323 = vpack.c.bf16 %v3266, %v3265
        %v3324 = vpack.c.bf16 %v3268, %v3267
        %v3325 = vpack.c.bf16 %v3270, %v3269
        %v3326 = vpack.c.bf16 %v3272, %v3271
        %v3327 = vpack.c.bf16 %v3274, %v3273
        %v3328 = vpack.c.bf16 %v3276, %v3275
        %v3329 = vpack.c.bf16 %v3278, %v3277
        %v3330 = vpack.c.bf16 %v3280, %v3279
        %v3331 = vpack.c.bf16 %v3282, %v3281
        %v3332 = vpack.c.bf16 %v3284, %v3283
        %v3333 = vpack.c.bf16 %v3286, %v3285
        %v3334 = vpack.c.bf16 %v3288, %v3287
        %v3335 = vpack.c.bf16 %v3290, %v3289
        %v3336 = vpack.c.bf16 %v3292, %v3291
        %v3337 = vpack.c.bf16 %v3294, %v3293
        %v3338 = vpack.c.bf16 %v3296, %v3295
        %v3339 = vpack.c.bf16 %v3298, %v3297
        %v3340 = vpack.c.bf16 %v3300, %v3299
        %v3341 = vpack.c.bf16 %v3302, %v3301
        %v3342 = vpack.c.bf16 %v3304, %v3303
        %v3343 = vpack.c.bf16 %v3306, %v3305
        %v3344 = vpack.c.bf16 %v3308, %v3307
        %v3345 = vpack.c.bf16 %v3310, %v3309
        %v3346 = vpack.c.bf16 %v3312, %v3311
        %v3347 = vpack.c.bf16 %v3314, %v3313
        %v3348 = vld [vmem:[%s12] sm:$0x7]
        %3350 = vset.pattern.permute.xlu0 0
        %3351 = vperm.xlu0 %3350, %v3348
        %v3352 = vpop.permute.xlu0 %3351
        %v3355 = vsel %vm2865, %v3315, 0
        %v3358 = vsel %vm2865, %v3316, 0
        %v3361 = vsel %vm2865, %v3317, 0
        %v3364 = vsel %vm2865, %v3318, 0
        %v3367 = vsel %vm2865, %v3319, 0
        %v3370 = vsel %vm2865, %v3320, 0
        %v3373 = vsel %vm2865, %v3321, 0
        %v3376 = vsel %vm2865, %v3322, 0
        %v3379 = vsel %vm2865, %v3323, 0
        %v3382 = vsel %vm2865, %v3324, 0
        %v3385 = vsel %vm2865, %v3325, 0
        %v3388 = vsel %vm2865, %v3326, 0
        %v3391 = vsel %vm2865, %v3327, 0
        %v3394 = vsel %vm2865, %v3328, 0
        %v3397 = vsel %vm2865, %v3329, 0
        %v3400 = vsel %vm2865, %v3330, 0
        %v3403 = vsel %vm2865, %v3331, 0
        %v3406 = vsel %vm2865, %v3332, 0
        %v3409 = vsel %vm2865, %v3333, 0
        %v3412 = vsel %vm2865, %v3334, 0
        %v3415 = vsel %vm2865, %v3335, 0
        %v3418 = vsel %vm2865, %v3336, 0
        %v3421 = vsel %vm2865, %v3337, 0
        %v3424 = vsel %vm2865, %v3338, 0
        %v3427 = vsel %vm2865, %v3339, 0
        %v3430 = vsel %vm2865, %v3340, 0
        %v3433 = vsel %vm2865, %v3341, 0
        %v3436 = vsel %vm2865, %v3342, 0
        %v3439 = vsel %vm2865, %v3343, 0
        %v3442 = vsel %vm2865, %v3344, 0
        %v3445 = vsel %vm2865, %v3345, 0
        %v3448 = vsel %vm2865, %v3346, 0
        %v3451 = vsel %vm2865, %v3347, 0
        %3453 = vmatprep.subr.bf16.mxu0 0
        %3454 = vmatpush1.bf16.xpose.msra.mxu0 %v3379
        %3455 = vmatprep.subr.bf16.mxu0 0
        %3456 = vmatpush1.bf16.xpose.msra.mxu0 %v3376
        %3457 = vmatprep.subr.bf16.mxu0 0
        %3458 = vmatpush1.bf16.xpose.msra.mxu0 %v3373
        %3459 = vmatprep.subr.bf16.mxu0 0
        %3460 = vmatpush1.bf16.xpose.msra.mxu0 %v3370
        %3461 = vmatprep.subr.bf16.mxu0 0
        %3462 = vmatpush1.bf16.xpose.msra.mxu0 %v3367
        %3463 = vmatprep.subr.bf16.mxu0 0
        %3464 = vmatpush1.bf16.xpose.msra.mxu0 %v3364
        %3465 = vmatprep.subr.bf16.mxu0 0
        %3466 = vmatpush1.bf16.xpose.msra.mxu0 %v3361
        %3467 = vmatprep.subr.bf16.mxu0 0
        %3468 = vmatpush1.bf16.xpose.msra.mxu0 %v3358
        %3469 = vmatprep.subr.bf16.mxu0 0
        %3470 = vmatpush2.bf16.xpose.msra.mxu0 %v3403
        %3471 = vmatprep.subr.bf16.mxu0 0
        %3472 = vmatpush2.bf16.xpose.msra.mxu0 %v3400
        %3473 = vmatprep.subr.bf16.mxu0 0
        %3474 = vmatpush2.bf16.xpose.msra.mxu0 %v3397
        %3475 = vmatprep.subr.bf16.mxu0 0
        %3476 = vmatpush2.bf16.xpose.msra.mxu0 %v3394
        %3477 = vmatprep.subr.bf16.mxu0 0
        %3478 = vmatpush2.bf16.xpose.msra.mxu0 %v3391
        %3479 = vmatprep.subr.bf16.mxu0 0
        %3480 = vmatpush2.bf16.xpose.msra.mxu0 %v3388
        %3481 = vmatprep.subr.bf16.mxu0 0
        %3482 = vmatpush2.bf16.xpose.msra.mxu0 %v3385
        %3483 = vmatprep.subr.bf16.mxu0 0
        %3484 = vmatpush2.bf16.xpose.msra.mxu0 %v3382
        %3485 = vmatprep.mubr.bf16.mxu0 0
        %3486 = vmatmul.mubr.bf16.gmra.mxu0 %v3355
        %v3487 = vpop.f32.mrf.mxu0
        %v3488 = vadd.f32 %v3352, %v3487
        %v3489 = vpop.f32.mrf.mxu0
        %v3490 = vadd.f32 %v3352, %v3489
        %v3491 = vpop.f32.mrf.mxu0
        %v3492 = vpop.f32.mrf.mxu0
        %3493 = vdwg.mxu0
        %3494 = vmatprep.subr.bf16.mxu0 0
        %3495 = vmatpush1.bf16.xpose.msra.mxu0 %v3427
        %3496 = vmatprep.subr.bf16.mxu0 0
        %3497 = vmatpush1.bf16.xpose.msra.mxu0 %v3424
        %3498 = vmatprep.subr.bf16.mxu0 0
        %3499 = vmatpush1.bf16.xpose.msra.mxu0 %v3421
        %3500 = vmatprep.subr.bf16.mxu0 0
        %3501 = vmatpush1.bf16.xpose.msra.mxu0 %v3418
        %3502 = vmatprep.subr.bf16.mxu0 0
        %3503 = vmatpush1.bf16.xpose.msra.mxu0 %v3415
        %3504 = vmatprep.subr.bf16.mxu0 0
        %3505 = vmatpush1.bf16.xpose.msra.mxu0 %v3412
        %3506 = vmatprep.subr.bf16.mxu0 0
        %3507 = vmatpush1.bf16.xpose.msra.mxu0 %v3409
        %3508 = vmatprep.subr.bf16.mxu0 0
        %3509 = vmatpush1.bf16.xpose.msra.mxu0 %v3406
        %3510 = vmatprep.subr.bf16.mxu0 0
        %3511 = vmatpush2.bf16.xpose.msra.mxu0 %v3451
        %3512 = vmatprep.subr.bf16.mxu0 0
        %3513 = vmatpush2.bf16.xpose.msra.mxu0 %v3448
        %3514 = vmatprep.subr.bf16.mxu0 0
        %3515 = vmatpush2.bf16.xpose.msra.mxu0 %v3445
        %3516 = vmatprep.subr.bf16.mxu0 0
        %3517 = vmatpush2.bf16.xpose.msra.mxu0 %v3442
        %3518 = vmatprep.subr.bf16.mxu0 0
        %3519 = vmatpush2.bf16.xpose.msra.mxu0 %v3439
        %3520 = vmatprep.subr.bf16.mxu0 0
        %3521 = vmatpush2.bf16.xpose.msra.mxu0 %v3436
        %3522 = vmatprep.subr.bf16.mxu0 0
        %3523 = vmatpush2.bf16.xpose.msra.mxu0 %v3433
        %3524 = vmatprep.subr.bf16.mxu0 0
        %3525 = vmatpush2.bf16.xpose.msra.mxu0 %v3430
        %3526 = vmatprep.mubr.bf16.mxu0 0
        %3527 = vmatmul.mubr.bf16.gmra.mxu0 %v3355
        %v3528 = vpop.f32.mrf.mxu0
        %v3529 = vadd.f32 %v3352, %v3528
        %v3530 = vpop.f32.mrf.mxu0
        %v3531 = vadd.f32 %v3352, %v3530
        %v3532 = vpop.f32.mrf.mxu0
        %v3533 = vpop.f32.mrf.mxu0
        %3534 = vdwg.mxu0
        %v3535 = vxor.u32 %v3488, 2147483648
        %v3536 = vxor.u32 %v3490, 2147483648
        %v3537 = vxor.u32 %v3529, 2147483648
        %v3538 = vxor.u32 %v3531, 2147483648
        %v3539 = vmul.f32 %v3535, 1.442695
        %v3540 = vpow.pop %v3539
        %v3541 = vmul.f32 %v3536, 1.442695
        %v3542 = vpow.pop %v3541
        %v3543 = vmul.f32 %v3537, 1.442695
        %v3544 = vpow.pop %v3543
        %v3545 = vmul.f32 %v3538, 1.442695
        %v3546 = vpow.pop %v3545
        %v3547 = vadd.f32 %v3540, 1.0
        %v3548 = vadd.f32 %v3542, 1.0
        %v3549 = vadd.f32 %v3544, 1.0
        %v3550 = vadd.f32 %v3546, 1.0
        %v3551 = vrcp.pop %v3547
        %v3552 = vmul.f32 1.0, %v3551
        %v3553 = vrcp.pop %v3548
        %v3554 = vmul.f32 1.0, %v3553
        %v3555 = vrcp.pop %v3549
        %v3556 = vmul.f32 1.0, %v3555
        %v3557 = vrcp.pop %v3550
        %v3558 = vmul.f32 1.0, %v3557
        %v3563 = vcombine.low %v3552, %v3554
        %v3564 = vcombine.low %v3556, %v3558
        %3567 = vst [vmem:[%s482] sm:$0x77] %v3563
        %3568 = vst [vmem:[%s482 + $0x8] sm:$0x77] %v3564
        %s3569 = sand.u32 %s328, 1
        %s3570 = scalar_lea.sflag [#allocation3], %s3569
        %s3571 = sand.u32 %s328, 1
        %s3572 = smul.addr %s3571, 16
        %s3573 = scalar_lea.vmem [#allocation2], %s3572
        // Predicated region
        $region73: #{tpu_custom_call.1} parent=71 // pred_check
          %p3574 = pneg %p338
        $region74: #{tpu_custom_call.1} parent=71 // pred_check_branch
          %3576 = sbr.rel (%p3574) target = $region76
        $region75: #{tpu_custom_call.1} parent=71 // pred_region
          %s3577 = smul.u32 4, %s27
          %s3579 = ssub.s32 256, 256
          %3580 = vsyncadd %s3570, %s3579
          %s3581 = smul.addr %s3577, 64
          %s3582 = scalar_lea.hbm %s13, %s3581
          %s3584 = sshll.u32 %s3573, 4
          %s3585 = int_to_ptr.vmem [resolvable:$true] %s3584
          %3587 = dma.vmem_to_hbm [thread:$0]  %s3585, 256, %s3582, %s3570
        $region76: #{tpu_custom_call.1} parent=71 // pred_fallthru
          _
      $region72: #{tpu_custom_call.1} parent=5 // pred_fallthru
        _
      %p3588 = scmp.le.s32.totalorder 2, %s22
      // Predicated region
      $region77: #{tpu_custom_call.1} parent=5 // pred_check
        %p3589 = pneg %p3588
      $region78: #{tpu_custom_call.1} parent=5 // pred_check_branch
        %3591 = sbr.rel (%p3589) target = $region80
      $region79: #{tpu_custom_call.1} parent=5 // pred_region
        %s3592 = ssub.s32 %s22, 2
        // Predicated region
        $region81: #{tpu_custom_call.1} parent=79 // pred_check
          %p3593 = pneg %p344
        $region82: #{tpu_custom_call.1} parent=79 // pred_check_branch
          %3595 = sbr.rel (%p3593) target = $region84
        $region83: #{tpu_custom_call.1} parent=79 // pred_region
          %s3596 = sand.u32 %s329, 1
          %s3597 = scalar_lea.sflag [#allocation3], %s3596
          %s3598 = sand.u32 %s329, 1
          %s3599 = smul.addr %s3598, 16
          %s3600 = scalar_lea.vmem [#allocation2], %s3599
          %3601 = dma.done %s3597, 256
        $region84: #{tpu_custom_call.1} parent=79 // pred_fallthru
          _
      $region80: #{tpu_custom_call.1} parent=5 // pred_fallthru
        _
    $region6: #{tpu_custom_call.1} parent=1 // loop_footer
      %s26 = sadd.s32 1, %s22
    $region7: #{tpu_custom_call.1} parent=1 // loop_footer_branch
      %21 = sbr.rel target = $region3
    $region8: #{tpu_custom_call.1} parent=1 // loop_exit
      _
    %3602 = vsyncpa [#allocation3], 1
    %s3603 = scalar_lea.sflag [#allocation3], 1
    %3604 = vsyncpa %s3603, 1

</llo_original>
